<compile_context>
chip_gen: v5e
topology: v5e:2x2
jax: 0.10.0
libtpu: 0.0.40
codegen_flags: <defaults>
</compile_context>

<pallas_src>
import math
import functools

import jax
import jax.numpy as jnp
from jax.experimental import pallas as pl
from jax.experimental.pallas import tpu as pltpu


# ----------------------------------------------------------------------------
# Sinusoidal positional encoding (non-interleaved: [sin(p*w), cos(p*w)])
# ----------------------------------------------------------------------------
def _sincos(vals, d_model):
    d2 = d_model // 2
    w = jnp.exp(-math.log(10000.0)
                * jnp.arange(d2, dtype=jnp.float32) * 2.0 / d_model)
    ang = vals[:, None] * w[None, :]
    return jnp.concatenate([jnp.sin(ang), jnp.cos(ang)], axis=-1)


# ----------------------------------------------------------------------------
# Kernel 1: embedding output -> num_layers shared-weight encoder layers
# ----------------------------------------------------------------------------
def _ut_layers_kernel(x_ref, wqkv_ref, wm_ref, u_ref, vb_ref, wpos2_ref,
                      cos_ref, sin_ref, pej_ref,
                      ln1g_ref, ln1b_ref, w1_ref, b1_ref, w2_ref, b2_ref,
                      ln2g_ref, ln2b_ref, o_ref, *, nhead, head_dim, num_layers):
    T, D = x_ref.shape[1], x_ref.shape[2]
    Dh, H = head_dim, nhead
    bf16 = jnp.bfloat16

    def mxu(a, b, transpose_rhs=False):       # bf16 in, f32 MXU accumulation
        dims = (((1,), (1,)), ((), ())) if transpose_rhs else (((1,), (0,)), ((), ()))
        return jax.lax.dot_general(a, b, dims, preferred_element_type=jnp.float32)

    def layer_norm(y, g, b):                  # f32 math (v5e has no bf16 VPU/EUP)
        mu = jnp.mean(y, axis=-1, keepdims=True)
        var = jnp.mean(jnp.square(y - mu), axis=-1, keepdims=True)
        return (y - mu) * jax.lax.rsqrt(var + 1e-5) * g + b

    def one_layer(_, x):
        xb = x.astype(bf16)                   # hoisted cast, reused by QKV matmul
        qkv = mxu(xb, wqkv_ref[...])          # (T, 3D) f32; q columns pre-scaled
        q = qkv[:, :D]
        k = qkv[:, D:2 * D].astype(bf16)      # cast once, sliced per head below
        v = qkv[:, 2 * D:].astype(bf16)
        qc = (q + u_ref[...]).astype(bf16)    # + global content bias  (pre-scaled)
        qp = (q + vb_ref[...]).astype(bf16)   # + global positional bias (pre-scaled)

        head_outs = []
        for h in range(H):                    # static unroll over heads
            sl = slice(h * Dh, (h + 1) * Dh)
            # content term ((q+u) . k_j); 1/sqrt(Dh) already folded into weights.
            content = mxu(qc[:, sl], k[:, sl], transpose_rhs=True)      # (T, T)
            # positional term via exact angle-addition factorization:
            #   [g | gJ] = qp_h @ [Wpos_h^T | Wpos_h^T @ J]   (J pre-folded)
            #   rot      = g*cos(i*w) + gJ*sin(i*w)
            #   pos[i,j] = rot[i] . PE(j)  ==  (q+v)_i . (PE(j-i) @ Wpos_h)
            ggj = mxu(qp[:, sl], wpos2_ref[h])                          # (T, 2D)
            rot = ggj[:, :D] * cos_ref[...] + ggj[:, D:] * sin_ref[...]
            pos = mxu(rot.astype(bf16), pej_ref[...], transpose_rhs=True)

            logits = content + pos            # f32 softmax
            m = jnp.max(logits, axis=-1, keepdims=True)
            e = jnp.exp(logits - m)
            inv = pl.reciprocal(jnp.sum(e, axis=-1, keepdims=True), approx=True)
            att = (e * inv).astype(bf16)
            head_outs.append(mxu(att, v[:, sl]))                        # (T, Dh)

        # One full-width output projection instead of H narrow-K matmuls.
        ho = jnp.concatenate(head_outs, axis=-1).astype(bf16)           # (T, D)
        attn = mxu(ho, wm_ref[...])                                     # (T, D)

        # TODO(synk): nn.Dropout layers are identity here (inference semantics).
        src = layer_norm(x + attn, ln1g_ref[...], ln1b_ref[...])
        ff = jnp.maximum(mxu(src.astype(bf16), w1_ref[...]) + b1_ref[...], 0.0)
        ff = mxu(ff.astype(bf16), w2_ref[...]) + b2_ref[...]
        return layer_norm(src + ff, ln2g_ref[...], ln2b_ref[...])

    x = x_ref[0].astype(jnp.float32)          # bf16 activation block -> f32 residual
    x = jax.lax.fori_loop(0, num_layers, one_layer, x)
    o_ref[0] = x                              # (T, D) f32 hidden states


# ----------------------------------------------------------------------------
# Kernel 2: FC head, tiled over vocab, writes the (B, V, T) layout directly
# ----------------------------------------------------------------------------
def _fc_head_kernel(x_ref, fcw_t_ref, fcb_ref, o_ref):
    #   out[v, t] = sum_d fc_w[d, v] * x[t, d] + fc_b[v]
    logits = jax.lax.dot_general(
        fcw_t_ref[...], x_ref[0].astype(jnp.bfloat16),
        (((1,), (1,)), ((), ())), preferred_element_type=jnp.float32)   # (tv, T)
    o_ref[0] = logits + fcb_ref[...]


# ----------------------------------------------------------------------------
# Host/XLA-side algebraic folding of the module weights for the kernels
# ----------------------------------------------------------------------------
def _prepare_kernel_params(p, *, nhead, seq_len):
    H = nhead
    D = p['wq'].shape[1]
    Dh = p['wq'].shape[2]
    D2 = D // 2
    T = seq_len
    scale = 1.0 / math.sqrt(Dh)
    bf = lambda a: a.astype(jnp.bfloat16)
    f32 = lambda a: a.astype(jnp.float32)

    def heads_to_full(w):                     # (H, D, Dh) -> (D, H*Dh)
        return jnp.transpose(w, (1, 0, 2)).reshape(D, H * Dh)

    # Fused QKV projection; 1/sqrt(Dh) folded into the query columns.
    wqkv = jnp.concatenate([heads_to_full(p['wq']) * scale,
                            heads_to_full(p['wk']),
                            heads_to_full(p['wv'])], axis=1)            # (D, 3D)
    # Output projection as one (D, D) matmul over concat(head_out).
    wm_full = p['wm'].reshape(H * Dh, D)
    # Global biases with the softmax scale pre-folded.
    u_full = p['u'].reshape(1, H * Dh) * scale
    vb_full = p['vb'].reshape(1, H * Dh) * scale

    # jmat folded into the positional weight: wpos2 = [Wpos^T | Wpos^T @ J].
    eye = jnp.eye(D2, dtype=jnp.float32)
    zero = jnp.zeros((D2, D2), jnp.float32)
    jmat = jnp.block([[zero, -eye], [eye, zero]])                       # (D, D)
    wptj = jnp.einsum('hed,df->hef', p['wpos_t'], jmat)
    wpos2 = jnp.concatenate([p['wpos_t'], wptj], axis=-1)               # (H, Dh, 2D)

    # O(T*D) relative-position tables (angle-addition factorization).
    pe = _sincos(jnp.arange(T, dtype=jnp.float32), D)                   # (T, D)
    sin_part, cos_part = pe[:, :D2], pe[:, D2:]
    cos_tab = jnp.concatenate([cos_part, cos_part], axis=-1)
    sin_tab = jnp.concatenate([sin_part, sin_part], axis=-1)

    return dict(
        wqkv=bf(wqkv), wm=bf(wm_full), u=f32(u_full), vb=f32(vb_full),
        wpos2=bf(wpos2), cos=f32(cos_tab), sin=f32(sin_tab), pej=bf(pe),
        ln1g=f32(p['ln1g']), ln1b=f32(p['ln1b']),
        w1=bf(p['w1']), b1=f32(p['b1']), w2=bf(p['w2']), b2=f32(p['b2']),
        ln2g=f32(p['ln2g']), ln2b=f32(p['ln2b']),
        fcw_t=bf(p['fc_w'].T), fcb=f32(p['fc_b'].reshape(-1, 1)),
    )


# ----------------------------------------------------------------------------
# Wrapper
# ----------------------------------------------------------------------------
def _pick_vocab_tile(vocab, cap=1024):
    """Largest tile <= cap dividing vocab and satisfying the (8, 128) rule."""
    if vocab <= cap:
        return vocab
    tv = cap - (cap % 8)
    while tv >= 8:
        if vocab % tv == 0:
            return tv
        tv -= 8
    return vocab


def _const_spec(a, single_buffer):
    """Full-block constant-index weight spec (stays VMEM-resident over the grid)."""
    zeros = (0,) * a.ndim
    kwargs = {}
    if single_buffer:
        # Constant blocks never change across the grid -> the default second
        # (double) buffer is pure VMEM waste; request single buffering.
        kwargs["pipeline_mode"] = pl.Buffered(1)
    return pl.BlockSpec(a.shape, lambda b: zeros, **kwargs)


def _forward_impl(tokens, params, *, num_layers, nhead, single_buffer_weights):
    # Embedding gather is index plumbing (glue), kept in plain JAX.
    x = jnp.take(params['embedding'], tokens, axis=0)                   # (B, T, D)
    B, T, D = x.shape
    head_dim = D // nhead
    kp = _prepare_kernel_params(params, nhead=nhead, seq_len=T)
    V = kp['fcw_t'].shape[0]

    # ---- fused: num_layers shared-weight UT steps per batch row -------------
    weights = [kp['wqkv'], kp['wm'], kp['u'], kp['vb'], kp['wpos2'],
               kp['cos'], kp['sin'], kp['pej'],
               kp['ln1g'], kp['ln1b'], kp['w1'], kp['b1'], kp['w2'], kp['b2'],
               kp['ln2g'], kp['ln2b']]
    in_specs = ([pl.BlockSpec((1, T, D), lambda b: (b, 0, 0))]
                + [_const_spec(a, single_buffer_weights) for a in weights])
    hidden = pl.pallas_call(
        functools.partial(_ut_layers_kernel, nhead=nhead, head_dim=head_dim,
                          num_layers=num_layers),
        out_shape=jax.ShapeDtypeStruct((B, T, D), jnp.float32),
        grid=(B,),
        in_specs=in_specs,
        out_specs=pl.BlockSpec((1, T, D), lambda b: (b, 0, 0)),
        compiler_params=pltpu.CompilerParams(
            dimension_semantics=("parallel",),          # batch across TCs
            vmem_limit_bytes=48 * 1024 * 1024),         # fits v7x's 64 MiB / TC
    )(x.astype(jnp.bfloat16), *weights)

    # ---- FC head: tiled over vocab, writes (B, V, T) transposed directly ----
    tv = _pick_vocab_tile(V)
    out = pl.pallas_call(
        _fc_head_kernel,
        out_shape=jax.ShapeDtypeStruct((B, V, T), jnp.float32),
        grid=(B, V // tv),
        in_specs=[pl.BlockSpec((1, T, D), lambda b, vi: (b, 0, 0)),
                  pl.BlockSpec((tv, D), lambda b, vi: (vi, 0)),
                  pl.BlockSpec((tv, 1), lambda b, vi: (vi, 0))],
        out_specs=pl.BlockSpec((1, tv, T), lambda b, vi: (b, vi, 0)),
        compiler_params=pltpu.CompilerParams(
            dimension_semantics=("parallel", "parallel"),
            vmem_limit_bytes=48 * 1024 * 1024),
    )(hidden, kp['fcw_t'], kp['fcb'])
    return jax.block_until_ready(out)


def ut_rel_ae_forward(tokens, params, *, num_layers, nhead):
    try:
        return _forward_impl(tokens, params, num_layers=num_layers, nhead=nhead,
                             single_buffer_weights=True)
    except Exception:
        # pl.Buffered(1) not supported by this jax version -> fall back to the
        # default double-buffered weight specs (correctness unaffected).
        return _forward_impl(tokens, params, num_layers=num_layers, nhead=nhead,
                             single_buffer_weights=False)


# ----------------------------------------------------------------------------
# Deterministic module-style parameter construction (synthetic, no checkpoint)
# ----------------------------------------------------------------------------
def init_params(key, *, d_model, nhead, vocab, dim_ff):
    D, H = d_model, nhead
    Dh = D // H
    ks = jax.random.split(key, 14)
    rn = lambda k, shape, s: (s * jax.random.normal(k, shape)).astype(jnp.float32)

    p = {}
    p['embedding'] = rn(ks[0], (vocab, D), 1.0)
    p['wq'] = rn(ks[1], (H, D, Dh), 1.0 / math.sqrt(D))
    p['wk'] = rn(ks[2], (H, D, Dh), 1.0 / math.sqrt(D))
    p['wv'] = rn(ks[3], (H, D, Dh), 1.0 / math.sqrt(D))
    p['wm'] = rn(ks[4], (H, Dh, D), 1.0 / math.sqrt(D))
    p['wpos_t'] = rn(ks[5], (H, Dh, D), 1.0 / math.sqrt(D))   # Wpos_h^T
    p['u'] = rn(ks[6], (H, 1, Dh), 0.02)      # global content bias
    p['vb'] = rn(ks[7], (H, 1, Dh), 0.02)     # global positional bias
    p['ln1g'] = jnp.ones((1, D), jnp.float32)
    p['ln1b'] = jnp.zeros((1, D), jnp.float32)
    p['ln2g'] = jnp.ones((1, D), jnp.float32)
    p['ln2b'] = jnp.zeros((1, D), jnp.float32)
    p['w1'] = rn(ks[8], (D, dim_ff), 1.0 / math.sqrt(D))
    p['b1'] = rn(ks[9], (1, dim_ff), 0.02)
    p['w2'] = rn(ks[10], (dim_ff, D), 1.0 / math.sqrt(dim_ff))
    p['b2'] = rn(ks[11], (1, D), 0.02)
    p['fc_w'] = rn(ks[12], (D, vocab), 1.0 / math.sqrt(D))
    p['fc_b'] = rn(ks[13], (1, vocab), 0.02)
    return p


# ----------------------------------------------------------------------------
# Pure-JAX f32 reference (direct, unfactorized relative attention)
# ----------------------------------------------------------------------------
def reference_forward(tokens, p, *, num_layers, nhead):
    x = p['embedding'][tokens]                       # (B, T, D)
    B, T, D = x.shape
    Dh = p['wq'].shape[-1]
    scale = 1.0 / math.sqrt(Dh)

    # rel key for query i / key j:  rel[i,j,h,:] = PE(j - i) @ Wpos_h
    relpos = (jnp.arange(T)[None, :] - jnp.arange(T)[:, None]).astype(jnp.float32)
    pe_rel = _sincos(relpos.reshape(-1), D).reshape(T, T, D)
    rmat = jnp.einsum('ijd,hed->ijhe', pe_rel, p['wpos_t'])   # (T, T, H, Dh)

    def ln(y, g, b):
        mu = y.mean(-1, keepdims=True)
        var = ((y - mu) ** 2).mean(-1, keepdims=True)
        return (y - mu) / jnp.sqrt(var + 1e-5) * g + b

    for _ in range(num_layers):
        q = jnp.einsum('btd,hde->bhte', x, p['wq'])
        k = jnp.einsum('btd,hde->bhte', x, p['wk'])
        v = jnp.einsum('btd,hde->bhte', x, p['wv'])
        qc = q + p['u'][None]
        qp = q + p['vb'][None]
        content = jnp.einsum('bhte,bhse->bhts', qc, k)
        pos = jnp.einsum('bhte,tshe->bhts', qp, rmat)
        att = jax.nn.softmax((content + pos) * scale, axis=-1)
        o = jnp.einsum('bhts,bhse->bhte', att, v)
        attn = jnp.einsum('bhte,hed->btd', o, p['wm'])
        x = ln(x + attn, p['ln1g'], p['ln1b'])
        ff = jax.nn.relu(x @ p['w1'] + p['b1']) @ p['w2'] + p['b2']
        x = ln(x + ff, p['ln2g'], p['ln2b'])
    logits = x @ p['fc_w'] + p['fc_b']
    return jnp.transpose(logits, (0, 2, 1))          # (B, V, T)


# ----------------------------------------------------------------------------
if __name__ == "__main__":
    B, T = 2, 8                    # batch (even -> both v7x TCs busy), seq len
    D, H, V, L = 32, 4, 16, 2      # model_size, nhead, vocab_size, num_layers
    FF = 4 * D                     # dim_feedforward (shrunk for test scale)

    key = jax.random.PRNGKey(0)
    k_params, k_tok = jax.random.split(key)
    params = init_params(k_params, d_model=D, nhead=H, vocab=V, dim_ff=FF)
    tokens = jax.random.randint(k_tok, (B, T), 0, V, dtype=jnp.int32)

    out = ut_rel_ae_forward(tokens, params, num_layers=L, nhead=H)
    out = jax.block_until_ready(out)
    assert out.shape == (B, V, T), out.shape

    ref = reference_forward(tokens, params, num_layers=L, nhead=H)
    err = float(jnp.max(jnp.abs(out - ref)))
    # bf16 MXU inputs + approx reciprocal -> relaxed tolerance vs f32 reference.
    assert jnp.allclose(out, ref, rtol=5e-2, atol=5e-2), f"max abs err = {err}"

    print("KERNEL_OK")
</pallas_src>

<mosaic_0001>
module attributes {stable_mosaic.version = 11 : i64} {
  func.func @_ut_layers_kernel(%arg0: i32, %arg1: memref<1x8x32xbf16, #tpu.memory_space<vmem>>, %arg2: memref<32x96xbf16, #tpu.memory_space<vmem>>, %arg3: memref<32x32xbf16, #tpu.memory_space<vmem>>, %arg4: memref<1x32xf32, #tpu.memory_space<vmem>>, %arg5: memref<1x32xf32, #tpu.memory_space<vmem>>, %arg6: memref<4x8x64xbf16, #tpu.memory_space<vmem>>, %arg7: memref<8x32xf32, #tpu.memory_space<vmem>>, %arg8: memref<8x32xf32, #tpu.memory_space<vmem>>, %arg9: memref<8x32xbf16, #tpu.memory_space<vmem>>, %arg10: memref<1x32xf32, #tpu.memory_space<vmem>>, %arg11: memref<1x32xf32, #tpu.memory_space<vmem>>, %arg12: memref<32x128xbf16, #tpu.memory_space<vmem>>, %arg13: memref<1x128xf32, #tpu.memory_space<vmem>>, %arg14: memref<128x32xbf16, #tpu.memory_space<vmem>>, %arg15: memref<1x32xf32, #tpu.memory_space<vmem>>, %arg16: memref<1x32xf32, #tpu.memory_space<vmem>>, %arg17: memref<1x32xf32, #tpu.memory_space<vmem>>, %arg18: memref<1x8x32xf32, #tpu.memory_space<vmem>>) attributes {dimension_semantics = [#tpu.dimension_semantics<parallel>], iteration_bounds = array<i64: 2>, scalar_prefetch = 0 : i64, scratch_operands = 0 : i64, tpu.core_type = #tpu.core_type<tc>, window_params = [{transform_indices = @transform_0, window_bounds = array<i64: 1, 8, 32>}, {pipeline_mode = #tpu.pipeline_mode<synchronous>, transform_indices = @transform_1, window_bounds = array<i64: 32, 96>}, {pipeline_mode = #tpu.pipeline_mode<synchronous>, transform_indices = @transform_2, window_bounds = array<i64: 32, 32>}, {pipeline_mode = #tpu.pipeline_mode<synchronous>, transform_indices = @transform_3, window_bounds = array<i64: 1, 32>}, {pipeline_mode = #tpu.pipeline_mode<synchronous>, transform_indices = @transform_4, window_bounds = array<i64: 1, 32>}, {pipeline_mode = #tpu.pipeline_mode<synchronous>, transform_indices = @transform_5, window_bounds = array<i64: 4, 8, 64>}, {pipeline_mode = #tpu.pipeline_mode<synchronous>, transform_indices = @transform_6, window_bounds = array<i64: 8, 32>}, {pipeline_mode = #tpu.pipeline_mode<synchronous>, transform_indices = @transform_7, window_bounds = array<i64: 8, 32>}, {pipeline_mode = #tpu.pipeline_mode<synchronous>, transform_indices = @transform_8, window_bounds = array<i64: 8, 32>}, {pipeline_mode = #tpu.pipeline_mode<synchronous>, transform_indices = @transform_9, window_bounds = array<i64: 1, 32>}, {pipeline_mode = #tpu.pipeline_mode<synchronous>, transform_indices = @transform_10, window_bounds = array<i64: 1, 32>}, {pipeline_mode = #tpu.pipeline_mode<synchronous>, transform_indices = @transform_11, window_bounds = array<i64: 32, 128>}, {pipeline_mode = #tpu.pipeline_mode<synchronous>, transform_indices = @transform_12, window_bounds = array<i64: 1, 128>}, {pipeline_mode = #tpu.pipeline_mode<synchronous>, transform_indices = @transform_13, window_bounds = array<i64: 128, 32>}, {pipeline_mode = #tpu.pipeline_mode<synchronous>, transform_indices = @transform_14, window_bounds = array<i64: 1, 32>}, {pipeline_mode = #tpu.pipeline_mode<synchronous>, transform_indices = @transform_15, window_bounds = array<i64: 1, 32>}, {pipeline_mode = #tpu.pipeline_mode<synchronous>, transform_indices = @transform_16, window_bounds = array<i64: 1, 32>}, {transform_indices = @transform_17, window_bounds = array<i64: 1, 8, 32>}]} {
    %c0 = arith.constant 0 : index
    %c0_0 = arith.constant 0 : index
    %c0_1 = arith.constant 0 : index
    %0 = vector.load %arg1[%c0, %c0_0, %c0_1] : memref<1x8x32xbf16, #tpu.memory_space<vmem>>, vector<1x8x32xbf16>
    %1 = vector.shape_cast %0 : vector<1x8x32xbf16> to vector<8x32xbf16>
    %2 = arith.extf %1 : vector<8x32xbf16> to vector<8x32xf32>
    %c0_i32 = arith.constant 0 : i32
    %c2_i32 = arith.constant 2 : i32
    %3 = arith.addi %c0_i32, %c2_i32 : i32
    %c1_i32 = arith.constant 1 : i32
    %4 = scf.for %arg19 = %c0_i32 to %3 step %c1_i32 iter_args(%arg20 = %2) -> (vector<8x32xf32>)  : i32 {
      %8 = arith.truncf %arg20 : vector<8x32xf32> to vector<8x32xbf16>
      %c0_5 = arith.constant 0 : index
      %c0_6 = arith.constant 0 : index
      %9 = vector.load %arg2[%c0_5, %c0_6] : memref<32x96xbf16, #tpu.memory_space<vmem>>, vector<32x96xbf16>
      %cst = arith.constant dense<0.000000e+00> : vector<8x96xf32>
      %10 = tpu.matmul %8, %9, %cst {dimension_numbers = #tpu.dot_dimension_numbers<[1], [0], [0], [1], [0, 0, 1, 1], [], []>} : vector<8x32xbf16>, vector<32x96xbf16>, vector<8x96xf32> -> vector<8x96xf32>
      %11 = vector.extract_strided_slice %10 {offsets = [0, 0], sizes = [8, 32], strides = [1, 1]} : vector<8x96xf32> to vector<8x32xf32>
      %12 = vector.extract_strided_slice %10 {offsets = [0, 32], sizes = [8, 32], strides = [1, 1]} : vector<8x96xf32> to vector<8x32xf32>
      %13 = arith.truncf %12 : vector<8x32xf32> to vector<8x32xbf16>
      %14 = vector.extract_strided_slice %10 {offsets = [0, 64], sizes = [8, 32], strides = [1, 1]} : vector<8x96xf32> to vector<8x32xf32>
      %15 = arith.truncf %14 : vector<8x32xf32> to vector<8x32xbf16>
      %c0_7 = arith.constant 0 : index
      %c0_8 = arith.constant 0 : index
      %16 = vector.load %arg4[%c0_7, %c0_8] : memref<1x32xf32, #tpu.memory_space<vmem>>, vector<1x32xf32>
      %17 = vector.broadcast %16 : vector<1x32xf32> to vector<8x32xf32>
      %18 = arith.addf %11, %17 : vector<8x32xf32>
      %19 = arith.truncf %18 : vector<8x32xf32> to vector<8x32xbf16>
      %c0_9 = arith.constant 0 : index
      %c0_10 = arith.constant 0 : index
      %20 = vector.load %arg5[%c0_9, %c0_10] : memref<1x32xf32, #tpu.memory_space<vmem>>, vector<1x32xf32>
      %21 = vector.broadcast %20 : vector<1x32xf32> to vector<8x32xf32>
      %22 = arith.addf %11, %21 : vector<8x32xf32>
      %23 = arith.truncf %22 : vector<8x32xf32> to vector<8x32xbf16>
      %24 = vector.extract_strided_slice %19 {offsets = [0, 0], sizes = [8, 8], strides = [1, 1]} : vector<8x32xbf16> to vector<8x8xbf16>
      %25 = vector.extract_strided_slice %13 {offsets = [0, 0], sizes = [8, 8], strides = [1, 1]} : vector<8x32xbf16> to vector<8x8xbf16>
      %cst_11 = arith.constant dense<0.000000e+00> : vector<8x8xf32>
      %26 = tpu.matmul %24, %25, %cst_11 {dimension_numbers = #tpu.dot_dimension_numbers<[1], [1], [0], [0], [0, 0, 1, 0], [], []>} : vector<8x8xbf16>, vector<8x8xbf16>, vector<8x8xf32> -> vector<8x8xf32>
      %27 = vector.extract_strided_slice %23 {offsets = [0, 0], sizes = [8, 8], strides = [1, 1]} : vector<8x32xbf16> to vector<8x8xbf16>
      %c0_12 = arith.constant 0 : index
      %c0_13 = arith.constant 0 : index
      %c0_14 = arith.constant 0 : index
      %28 = vector.load %arg6[%c0_12, %c0_13, %c0_14] : memref<4x8x64xbf16, #tpu.memory_space<vmem>>, vector<1x8x64xbf16>
      %29 = vector.shape_cast %28 : vector<1x8x64xbf16> to vector<8x64xbf16>
      %cst_15 = arith.constant dense<0.000000e+00> : vector<8x64xf32>
      %30 = tpu.matmul %27, %29, %cst_15 {dimension_numbers = #tpu.dot_dimension_numbers<[1], [0], [0], [1], [0, 0, 1, 1], [], []>} : vector<8x8xbf16>, vector<8x64xbf16>, vector<8x64xf32> -> vector<8x64xf32>
      %31 = vector.extract_strided_slice %30 {offsets = [0, 0], sizes = [8, 32], strides = [1, 1]} : vector<8x64xf32> to vector<8x32xf32>
      %c0_16 = arith.constant 0 : index
      %c0_17 = arith.constant 0 : index
      %32 = vector.load %arg7[%c0_16, %c0_17] : memref<8x32xf32, #tpu.memory_space<vmem>>, vector<8x32xf32>
      %33 = arith.mulf %31, %32 : vector<8x32xf32>
      %34 = vector.extract_strided_slice %30 {offsets = [0, 32], sizes = [8, 32], strides = [1, 1]} : vector<8x64xf32> to vector<8x32xf32>
      %c0_18 = arith.constant 0 : index
      %c0_19 = arith.constant 0 : index
      %35 = vector.load %arg8[%c0_18, %c0_19] : memref<8x32xf32, #tpu.memory_space<vmem>>, vector<8x32xf32>
      %36 = arith.mulf %34, %35 : vector<8x32xf32>
      %37 = arith.addf %33, %36 : vector<8x32xf32>
      %38 = arith.truncf %37 : vector<8x32xf32> to vector<8x32xbf16>
      %c0_20 = arith.constant 0 : index
      %c0_21 = arith.constant 0 : index
      %39 = vector.load %arg9[%c0_20, %c0_21] : memref<8x32xbf16, #tpu.memory_space<vmem>>, vector<8x32xbf16>
      %cst_22 = arith.constant dense<0.000000e+00> : vector<8x8xf32>
      %40 = tpu.matmul %38, %39, %cst_22 {dimension_numbers = #tpu.dot_dimension_numbers<[1], [1], [0], [0], [0, 0, 1, 0], [], []>} : vector<8x32xbf16>, vector<8x32xbf16>, vector<8x8xf32> -> vector<8x8xf32>
      %41 = arith.addf %26, %40 : vector<8x8xf32>
      %cst_23 = arith.constant dense<0xFF800000> : vector<8xf32>
      %42 = vector.multi_reduction <maximumf>, %41, %cst_23 [1] : vector<8x8xf32> to vector<8xf32>
      %43 = vector.shape_cast %42 : vector<8xf32> to vector<8x1xf32>
      %44 = vector.broadcast %43 : vector<8x1xf32> to vector<8x8xf32>
      %45 = arith.subf %41, %44 : vector<8x8xf32>
      %46 = math.exp %45 : vector<8x8xf32>
      %cst_24 = arith.constant dense<0.000000e+00> : vector<8xf32>
      %47 = vector.multi_reduction <add>, %46, %cst_24 [1] : vector<8x8xf32> to vector<8xf32>
      %48 = vector.shape_cast %47 : vector<8xf32> to vector<8x1xf32>
      %49 = tpu.reciprocal %48 {approx = true} : vector<8x1xf32> -> vector<8x1xf32>
      %50 = vector.broadcast %49 : vector<8x1xf32> to vector<8x8xf32>
      %51 = arith.mulf %46, %50 : vector<8x8xf32>
      %52 = arith.truncf %51 : vector<8x8xf32> to vector<8x8xbf16>
      %53 = vector.extract_strided_slice %15 {offsets = [0, 0], sizes = [8, 8], strides = [1, 1]} : vector<8x32xbf16> to vector<8x8xbf16>
      %cst_25 = arith.constant dense<0.000000e+00> : vector<8x8xf32>
      %54 = tpu.matmul %52, %53, %cst_25 {dimension_numbers = #tpu.dot_dimension_numbers<[1], [0], [0], [1], [0, 0, 1, 1], [], []>} : vector<8x8xbf16>, vector<8x8xbf16>, vector<8x8xf32> -> vector<8x8xf32>
      %55 = vector.extract_strided_slice %19 {offsets = [0, 8], sizes = [8, 8], strides = [1, 1]} : vector<8x32xbf16> to vector<8x8xbf16>
      %56 = vector.extract_strided_slice %13 {offsets = [0, 8], sizes = [8, 8], strides = [1, 1]} : vector<8x32xbf16> to vector<8x8xbf16>
      %cst_26 = arith.constant dense<0.000000e+00> : vector<8x8xf32>
      %57 = tpu.matmul %55, %56, %cst_26 {dimension_numbers = #tpu.dot_dimension_numbers<[1], [1], [0], [0], [0, 0, 1, 0], [], []>} : vector<8x8xbf16>, vector<8x8xbf16>, vector<8x8xf32> -> vector<8x8xf32>
      %58 = vector.extract_strided_slice %23 {offsets = [0, 8], sizes = [8, 8], strides = [1, 1]} : vector<8x32xbf16> to vector<8x8xbf16>
      %c1 = arith.constant 1 : index
      %c0_27 = arith.constant 0 : index
      %c0_28 = arith.constant 0 : index
      %59 = vector.load %arg6[%c1, %c0_27, %c0_28] : memref<4x8x64xbf16, #tpu.memory_space<vmem>>, vector<1x8x64xbf16>
      %60 = vector.shape_cast %59 : vector<1x8x64xbf16> to vector<8x64xbf16>
      %cst_29 = arith.constant dense<0.000000e+00> : vector<8x64xf32>
      %61 = tpu.matmul %58, %60, %cst_29 {dimension_numbers = #tpu.dot_dimension_numbers<[1], [0], [0], [1], [0, 0, 1, 1], [], []>} : vector<8x8xbf16>, vector<8x64xbf16>, vector<8x64xf32> -> vector<8x64xf32>
      %62 = vector.extract_strided_slice %61 {offsets = [0, 0], sizes = [8, 32], strides = [1, 1]} : vector<8x64xf32> to vector<8x32xf32>
      %c0_30 = arith.constant 0 : index
      %c0_31 = arith.constant 0 : index
      %63 = vector.load %arg7[%c0_30, %c0_31] : memref<8x32xf32, #tpu.memory_space<vmem>>, vector<8x32xf32>
      %64 = arith.mulf %62, %63 : vector<8x32xf32>
      %65 = vector.extract_strided_slice %61 {offsets = [0, 32], sizes = [8, 32], strides = [1, 1]} : vector<8x64xf32> to vector<8x32xf32>
      %c0_32 = arith.constant 0 : index
      %c0_33 = arith.constant 0 : index
      %66 = vector.load %arg8[%c0_32, %c0_33] : memref<8x32xf32, #tpu.memory_space<vmem>>, vector<8x32xf32>
      %67 = arith.mulf %65, %66 : vector<8x32xf32>
      %68 = arith.addf %64, %67 : vector<8x32xf32>
      %69 = arith.truncf %68 : vector<8x32xf32> to vector<8x32xbf16>
      %c0_34 = arith.constant 0 : index
      %c0_35 = arith.constant 0 : index
      %70 = vector.load %arg9[%c0_34, %c0_35] : memref<8x32xbf16, #tpu.memory_space<vmem>>, vector<8x32xbf16>
      %cst_36 = arith.constant dense<0.000000e+00> : vector<8x8xf32>
      %71 = tpu.matmul %69, %70, %cst_36 {dimension_numbers = #tpu.dot_dimension_numbers<[1], [1], [0], [0], [0, 0, 1, 0], [], []>} : vector<8x32xbf16>, vector<8x32xbf16>, vector<8x8xf32> -> vector<8x8xf32>
      %72 = arith.addf %57, %71 : vector<8x8xf32>
      %cst_37 = arith.constant dense<0xFF800000> : vector<8xf32>
      %73 = vector.multi_reduction <maximumf>, %72, %cst_37 [1] : vector<8x8xf32> to vector<8xf32>
      %74 = vector.shape_cast %73 : vector<8xf32> to vector<8x1xf32>
      %75 = vector.broadcast %74 : vector<8x1xf32> to vector<8x8xf32>
      %76 = arith.subf %72, %75 : vector<8x8xf32>
      %77 = math.exp %76 : vector<8x8xf32>
      %cst_38 = arith.constant dense<0.000000e+00> : vector<8xf32>
      %78 = vector.multi_reduction <add>, %77, %cst_38 [1] : vector<8x8xf32> to vector<8xf32>
      %79 = vector.shape_cast %78 : vector<8xf32> to vector<8x1xf32>
      %80 = tpu.reciprocal %79 {approx = true} : vector<8x1xf32> -> vector<8x1xf32>
      %81 = vector.broadcast %80 : vector<8x1xf32> to vector<8x8xf32>
      %82 = arith.mulf %77, %81 : vector<8x8xf32>
      %83 = arith.truncf %82 : vector<8x8xf32> to vector<8x8xbf16>
      %84 = vector.extract_strided_slice %15 {offsets = [0, 8], sizes = [8, 8], strides = [1, 1]} : vector<8x32xbf16> to vector<8x8xbf16>
      %cst_39 = arith.constant dense<0.000000e+00> : vector<8x8xf32>
      %85 = tpu.matmul %83, %84, %cst_39 {dimension_numbers = #tpu.dot_dimension_numbers<[1], [0], [0], [1], [0, 0, 1, 1], [], []>} : vector<8x8xbf16>, vector<8x8xbf16>, vector<8x8xf32> -> vector<8x8xf32>
      %86 = vector.extract_strided_slice %19 {offsets = [0, 16], sizes = [8, 8], strides = [1, 1]} : vector<8x32xbf16> to vector<8x8xbf16>
      %87 = vector.extract_strided_slice %13 {offsets = [0, 16], sizes = [8, 8], strides = [1, 1]} : vector<8x32xbf16> to vector<8x8xbf16>
      %cst_40 = arith.constant dense<0.000000e+00> : vector<8x8xf32>
      %88 = tpu.matmul %86, %87, %cst_40 {dimension_numbers = #tpu.dot_dimension_numbers<[1], [1], [0], [0], [0, 0, 1, 0], [], []>} : vector<8x8xbf16>, vector<8x8xbf16>, vector<8x8xf32> -> vector<8x8xf32>
      %89 = vector.extract_strided_slice %23 {offsets = [0, 16], sizes = [8, 8], strides = [1, 1]} : vector<8x32xbf16> to vector<8x8xbf16>
      %c2 = arith.constant 2 : index
      %c0_41 = arith.constant 0 : index
      %c0_42 = arith.constant 0 : index
      %90 = vector.load %arg6[%c2, %c0_41, %c0_42] : memref<4x8x64xbf16, #tpu.memory_space<vmem>>, vector<1x8x64xbf16>
      %91 = vector.shape_cast %90 : vector<1x8x64xbf16> to vector<8x64xbf16>
      %cst_43 = arith.constant dense<0.000000e+00> : vector<8x64xf32>
      %92 = tpu.matmul %89, %91, %cst_43 {dimension_numbers = #tpu.dot_dimension_numbers<[1], [0], [0], [1], [0, 0, 1, 1], [], []>} : vector<8x8xbf16>, vector<8x64xbf16>, vector<8x64xf32> -> vector<8x64xf32>
      %93 = vector.extract_strided_slice %92 {offsets = [0, 0], sizes = [8, 32], strides = [1, 1]} : vector<8x64xf32> to vector<8x32xf32>
      %c0_44 = arith.constant 0 : index
      %c0_45 = arith.constant 0 : index
      %94 = vector.load %arg7[%c0_44, %c0_45] : memref<8x32xf32, #tpu.memory_space<vmem>>, vector<8x32xf32>
      %95 = arith.mulf %93, %94 : vector<8x32xf32>
      %96 = vector.extract_strided_slice %92 {offsets = [0, 32], sizes = [8, 32], strides = [1, 1]} : vector<8x64xf32> to vector<8x32xf32>
      %c0_46 = arith.constant 0 : index
      %c0_47 = arith.constant 0 : index
      %97 = vector.load %arg8[%c0_46, %c0_47] : memref<8x32xf32, #tpu.memory_space<vmem>>, vector<8x32xf32>
      %98 = arith.mulf %96, %97 : vector<8x32xf32>
      %99 = arith.addf %95, %98 : vector<8x32xf32>
      %100 = arith.truncf %99 : vector<8x32xf32> to vector<8x32xbf16>
      %c0_48 = arith.constant 0 : index
      %c0_49 = arith.constant 0 : index
      %101 = vector.load %arg9[%c0_48, %c0_49] : memref<8x32xbf16, #tpu.memory_space<vmem>>, vector<8x32xbf16>
      %cst_50 = arith.constant dense<0.000000e+00> : vector<8x8xf32>
      %102 = tpu.matmul %100, %101, %cst_50 {dimension_numbers = #tpu.dot_dimension_numbers<[1], [1], [0], [0], [0, 0, 1, 0], [], []>} : vector<8x32xbf16>, vector<8x32xbf16>, vector<8x8xf32> -> vector<8x8xf32>
      %103 = arith.addf %88, %102 : vector<8x8xf32>
      %cst_51 = arith.constant dense<0xFF800000> : vector<8xf32>
      %104 = vector.multi_reduction <maximumf>, %103, %cst_51 [1] : vector<8x8xf32> to vector<8xf32>
      %105 = vector.shape_cast %104 : vector<8xf32> to vector<8x1xf32>
      %106 = vector.broadcast %105 : vector<8x1xf32> to vector<8x8xf32>
      %107 = arith.subf %103, %106 : vector<8x8xf32>
      %108 = math.exp %107 : vector<8x8xf32>
      %cst_52 = arith.constant dense<0.000000e+00> : vector<8xf32>
      %109 = vector.multi_reduction <add>, %108, %cst_52 [1] : vector<8x8xf32> to vector<8xf32>
      %110 = vector.shape_cast %109 : vector<8xf32> to vector<8x1xf32>
      %111 = tpu.reciprocal %110 {approx = true} : vector<8x1xf32> -> vector<8x1xf32>
      %112 = vector.broadcast %111 : vector<8x1xf32> to vector<8x8xf32>
      %113 = arith.mulf %108, %112 : vector<8x8xf32>
      %114 = arith.truncf %113 : vector<8x8xf32> to vector<8x8xbf16>
      %115 = vector.extract_strided_slice %15 {offsets = [0, 16], sizes = [8, 8], strides = [1, 1]} : vector<8x32xbf16> to vector<8x8xbf16>
      %cst_53 = arith.constant dense<0.000000e+00> : vector<8x8xf32>
      %116 = tpu.matmul %114, %115, %cst_53 {dimension_numbers = #tpu.dot_dimension_numbers<[1], [0], [0], [1], [0, 0, 1, 1], [], []>} : vector<8x8xbf16>, vector<8x8xbf16>, vector<8x8xf32> -> vector<8x8xf32>
      %117 = vector.extract_strided_slice %19 {offsets = [0, 24], sizes = [8, 8], strides = [1, 1]} : vector<8x32xbf16> to vector<8x8xbf16>
      %118 = vector.extract_strided_slice %13 {offsets = [0, 24], sizes = [8, 8], strides = [1, 1]} : vector<8x32xbf16> to vector<8x8xbf16>
      %cst_54 = arith.constant dense<0.000000e+00> : vector<8x8xf32>
      %119 = tpu.matmul %117, %118, %cst_54 {dimension_numbers = #tpu.dot_dimension_numbers<[1], [1], [0], [0], [0, 0, 1, 0], [], []>} : vector<8x8xbf16>, vector<8x8xbf16>, vector<8x8xf32> -> vector<8x8xf32>
      %120 = vector.extract_strided_slice %23 {offsets = [0, 24], sizes = [8, 8], strides = [1, 1]} : vector<8x32xbf16> to vector<8x8xbf16>
      %c3 = arith.constant 3 : index
      %c0_55 = arith.constant 0 : index
      %c0_56 = arith.constant 0 : index
      %121 = vector.load %arg6[%c3, %c0_55, %c0_56] : memref<4x8x64xbf16, #tpu.memory_space<vmem>>, vector<1x8x64xbf16>
      %122 = vector.shape_cast %121 : vector<1x8x64xbf16> to vector<8x64xbf16>
      %cst_57 = arith.constant dense<0.000000e+00> : vector<8x64xf32>
      %123 = tpu.matmul %120, %122, %cst_57 {dimension_numbers = #tpu.dot_dimension_numbers<[1], [0], [0], [1], [0, 0, 1, 1], [], []>} : vector<8x8xbf16>, vector<8x64xbf16>, vector<8x64xf32> -> vector<8x64xf32>
      %124 = vector.extract_strided_slice %123 {offsets = [0, 0], sizes = [8, 32], strides = [1, 1]} : vector<8x64xf32> to vector<8x32xf32>
      %c0_58 = arith.constant 0 : index
      %c0_59 = arith.constant 0 : index
      %125 = vector.load %arg7[%c0_58, %c0_59] : memref<8x32xf32, #tpu.memory_space<vmem>>, vector<8x32xf32>
      %126 = arith.mulf %124, %125 : vector<8x32xf32>
      %127 = vector.extract_strided_slice %123 {offsets = [0, 32], sizes = [8, 32], strides = [1, 1]} : vector<8x64xf32> to vector<8x32xf32>
      %c0_60 = arith.constant 0 : index
      %c0_61 = arith.constant 0 : index
      %128 = vector.load %arg8[%c0_60, %c0_61] : memref<8x32xf32, #tpu.memory_space<vmem>>, vector<8x32xf32>
      %129 = arith.mulf %127, %128 : vector<8x32xf32>
      %130 = arith.addf %126, %129 : vector<8x32xf32>
      %131 = arith.truncf %130 : vector<8x32xf32> to vector<8x32xbf16>
      %c0_62 = arith.constant 0 : index
      %c0_63 = arith.constant 0 : index
      %132 = vector.load %arg9[%c0_62, %c0_63] : memref<8x32xbf16, #tpu.memory_space<vmem>>, vector<8x32xbf16>
      %cst_64 = arith.constant dense<0.000000e+00> : vector<8x8xf32>
      %133 = tpu.matmul %131, %132, %cst_64 {dimension_numbers = #tpu.dot_dimension_numbers<[1], [1], [0], [0], [0, 0, 1, 0], [], []>} : vector<8x32xbf16>, vector<8x32xbf16>, vector<8x8xf32> -> vector<8x8xf32>
      %134 = arith.addf %119, %133 : vector<8x8xf32>
      %cst_65 = arith.constant dense<0xFF800000> : vector<8xf32>
      %135 = vector.multi_reduction <maximumf>, %134, %cst_65 [1] : vector<8x8xf32> to vector<8xf32>
      %136 = vector.shape_cast %135 : vector<8xf32> to vector<8x1xf32>
      %137 = vector.broadcast %136 : vector<8x1xf32> to vector<8x8xf32>
      %138 = arith.subf %134, %137 : vector<8x8xf32>
      %139 = math.exp %138 : vector<8x8xf32>
      %cst_66 = arith.constant dense<0.000000e+00> : vector<8xf32>
      %140 = vector.multi_reduction <add>, %139, %cst_66 [1] : vector<8x8xf32> to vector<8xf32>
      %141 = vector.shape_cast %140 : vector<8xf32> to vector<8x1xf32>
      %142 = tpu.reciprocal %141 {approx = true} : vector<8x1xf32> -> vector<8x1xf32>
      %143 = vector.broadcast %142 : vector<8x1xf32> to vector<8x8xf32>
      %144 = arith.mulf %139, %143 : vector<8x8xf32>
      %145 = arith.truncf %144 : vector<8x8xf32> to vector<8x8xbf16>
      %146 = vector.extract_strided_slice %15 {offsets = [0, 24], sizes = [8, 8], strides = [1, 1]} : vector<8x32xbf16> to vector<8x8xbf16>
      %cst_67 = arith.constant dense<0.000000e+00> : vector<8x8xf32>
      %147 = tpu.matmul %145, %146, %cst_67 {dimension_numbers = #tpu.dot_dimension_numbers<[1], [0], [0], [1], [0, 0, 1, 1], [], []>} : vector<8x8xbf16>, vector<8x8xbf16>, vector<8x8xf32> -> vector<8x8xf32>
      %148 = tpu.concatenate %54, %85, %116, %147 in 1 : vector<8x8xf32>, vector<8x8xf32>, vector<8x8xf32>, vector<8x8xf32> -> vector<8x32xf32>
      %149 = arith.truncf %148 : vector<8x32xf32> to vector<8x32xbf16>
      %c0_68 = arith.constant 0 : index
      %c0_69 = arith.constant 0 : index
      %150 = vector.load %arg3[%c0_68, %c0_69] : memref<32x32xbf16, #tpu.memory_space<vmem>>, vector<32x32xbf16>
      %cst_70 = arith.constant dense<0.000000e+00> : vector<8x32xf32>
      %151 = tpu.matmul %149, %150, %cst_70 {dimension_numbers = #tpu.dot_dimension_numbers<[1], [0], [0], [1], [0, 0, 1, 1], [], []>} : vector<8x32xbf16>, vector<32x32xbf16>, vector<8x32xf32> -> vector<8x32xf32>
      %152 = arith.addf %arg20, %151 : vector<8x32xf32>
      %c0_71 = arith.constant 0 : index
      %c0_72 = arith.constant 0 : index
      %153 = vector.load %arg10[%c0_71, %c0_72] : memref<1x32xf32, #tpu.memory_space<vmem>>, vector<1x32xf32>
      %c0_73 = arith.constant 0 : index
      %c0_74 = arith.constant 0 : index
      %154 = vector.load %arg11[%c0_73, %c0_74] : memref<1x32xf32, #tpu.memory_space<vmem>>, vector<1x32xf32>
      %cst_75 = arith.constant dense<0.000000e+00> : vector<8xf32>
      %155 = vector.multi_reduction <add>, %152, %cst_75 [1] : vector<8x32xf32> to vector<8xf32>
      %156 = vector.shape_cast %155 : vector<8xf32> to vector<8x1xf32>
      %cst_76 = arith.constant 3.200000e+01 : f32
      %157 = vector.broadcast %cst_76 : f32 to vector<8x1xf32>
      %158 = arith.divf %156, %157 : vector<8x1xf32>
      %159 = vector.broadcast %158 : vector<8x1xf32> to vector<8x32xf32>
      %160 = arith.subf %152, %159 : vector<8x32xf32>
      %161 = arith.mulf %160, %160 : vector<8x32xf32>
      %cst_77 = arith.constant dense<0.000000e+00> : vector<8xf32>
      %162 = vector.multi_reduction <add>, %161, %cst_77 [1] : vector<8x32xf32> to vector<8xf32>
      %163 = vector.shape_cast %162 : vector<8xf32> to vector<8x1xf32>
      %cst_78 = arith.constant 3.200000e+01 : f32
      %164 = vector.broadcast %cst_78 : f32 to vector<8x1xf32>
      %165 = arith.divf %163, %164 : vector<8x1xf32>
      %166 = vector.broadcast %158 : vector<8x1xf32> to vector<8x32xf32>
      %167 = arith.subf %152, %166 : vector<8x32xf32>
      %cst_79 = arith.constant 9.99999974E-6 : f32
      %168 = vector.broadcast %cst_79 : f32 to vector<8x1xf32>
      %169 = arith.addf %165, %168 : vector<8x1xf32>
      %170 = math.rsqrt %169 : vector<8x1xf32>
      %171 = vector.broadcast %170 : vector<8x1xf32> to vector<8x32xf32>
      %172 = arith.mulf %167, %171 : vector<8x32xf32>
      %173 = vector.broadcast %153 : vector<1x32xf32> to vector<8x32xf32>
      %174 = arith.mulf %172, %173 : vector<8x32xf32>
      %175 = vector.broadcast %154 : vector<1x32xf32> to vector<8x32xf32>
      %176 = arith.addf %174, %175 : vector<8x32xf32>
      %177 = arith.truncf %176 : vector<8x32xf32> to vector<8x32xbf16>
      %c0_80 = arith.constant 0 : index
      %c0_81 = arith.constant 0 : index
      %178 = vector.load %arg12[%c0_80, %c0_81] : memref<32x128xbf16, #tpu.memory_space<vmem>>, vector<32x128xbf16>
      %cst_82 = arith.constant dense<0.000000e+00> : vector<8x128xf32>
      %179 = tpu.matmul %177, %178, %cst_82 {dimension_numbers = #tpu.dot_dimension_numbers<[1], [0], [0], [1], [0, 0, 1, 1], [], []>} : vector<8x32xbf16>, vector<32x128xbf16>, vector<8x128xf32> -> vector<8x128xf32>
      %c0_83 = arith.constant 0 : index
      %c0_84 = arith.constant 0 : index
      %180 = vector.load %arg13[%c0_83, %c0_84] : memref<1x128xf32, #tpu.memory_space<vmem>>, vector<1x128xf32>
      %181 = vector.broadcast %180 : vector<1x128xf32> to vector<8x128xf32>
      %182 = arith.addf %179, %181 : vector<8x128xf32>
      %cst_85 = arith.constant 0.000000e+00 : f32
      %183 = vector.broadcast %cst_85 : f32 to vector<8x128xf32>
      %184 = arith.maximumf %182, %183 : vector<8x128xf32>
      %185 = arith.truncf %184 : vector<8x128xf32> to vector<8x128xbf16>
      %c0_86 = arith.constant 0 : index
      %c0_87 = arith.constant 0 : index
      %186 = vector.load %arg14[%c0_86, %c0_87] : memref<128x32xbf16, #tpu.memory_space<vmem>>, vector<128x32xbf16>
      %cst_88 = arith.constant dense<0.000000e+00> : vector<8x32xf32>
      %187 = tpu.matmul %185, %186, %cst_88 {dimension_numbers = #tpu.dot_dimension_numbers<[1], [0], [0], [1], [0, 0, 1, 1], [], []>} : vector<8x128xbf16>, vector<128x32xbf16>, vector<8x32xf32> -> vector<8x32xf32>
      %c0_89 = arith.constant 0 : index
      %c0_90 = arith.constant 0 : index
      %188 = vector.load %arg15[%c0_89, %c0_90] : memref<1x32xf32, #tpu.memory_space<vmem>>, vector<1x32xf32>
      %189 = vector.broadcast %188 : vector<1x32xf32> to vector<8x32xf32>
      %190 = arith.addf %187, %189 : vector<8x32xf32>
      %191 = arith.addf %176, %190 : vector<8x32xf32>
      %c0_91 = arith.constant 0 : index
      %c0_92 = arith.constant 0 : index
      %192 = vector.load %arg16[%c0_91, %c0_92] : memref<1x32xf32, #tpu.memory_space<vmem>>, vector<1x32xf32>
      %c0_93 = arith.constant 0 : index
      %c0_94 = arith.constant 0 : index
      %193 = vector.load %arg17[%c0_93, %c0_94] : memref<1x32xf32, #tpu.memory_space<vmem>>, vector<1x32xf32>
      %cst_95 = arith.constant dense<0.000000e+00> : vector<8xf32>
      %194 = vector.multi_reduction <add>, %191, %cst_95 [1] : vector<8x32xf32> to vector<8xf32>
      %195 = vector.shape_cast %194 : vector<8xf32> to vector<8x1xf32>
      %cst_96 = arith.constant 3.200000e+01 : f32
      %196 = vector.broadcast %cst_96 : f32 to vector<8x1xf32>
      %197 = arith.divf %195, %196 : vector<8x1xf32>
      %198 = vector.broadcast %197 : vector<8x1xf32> to vector<8x32xf32>
      %199 = arith.subf %191, %198 : vector<8x32xf32>
      %200 = arith.mulf %199, %199 : vector<8x32xf32>
      %cst_97 = arith.constant dense<0.000000e+00> : vector<8xf32>
      %201 = vector.multi_reduction <add>, %200, %cst_97 [1] : vector<8x32xf32> to vector<8xf32>
      %202 = vector.shape_cast %201 : vector<8xf32> to vector<8x1xf32>
      %cst_98 = arith.constant 3.200000e+01 : f32
      %203 = vector.broadcast %cst_98 : f32 to vector<8x1xf32>
      %204 = arith.divf %202, %203 : vector<8x1xf32>
      %205 = vector.broadcast %197 : vector<8x1xf32> to vector<8x32xf32>
      %206 = arith.subf %191, %205 : vector<8x32xf32>
      %cst_99 = arith.constant 9.99999974E-6 : f32
      %207 = vector.broadcast %cst_99 : f32 to vector<8x1xf32>
      %208 = arith.addf %204, %207 : vector<8x1xf32>
      %209 = math.rsqrt %208 : vector<8x1xf32>
      %210 = vector.broadcast %209 : vector<8x1xf32> to vector<8x32xf32>
      %211 = arith.mulf %206, %210 : vector<8x32xf32>
      %212 = vector.broadcast %192 : vector<1x32xf32> to vector<8x32xf32>
      %213 = arith.mulf %211, %212 : vector<8x32xf32>
      %214 = vector.broadcast %193 : vector<1x32xf32> to vector<8x32xf32>
      %215 = arith.addf %213, %214 : vector<8x32xf32>
      scf.yield %215 : vector<8x32xf32>
    }
    %c0_2 = arith.constant 0 : index
    %c0_3 = arith.constant 0 : index
    %c0_4 = arith.constant 0 : index
    %5 = vector.load %arg18[%c0_2, %c0_3, %c0_4] : memref<1x8x32xf32, #tpu.memory_space<vmem>>, vector<1x8x32xf32>
    %6 = vector.shape_cast %5 : vector<1x8x32xf32> to vector<8x32xf32>
    %7 = vector.shape_cast %4 : vector<8x32xf32> to vector<1x8x32xf32>
    tpu.vector_store %arg18[%c0_2, %c0_3, %c0_4], %7 {strides = array<i32>} : memref<1x8x32xf32, #tpu.memory_space<vmem>>, vector<1x8x32xf32>,
    return
  }
  func.func @transform_0(%arg0: i32) -> (i32, i32, i32) {
    %c0_i32 = arith.constant 0 : i32
    %c0_i32_0 = arith.constant 0 : i32
    %c0_i32_1 = arith.constant 0 : i32
    return %arg0, %c0_i32, %c0_i32_0 : i32, i32, i32
  }
  func.func @transform_1(%arg0: i32) -> (i32, i32) {
    %c0_i32 = arith.constant 0 : i32
    %c0_i32_0 = arith.constant 0 : i32
    %c0_i32_1 = arith.constant 0 : i32
    return %c0_i32, %c0_i32_0 : i32, i32
  }
  func.func @transform_2(%arg0: i32) -> (i32, i32) {
    %c0_i32 = arith.constant 0 : i32
    %c0_i32_0 = arith.constant 0 : i32
    %c0_i32_1 = arith.constant 0 : i32
    return %c0_i32, %c0_i32_0 : i32, i32
  }
  func.func @transform_3(%arg0: i32) -> (i32, i32) {
    %c0_i32 = arith.constant 0 : i32
    %c0_i32_0 = arith.constant 0 : i32
    %c0_i32_1 = arith.constant 0 : i32
    return %c0_i32, %c0_i32_0 : i32, i32
  }
  func.func @transform_4(%arg0: i32) -> (i32, i32) {
    %c0_i32 = arith.constant 0 : i32
    %c0_i32_0 = arith.constant 0 : i32
    %c0_i32_1 = arith.constant 0 : i32
    return %c0_i32, %c0_i32_0 : i32, i32
  }
  func.func @transform_5(%arg0: i32) -> (i32, i32, i32) {
    %c0_i32 = arith.constant 0 : i32
    %c0_i32_0 = arith.constant 0 : i32
    %c0_i32_1 = arith.constant 0 : i32
    %c0_i32_2 = arith.constant 0 : i32
    return %c0_i32, %c0_i32_0, %c0_i32_1 : i32, i32, i32
  }
  func.func @transform_6(%arg0: i32) -> (i32, i32) {
    %c0_i32 = arith.constant 0 : i32
    %c0_i32_0 = arith.constant 0 : i32
    %c0_i32_1 = arith.constant 0 : i32
    return %c0_i32, %c0_i32_0 : i32, i32
  }
  func.func @transform_7(%arg0: i32) -> (i32, i32) {
    %c0_i32 = arith.constant 0 : i32
    %c0_i32_0 = arith.constant 0 : i32
    %c0_i32_1 = arith.constant 0 : i32
    return %c0_i32, %c0_i32_0 : i32, i32
  }
  func.func @transform_8(%arg0: i32) -> (i32, i32) {
    %c0_i32 = arith.constant 0 : i32
    %c0_i32_0 = arith.constant 0 : i32
    %c0_i32_1 = arith.constant 0 : i32
    return %c0_i32, %c0_i32_0 : i32, i32
  }
  func.func @transform_9(%arg0: i32) -> (i32, i32) {
    %c0_i32 = arith.constant 0 : i32
    %c0_i32_0 = arith.constant 0 : i32
    %c0_i32_1 = arith.constant 0 : i32
    return %c0_i32, %c0_i32_0 : i32, i32
  }
  func.func @transform_10(%arg0: i32) -> (i32, i32) {
    %c0_i32 = arith.constant 0 : i32
    %c0_i32_0 = arith.constant 0 : i32
    %c0_i32_1 = arith.constant 0 : i32
    return %c0_i32, %c0_i32_0 : i32, i32
  }
  func.func @transform_11(%arg0: i32) -> (i32, i32) {
    %c0_i32 = arith.constant 0 : i32
    %c0_i32_0 = arith.constant 0 : i32
    %c0_i32_1 = arith.constant 0 : i32
    return %c0_i32, %c0_i32_0 : i32, i32
  }
  func.func @transform_12(%arg0: i32) -> (i32, i32) {
    %c0_i32 = arith.constant 0 : i32
    %c0_i32_0 = arith.constant 0 : i32
    %c0_i32_1 = arith.constant 0 : i32
    return %c0_i32, %c0_i32_0 : i32, i32
  }
  func.func @transform_13(%arg0: i32) -> (i32, i32) {
    %c0_i32 = arith.constant 0 : i32
    %c0_i32_0 = arith.constant 0 : i32
    %c0_i32_1 = arith.constant 0 : i32
    return %c0_i32, %c0_i32_0 : i32, i32
  }
  func.func @transform_14(%arg0: i32) -> (i32, i32) {
    %c0_i32 = arith.constant 0 : i32
    %c0_i32_0 = arith.constant 0 : i32
    %c0_i32_1 = arith.constant 0 : i32
    return %c0_i32, %c0_i32_0 : i32, i32
  }
  func.func @transform_15(%arg0: i32) -> (i32, i32) {
    %c0_i32 = arith.constant 0 : i32
    %c0_i32_0 = arith.constant 0 : i32
    %c0_i32_1 = arith.constant 0 : i32
    return %c0_i32, %c0_i32_0 : i32, i32
  }
  func.func @transform_16(%arg0: i32) -> (i32, i32) {
    %c0_i32 = arith.constant 0 : i32
    %c0_i32_0 = arith.constant 0 : i32
    %c0_i32_1 = arith.constant 0 : i32
    return %c0_i32, %c0_i32_0 : i32, i32
  }
  func.func @transform_17(%arg0: i32) -> (i32, i32, i32) {
    %c0_i32 = arith.constant 0 : i32
    %c0_i32_0 = arith.constant 0 : i32
    %c0_i32_1 = arith.constant 0 : i32
    return %arg0, %c0_i32, %c0_i32_0 : i32, i32, i32
  }
}

module attributes {stable_mosaic.version = 11 : i64} {
  func.func @_ut_layers_kernel(%arg0: i32, %arg1: memref<1x8x32xbf16, #tpu.memory_space<vmem>>, %arg2: memref<32x96xbf16, #tpu.memory_space<vmem>>, %arg3: memref<32x32xbf16, #tpu.memory_space<vmem>>, %arg4: memref<1x32xf32, #tpu.memory_space<vmem>>, %arg5: memref<1x32xf32, #tpu.memory_space<vmem>>, %arg6: memref<4x8x64xbf16, #tpu.memory_space<vmem>>, %arg7: memref<8x32xf32, #tpu.memory_space<vmem>>, %arg8: memref<8x32xf32, #tpu.memory_space<vmem>>, %arg9: memref<8x32xbf16, #tpu.memory_space<vmem>>, %arg10: memref<1x32xf32, #tpu.memory_space<vmem>>, %arg11: memref<1x32xf32, #tpu.memory_space<vmem>>, %arg12: memref<32x128xbf16, #tpu.memory_space<vmem>>, %arg13: memref<1x128xf32, #tpu.memory_space<vmem>>, %arg14: memref<128x32xbf16, #tpu.memory_space<vmem>>, %arg15: memref<1x32xf32, #tpu.memory_space<vmem>>, %arg16: memref<1x32xf32, #tpu.memory_space<vmem>>, %arg17: memref<1x32xf32, #tpu.memory_space<vmem>>, %arg18: memref<1x8x32xf32, #tpu.memory_space<vmem>>) attributes {dimension_semantics = [#tpu.dimension_semantics<parallel>], iteration_bounds = array<i64: 2>, scalar_prefetch = 0 : i64, scratch_operands = 0 : i64, tpu.core_type = #tpu.core_type<tc>, window_params = [{transform_indices = @transform_0, window_bounds = array<i64: 1, 8, 32>}, {pipeline_mode = #tpu.pipeline_mode<synchronous>, transform_indices = @transform_1, window_bounds = array<i64: 32, 96>}, {pipeline_mode = #tpu.pipeline_mode<synchronous>, transform_indices = @transform_2, window_bounds = array<i64: 32, 32>}, {pipeline_mode = #tpu.pipeline_mode<synchronous>, transform_indices = @transform_3, window_bounds = array<i64: 1, 32>}, {pipeline_mode = #tpu.pipeline_mode<synchronous>, transform_indices = @transform_4, window_bounds = array<i64: 1, 32>}, {pipeline_mode = #tpu.pipeline_mode<synchronous>, transform_indices = @transform_5, window_bounds = array<i64: 4, 8, 64>}, {pipeline_mode = #tpu.pipeline_mode<synchronous>, transform_indices = @transform_6, window_bounds = array<i64: 8, 32>}, {pipeline_mode = #tpu.pipeline_mode<synchronous>, transform_indices = @transform_7, window_bounds = array<i64: 8, 32>}, {pipeline_mode = #tpu.pipeline_mode<synchronous>, transform_indices = @transform_8, window_bounds = array<i64: 8, 32>}, {pipeline_mode = #tpu.pipeline_mode<synchronous>, transform_indices = @transform_9, window_bounds = array<i64: 1, 32>}, {pipeline_mode = #tpu.pipeline_mode<synchronous>, transform_indices = @transform_10, window_bounds = array<i64: 1, 32>}, {pipeline_mode = #tpu.pipeline_mode<synchronous>, transform_indices = @transform_11, window_bounds = array<i64: 32, 128>}, {pipeline_mode = #tpu.pipeline_mode<synchronous>, transform_indices = @transform_12, window_bounds = array<i64: 1, 128>}, {pipeline_mode = #tpu.pipeline_mode<synchronous>, transform_indices = @transform_13, window_bounds = array<i64: 128, 32>}, {pipeline_mode = #tpu.pipeline_mode<synchronous>, transform_indices = @transform_14, window_bounds = array<i64: 1, 32>}, {pipeline_mode = #tpu.pipeline_mode<synchronous>, transform_indices = @transform_15, window_bounds = array<i64: 1, 32>}, {pipeline_mode = #tpu.pipeline_mode<synchronous>, transform_indices = @transform_16, window_bounds = array<i64: 1, 32>}, {transform_indices = @transform_17, window_bounds = array<i64: 1, 8, 32>}]} {
    %c0 = arith.constant 0 : index
    %c0_0 = arith.constant 0 : index
    %c0_1 = arith.constant 0 : index
    %0 = vector.load %arg1[%c0, %c0_0, %c0_1] : memref<1x8x32xbf16, #tpu.memory_space<vmem>>, vector<1x8x32xbf16>
    %1 = vector.shape_cast %0 : vector<1x8x32xbf16> to vector<8x32xbf16>
    %2 = arith.extf %1 : vector<8x32xbf16> to vector<8x32xf32>
    %c0_i32 = arith.constant 0 : i32
    %c2_i32 = arith.constant 2 : i32
    %3 = arith.addi %c0_i32, %c2_i32 : i32
    %c1_i32 = arith.constant 1 : i32
    %4 = scf.for %arg19 = %c0_i32 to %3 step %c1_i32 iter_args(%arg20 = %2) -> (vector<8x32xf32>)  : i32 {
      %8 = arith.truncf %arg20 : vector<8x32xf32> to vector<8x32xbf16>
      %c0_5 = arith.constant 0 : index
      %c0_6 = arith.constant 0 : index
      %9 = vector.load %arg2[%c0_5, %c0_6] : memref<32x96xbf16, #tpu.memory_space<vmem>>, vector<32x96xbf16>
      %cst = arith.constant dense<0.000000e+00> : vector<8x96xf32>
      %10 = tpu.matmul %8, %9, %cst {dimension_numbers = #tpu.dot_dimension_numbers<[1], [0], [0], [1], [0, 0, 1, 1], [], []>} : vector<8x32xbf16>, vector<32x96xbf16>, vector<8x96xf32> -> vector<8x96xf32>
      %11 = vector.extract_strided_slice %10 {offsets = [0, 0], sizes = [8, 32], strides = [1, 1]} : vector<8x96xf32> to vector<8x32xf32>
      %12 = vector.extract_strided_slice %10 {offsets = [0, 32], sizes = [8, 32], strides = [1, 1]} : vector<8x96xf32> to vector<8x32xf32>
      %13 = arith.truncf %12 : vector<8x32xf32> to vector<8x32xbf16>
      %14 = vector.extract_strided_slice %10 {offsets = [0, 64], sizes = [8, 32], strides = [1, 1]} : vector<8x96xf32> to vector<8x32xf32>
      %15 = arith.truncf %14 : vector<8x32xf32> to vector<8x32xbf16>
      %c0_7 = arith.constant 0 : index
      %c0_8 = arith.constant 0 : index
      %16 = vector.load %arg4[%c0_7, %c0_8] : memref<1x32xf32, #tpu.memory_space<vmem>>, vector<1x32xf32>
      %17 = vector.broadcast %16 : vector<1x32xf32> to vector<8x32xf32>
      %18 = arith.addf %11, %17 : vector<8x32xf32>
      %19 = arith.truncf %18 : vector<8x32xf32> to vector<8x32xbf16>
      %c0_9 = arith.constant 0 : index
      %c0_10 = arith.constant 0 : index
      %20 = vector.load %arg5[%c0_9, %c0_10] : memref<1x32xf32, #tpu.memory_space<vmem>>, vector<1x32xf32>
      %21 = vector.broadcast %20 : vector<1x32xf32> to vector<8x32xf32>
      %22 = arith.addf %11, %21 : vector<8x32xf32>
      %23 = arith.truncf %22 : vector<8x32xf32> to vector<8x32xbf16>
      %24 = vector.extract_strided_slice %19 {offsets = [0, 0], sizes = [8, 8], strides = [1, 1]} : vector<8x32xbf16> to vector<8x8xbf16>
      %25 = vector.extract_strided_slice %13 {offsets = [0, 0], sizes = [8, 8], strides = [1, 1]} : vector<8x32xbf16> to vector<8x8xbf16>
      %cst_11 = arith.constant dense<0.000000e+00> : vector<8x8xf32>
      %26 = tpu.matmul %24, %25, %cst_11 {dimension_numbers = #tpu.dot_dimension_numbers<[1], [1], [0], [0], [0, 0, 1, 0], [], []>} : vector<8x8xbf16>, vector<8x8xbf16>, vector<8x8xf32> -> vector<8x8xf32>
      %27 = vector.extract_strided_slice %23 {offsets = [0, 0], sizes = [8, 8], strides = [1, 1]} : vector<8x32xbf16> to vector<8x8xbf16>
      %c0_12 = arith.constant 0 : index
      %c0_13 = arith.constant 0 : index
      %c0_14 = arith.constant 0 : index
      %28 = vector.load %arg6[%c0_12, %c0_13, %c0_14] : memref<4x8x64xbf16, #tpu.memory_space<vmem>>, vector<1x8x64xbf16>
      %29 = vector.shape_cast %28 : vector<1x8x64xbf16> to vector<8x64xbf16>
      %cst_15 = arith.constant dense<0.000000e+00> : vector<8x64xf32>
      %30 = tpu.matmul %27, %29, %cst_15 {dimension_numbers = #tpu.dot_dimension_numbers<[1], [0], [0], [1], [0, 0, 1, 1], [], []>} : vector<8x8xbf16>, vector<8x64xbf16>, vector<8x64xf32> -> vector<8x64xf32>
      %31 = vector.extract_strided_slice %30 {offsets = [0, 0], sizes = [8, 32], strides = [1, 1]} : vector<8x64xf32> to vector<8x32xf32>
      %c0_16 = arith.constant 0 : index
      %c0_17 = arith.constant 0 : index
      %32 = vector.load %arg7[%c0_16, %c0_17] : memref<8x32xf32, #tpu.memory_space<vmem>>, vector<8x32xf32>
      %33 = arith.mulf %31, %32 : vector<8x32xf32>
      %34 = vector.extract_strided_slice %30 {offsets = [0, 32], sizes = [8, 32], strides = [1, 1]} : vector<8x64xf32> to vector<8x32xf32>
      %c0_18 = arith.constant 0 : index
      %c0_19 = arith.constant 0 : index
      %35 = vector.load %arg8[%c0_18, %c0_19] : memref<8x32xf32, #tpu.memory_space<vmem>>, vector<8x32xf32>
      %36 = arith.mulf %34, %35 : vector<8x32xf32>
      %37 = arith.addf %33, %36 : vector<8x32xf32>
      %38 = arith.truncf %37 : vector<8x32xf32> to vector<8x32xbf16>
      %c0_20 = arith.constant 0 : index
      %c0_21 = arith.constant 0 : index
      %39 = vector.load %arg9[%c0_20, %c0_21] : memref<8x32xbf16, #tpu.memory_space<vmem>>, vector<8x32xbf16>
      %cst_22 = arith.constant dense<0.000000e+00> : vector<8x8xf32>
      %40 = tpu.matmul %38, %39, %cst_22 {dimension_numbers = #tpu.dot_dimension_numbers<[1], [1], [0], [0], [0, 0, 1, 0], [], []>} : vector<8x32xbf16>, vector<8x32xbf16>, vector<8x8xf32> -> vector<8x8xf32>
      %41 = arith.addf %26, %40 : vector<8x8xf32>
      %cst_23 = arith.constant dense<0xFF800000> : vector<8xf32>
      %42 = vector.multi_reduction <maximumf>, %41, %cst_23 [1] : vector<8x8xf32> to vector<8xf32>
      %43 = vector.shape_cast %42 : vector<8xf32> to vector<8x1xf32>
      %44 = vector.broadcast %43 : vector<8x1xf32> to vector<8x8xf32>
      %45 = arith.subf %41, %44 : vector<8x8xf32>
      %46 = math.exp %45 : vector<8x8xf32>
      %cst_24 = arith.constant dense<0.000000e+00> : vector<8xf32>
      %47 = vector.multi_reduction <add>, %46, %cst_24 [1] : vector<8x8xf32> to vector<8xf32>
      %48 = vector.shape_cast %47 : vector<8xf32> to vector<8x1xf32>
      %49 = tpu.reciprocal %48 {approx = true} : vector<8x1xf32> -> vector<8x1xf32>
      %50 = vector.broadcast %49 : vector<8x1xf32> to vector<8x8xf32>
      %51 = arith.mulf %46, %50 : vector<8x8xf32>
      %52 = arith.truncf %51 : vector<8x8xf32> to vector<8x8xbf16>
      %53 = vector.extract_strided_slice %15 {offsets = [0, 0], sizes = [8, 8], strides = [1, 1]} : vector<8x32xbf16> to vector<8x8xbf16>
      %cst_25 = arith.constant dense<0.000000e+00> : vector<8x8xf32>
      %54 = tpu.matmul %52, %53, %cst_25 {dimension_numbers = #tpu.dot_dimension_numbers<[1], [0], [0], [1], [0, 0, 1, 1], [], []>} : vector<8x8xbf16>, vector<8x8xbf16>, vector<8x8xf32> -> vector<8x8xf32>
      %55 = vector.extract_strided_slice %19 {offsets = [0, 8], sizes = [8, 8], strides = [1, 1]} : vector<8x32xbf16> to vector<8x8xbf16>
      %56 = vector.extract_strided_slice %13 {offsets = [0, 8], sizes = [8, 8], strides = [1, 1]} : vector<8x32xbf16> to vector<8x8xbf16>
      %cst_26 = arith.constant dense<0.000000e+00> : vector<8x8xf32>
      %57 = tpu.matmul %55, %56, %cst_26 {dimension_numbers = #tpu.dot_dimension_numbers<[1], [1], [0], [0], [0, 0, 1, 0], [], []>} : vector<8x8xbf16>, vector<8x8xbf16>, vector<8x8xf32> -> vector<8x8xf32>
      %58 = vector.extract_strided_slice %23 {offsets = [0, 8], sizes = [8, 8], strides = [1, 1]} : vector<8x32xbf16> to vector<8x8xbf16>
      %c1 = arith.constant 1 : index
      %c0_27 = arith.constant 0 : index
      %c0_28 = arith.constant 0 : index
      %59 = vector.load %arg6[%c1, %c0_27, %c0_28] : memref<4x8x64xbf16, #tpu.memory_space<vmem>>, vector<1x8x64xbf16>
      %60 = vector.shape_cast %59 : vector<1x8x64xbf16> to vector<8x64xbf16>
      %cst_29 = arith.constant dense<0.000000e+00> : vector<8x64xf32>
      %61 = tpu.matmul %58, %60, %cst_29 {dimension_numbers = #tpu.dot_dimension_numbers<[1], [0], [0], [1], [0, 0, 1, 1], [], []>} : vector<8x8xbf16>, vector<8x64xbf16>, vector<8x64xf32> -> vector<8x64xf32>
      %62 = vector.extract_strided_slice %61 {offsets = [0, 0], sizes = [8, 32], strides = [1, 1]} : vector<8x64xf32> to vector<8x32xf32>
      %c0_30 = arith.constant 0 : index
      %c0_31 = arith.constant 0 : index
      %63 = vector.load %arg7[%c0_30, %c0_31] : memref<8x32xf32, #tpu.memory_space<vmem>>, vector<8x32xf32>
      %64 = arith.mulf %62, %63 : vector<8x32xf32>
      %65 = vector.extract_strided_slice %61 {offsets = [0, 32], sizes = [8, 32], strides = [1, 1]} : vector<8x64xf32> to vector<8x32xf32>
      %c0_32 = arith.constant 0 : index
      %c0_33 = arith.constant 0 : index
      %66 = vector.load %arg8[%c0_32, %c0_33] : memref<8x32xf32, #tpu.memory_space<vmem>>, vector<8x32xf32>
      %67 = arith.mulf %65, %66 : vector<8x32xf32>
      %68 = arith.addf %64, %67 : vector<8x32xf32>
      %69 = arith.truncf %68 : vector<8x32xf32> to vector<8x32xbf16>
      %c0_34 = arith.constant 0 : index
      %c0_35 = arith.constant 0 : index
      %70 = vector.load %arg9[%c0_34, %c0_35] : memref<8x32xbf16, #tpu.memory_space<vmem>>, vector<8x32xbf16>
      %cst_36 = arith.constant dense<0.000000e+00> : vector<8x8xf32>
      %71 = tpu.matmul %69, %70, %cst_36 {dimension_numbers = #tpu.dot_dimension_numbers<[1], [1], [0], [0], [0, 0, 1, 0], [], []>} : vector<8x32xbf16>, vector<8x32xbf16>, vector<8x8xf32> -> vector<8x8xf32>
      %72 = arith.addf %57, %71 : vector<8x8xf32>
      %cst_37 = arith.constant dense<0xFF800000> : vector<8xf32>
      %73 = vector.multi_reduction <maximumf>, %72, %cst_37 [1] : vector<8x8xf32> to vector<8xf32>
      %74 = vector.shape_cast %73 : vector<8xf32> to vector<8x1xf32>
      %75 = vector.broadcast %74 : vector<8x1xf32> to vector<8x8xf32>
      %76 = arith.subf %72, %75 : vector<8x8xf32>
      %77 = math.exp %76 : vector<8x8xf32>
      %cst_38 = arith.constant dense<0.000000e+00> : vector<8xf32>
      %78 = vector.multi_reduction <add>, %77, %cst_38 [1] : vector<8x8xf32> to vector<8xf32>
      %79 = vector.shape_cast %78 : vector<8xf32> to vector<8x1xf32>
      %80 = tpu.reciprocal %79 {approx = true} : vector<8x1xf32> -> vector<8x1xf32>
      %81 = vector.broadcast %80 : vector<8x1xf32> to vector<8x8xf32>
      %82 = arith.mulf %77, %81 : vector<8x8xf32>
      %83 = arith.truncf %82 : vector<8x8xf32> to vector<8x8xbf16>
      %84 = vector.extract_strided_slice %15 {offsets = [0, 8], sizes = [8, 8], strides = [1, 1]} : vector<8x32xbf16> to vector<8x8xbf16>
      %cst_39 = arith.constant dense<0.000000e+00> : vector<8x8xf32>
      %85 = tpu.matmul %83, %84, %cst_39 {dimension_numbers = #tpu.dot_dimension_numbers<[1], [0], [0], [1], [0, 0, 1, 1], [], []>} : vector<8x8xbf16>, vector<8x8xbf16>, vector<8x8xf32> -> vector<8x8xf32>
      %86 = vector.extract_strided_slice %19 {offsets = [0, 16], sizes = [8, 8], strides = [1, 1]} : vector<8x32xbf16> to vector<8x8xbf16>
      %87 = vector.extract_strided_slice %13 {offsets = [0, 16], sizes = [8, 8], strides = [1, 1]} : vector<8x32xbf16> to vector<8x8xbf16>
      %cst_40 = arith.constant dense<0.000000e+00> : vector<8x8xf32>
      %88 = tpu.matmul %86, %87, %cst_40 {dimension_numbers = #tpu.dot_dimension_numbers<[1], [1], [0], [0], [0, 0, 1, 0], [], []>} : vector<8x8xbf16>, vector<8x8xbf16>, vector<8x8xf32> -> vector<8x8xf32>
      %89 = vector.extract_strided_slice %23 {offsets = [0, 16], sizes = [8, 8], strides = [1, 1]} : vector<8x32xbf16> to vector<8x8xbf16>
      %c2 = arith.constant 2 : index
      %c0_41 = arith.constant 0 : index
      %c0_42 = arith.constant 0 : index
      %90 = vector.load %arg6[%c2, %c0_41, %c0_42] : memref<4x8x64xbf16, #tpu.memory_space<vmem>>, vector<1x8x64xbf16>
      %91 = vector.shape_cast %90 : vector<1x8x64xbf16> to vector<8x64xbf16>
      %cst_43 = arith.constant dense<0.000000e+00> : vector<8x64xf32>
      %92 = tpu.matmul %89, %91, %cst_43 {dimension_numbers = #tpu.dot_dimension_numbers<[1], [0], [0], [1], [0, 0, 1, 1], [], []>} : vector<8x8xbf16>, vector<8x64xbf16>, vector<8x64xf32> -> vector<8x64xf32>
      %93 = vector.extract_strided_slice %92 {offsets = [0, 0], sizes = [8, 32], strides = [1, 1]} : vector<8x64xf32> to vector<8x32xf32>
      %c0_44 = arith.constant 0 : index
      %c0_45 = arith.constant 0 : index
      %94 = vector.load %arg7[%c0_44, %c0_45] : memref<8x32xf32, #tpu.memory_space<vmem>>, vector<8x32xf32>
      %95 = arith.mulf %93, %94 : vector<8x32xf32>
      %96 = vector.extract_strided_slice %92 {offsets = [0, 32], sizes = [8, 32], strides = [1, 1]} : vector<8x64xf32> to vector<8x32xf32>
      %c0_46 = arith.constant 0 : index
      %c0_47 = arith.constant 0 : index
      %97 = vector.load %arg8[%c0_46, %c0_47] : memref<8x32xf32, #tpu.memory_space<vmem>>, vector<8x32xf32>
      %98 = arith.mulf %96, %97 : vector<8x32xf32>
      %99 = arith.addf %95, %98 : vector<8x32xf32>
      %100 = arith.truncf %99 : vector<8x32xf32> to vector<8x32xbf16>
      %c0_48 = arith.constant 0 : index
      %c0_49 = arith.constant 0 : index
      %101 = vector.load %arg9[%c0_48, %c0_49] : memref<8x32xbf16, #tpu.memory_space<vmem>>, vector<8x32xbf16>
      %cst_50 = arith.constant dense<0.000000e+00> : vector<8x8xf32>
      %102 = tpu.matmul %100, %101, %cst_50 {dimension_numbers = #tpu.dot_dimension_numbers<[1], [1], [0], [0], [0, 0, 1, 0], [], []>} : vector<8x32xbf16>, vector<8x32xbf16>, vector<8x8xf32> -> vector<8x8xf32>
      %103 = arith.addf %88, %102 : vector<8x8xf32>
      %cst_51 = arith.constant dense<0xFF800000> : vector<8xf32>
      %104 = vector.multi_reduction <maximumf>, %103, %cst_51 [1] : vector<8x8xf32> to vector<8xf32>
      %105 = vector.shape_cast %104 : vector<8xf32> to vector<8x1xf32>
      %106 = vector.broadcast %105 : vector<8x1xf32> to vector<8x8xf32>
      %107 = arith.subf %103, %106 : vector<8x8xf32>
      %108 = math.exp %107 : vector<8x8xf32>
      %cst_52 = arith.constant dense<0.000000e+00> : vector<8xf32>
      %109 = vector.multi_reduction <add>, %108, %cst_52 [1] : vector<8x8xf32> to vector<8xf32>
      %110 = vector.shape_cast %109 : vector<8xf32> to vector<8x1xf32>
      %111 = tpu.reciprocal %110 {approx = true} : vector<8x1xf32> -> vector<8x1xf32>
      %112 = vector.broadcast %111 : vector<8x1xf32> to vector<8x8xf32>
      %113 = arith.mulf %108, %112 : vector<8x8xf32>
      %114 = arith.truncf %113 : vector<8x8xf32> to vector<8x8xbf16>
      %115 = vector.extract_strided_slice %15 {offsets = [0, 16], sizes = [8, 8], strides = [1, 1]} : vector<8x32xbf16> to vector<8x8xbf16>
      %cst_53 = arith.constant dense<0.000000e+00> : vector<8x8xf32>
      %116 = tpu.matmul %114, %115, %cst_53 {dimension_numbers = #tpu.dot_dimension_numbers<[1], [0], [0], [1], [0, 0, 1, 1], [], []>} : vector<8x8xbf16>, vector<8x8xbf16>, vector<8x8xf32> -> vector<8x8xf32>
      %117 = vector.extract_strided_slice %19 {offsets = [0, 24], sizes = [8, 8], strides = [1, 1]} : vector<8x32xbf16> to vector<8x8xbf16>
      %118 = vector.extract_strided_slice %13 {offsets = [0, 24], sizes = [8, 8], strides = [1, 1]} : vector<8x32xbf16> to vector<8x8xbf16>
      %cst_54 = arith.constant dense<0.000000e+00> : vector<8x8xf32>
      %119 = tpu.matmul %117, %118, %cst_54 {dimension_numbers = #tpu.dot_dimension_numbers<[1], [1], [0], [0], [0, 0, 1, 0], [], []>} : vector<8x8xbf16>, vector<8x8xbf16>, vector<8x8xf32> -> vector<8x8xf32>
      %120 = vector.extract_strided_slice %23 {offsets = [0, 24], sizes = [8, 8], strides = [1, 1]} : vector<8x32xbf16> to vector<8x8xbf16>
      %c3 = arith.constant 3 : index
      %c0_55 = arith.constant 0 : index
      %c0_56 = arith.constant 0 : index
      %121 = vector.load %arg6[%c3, %c0_55, %c0_56] : memref<4x8x64xbf16, #tpu.memory_space<vmem>>, vector<1x8x64xbf16>
      %122 = vector.shape_cast %121 : vector<1x8x64xbf16> to vector<8x64xbf16>
      %cst_57 = arith.constant dense<0.000000e+00> : vector<8x64xf32>
      %123 = tpu.matmul %120, %122, %cst_57 {dimension_numbers = #tpu.dot_dimension_numbers<[1], [0], [0], [1], [0, 0, 1, 1], [], []>} : vector<8x8xbf16>, vector<8x64xbf16>, vector<8x64xf32> -> vector<8x64xf32>
      %124 = vector.extract_strided_slice %123 {offsets = [0, 0], sizes = [8, 32], strides = [1, 1]} : vector<8x64xf32> to vector<8x32xf32>
      %c0_58 = arith.constant 0 : index
      %c0_59 = arith.constant 0 : index
      %125 = vector.load %arg7[%c0_58, %c0_59] : memref<8x32xf32, #tpu.memory_space<vmem>>, vector<8x32xf32>
      %126 = arith.mulf %124, %125 : vector<8x32xf32>
      %127 = vector.extract_strided_slice %123 {offsets = [0, 32], sizes = [8, 32], strides = [1, 1]} : vector<8x64xf32> to vector<8x32xf32>
      %c0_60 = arith.constant 0 : index
      %c0_61 = arith.constant 0 : index
      %128 = vector.load %arg8[%c0_60, %c0_61] : memref<8x32xf32, #tpu.memory_space<vmem>>, vector<8x32xf32>
      %129 = arith.mulf %127, %128 : vector<8x32xf32>
      %130 = arith.addf %126, %129 : vector<8x32xf32>
      %131 = arith.truncf %130 : vector<8x32xf32> to vector<8x32xbf16>
      %c0_62 = arith.constant 0 : index
      %c0_63 = arith.constant 0 : index
      %132 = vector.load %arg9[%c0_62, %c0_63] : memref<8x32xbf16, #tpu.memory_space<vmem>>, vector<8x32xbf16>
      %cst_64 = arith.constant dense<0.000000e+00> : vector<8x8xf32>
      %133 = tpu.matmul %131, %132, %cst_64 {dimension_numbers = #tpu.dot_dimension_numbers<[1], [1], [0], [0], [0, 0, 1, 0], [], []>} : vector<8x32xbf16>, vector<8x32xbf16>, vector<8x8xf32> -> vector<8x8xf32>
      %134 = arith.addf %119, %133 : vector<8x8xf32>
      %cst_65 = arith.constant dense<0xFF800000> : vector<8xf32>
      %135 = vector.multi_reduction <maximumf>, %134, %cst_65 [1] : vector<8x8xf32> to vector<8xf32>
      %136 = vector.shape_cast %135 : vector<8xf32> to vector<8x1xf32>
      %137 = vector.broadcast %136 : vector<8x1xf32> to vector<8x8xf32>
      %138 = arith.subf %134, %137 : vector<8x8xf32>
      %139 = math.exp %138 : vector<8x8xf32>
      %cst_66 = arith.constant dense<0.000000e+00> : vector<8xf32>
      %140 = vector.multi_reduction <add>, %139, %cst_66 [1] : vector<8x8xf32> to vector<8xf32>
      %141 = vector.shape_cast %140 : vector<8xf32> to vector<8x1xf32>
      %142 = tpu.reciprocal %141 {approx = true} : vector<8x1xf32> -> vector<8x1xf32>
      %143 = vector.broadcast %142 : vector<8x1xf32> to vector<8x8xf32>
      %144 = arith.mulf %139, %143 : vector<8x8xf32>
      %145 = arith.truncf %144 : vector<8x8xf32> to vector<8x8xbf16>
      %146 = vector.extract_strided_slice %15 {offsets = [0, 24], sizes = [8, 8], strides = [1, 1]} : vector<8x32xbf16> to vector<8x8xbf16>
      %cst_67 = arith.constant dense<0.000000e+00> : vector<8x8xf32>
      %147 = tpu.matmul %145, %146, %cst_67 {dimension_numbers = #tpu.dot_dimension_numbers<[1], [0], [0], [1], [0, 0, 1, 1], [], []>} : vector<8x8xbf16>, vector<8x8xbf16>, vector<8x8xf32> -> vector<8x8xf32>
      %148 = tpu.concatenate %54, %85, %116, %147 in 1 : vector<8x8xf32>, vector<8x8xf32>, vector<8x8xf32>, vector<8x8xf32> -> vector<8x32xf32>
      %149 = arith.truncf %148 : vector<8x32xf32> to vector<8x32xbf16>
      %c0_68 = arith.constant 0 : index
      %c0_69 = arith.constant 0 : index
      %150 = vector.load %arg3[%c0_68, %c0_69] : memref<32x32xbf16, #tpu.memory_space<vmem>>, vector<32x32xbf16>
      %cst_70 = arith.constant dense<0.000000e+00> : vector<8x32xf32>
      %151 = tpu.matmul %149, %150, %cst_70 {dimension_numbers = #tpu.dot_dimension_numbers<[1], [0], [0], [1], [0, 0, 1, 1], [], []>} : vector<8x32xbf16>, vector<32x32xbf16>, vector<8x32xf32> -> vector<8x32xf32>
      %152 = arith.addf %arg20, %151 : vector<8x32xf32>
      %c0_71 = arith.constant 0 : index
      %c0_72 = arith.constant 0 : index
      %153 = vector.load %arg10[%c0_71, %c0_72] : memref<1x32xf32, #tpu.memory_space<vmem>>, vector<1x32xf32>
      %c0_73 = arith.constant 0 : index
      %c0_74 = arith.constant 0 : index
      %154 = vector.load %arg11[%c0_73, %c0_74] : memref<1x32xf32, #tpu.memory_space<vmem>>, vector<1x32xf32>
      %cst_75 = arith.constant dense<0.000000e+00> : vector<8xf32>
      %155 = vector.multi_reduction <add>, %152, %cst_75 [1] : vector<8x32xf32> to vector<8xf32>
      %156 = vector.shape_cast %155 : vector<8xf32> to vector<8x1xf32>
      %cst_76 = arith.constant 3.200000e+01 : f32
      %157 = vector.broadcast %cst_76 : f32 to vector<8x1xf32>
      %158 = arith.divf %156, %157 : vector<8x1xf32>
      %159 = vector.broadcast %158 : vector<8x1xf32> to vector<8x32xf32>
      %160 = arith.subf %152, %159 : vector<8x32xf32>
      %161 = arith.mulf %160, %160 : vector<8x32xf32>
      %cst_77 = arith.constant dense<0.000000e+00> : vector<8xf32>
      %162 = vector.multi_reduction <add>, %161, %cst_77 [1] : vector<8x32xf32> to vector<8xf32>
      %163 = vector.shape_cast %162 : vector<8xf32> to vector<8x1xf32>
      %cst_78 = arith.constant 3.200000e+01 : f32
      %164 = vector.broadcast %cst_78 : f32 to vector<8x1xf32>
      %165 = arith.divf %163, %164 : vector<8x1xf32>
      %166 = vector.broadcast %158 : vector<8x1xf32> to vector<8x32xf32>
      %167 = arith.subf %152, %166 : vector<8x32xf32>
      %cst_79 = arith.constant 9.99999974E-6 : f32
      %168 = vector.broadcast %cst_79 : f32 to vector<8x1xf32>
      %169 = arith.addf %165, %168 : vector<8x1xf32>
      %170 = math.rsqrt %169 : vector<8x1xf32>
      %171 = vector.broadcast %170 : vector<8x1xf32> to vector<8x32xf32>
      %172 = arith.mulf %167, %171 : vector<8x32xf32>
      %173 = vector.broadcast %153 : vector<1x32xf32> to vector<8x32xf32>
      %174 = arith.mulf %172, %173 : vector<8x32xf32>
      %175 = vector.broadcast %154 : vector<1x32xf32> to vector<8x32xf32>
      %176 = arith.addf %174, %175 : vector<8x32xf32>
      %177 = arith.truncf %176 : vector<8x32xf32> to vector<8x32xbf16>
      %c0_80 = arith.constant 0 : index
      %c0_81 = arith.constant 0 : index
      %178 = vector.load %arg12[%c0_80, %c0_81] : memref<32x128xbf16, #tpu.memory_space<vmem>>, vector<32x128xbf16>
      %cst_82 = arith.constant dense<0.000000e+00> : vector<8x128xf32>
      %179 = tpu.matmul %177, %178, %cst_82 {dimension_numbers = #tpu.dot_dimension_numbers<[1], [0], [0], [1], [0, 0, 1, 1], [], []>} : vector<8x32xbf16>, vector<32x128xbf16>, vector<8x128xf32> -> vector<8x128xf32>
      %c0_83 = arith.constant 0 : index
      %c0_84 = arith.constant 0 : index
      %180 = vector.load %arg13[%c0_83, %c0_84] : memref<1x128xf32, #tpu.memory_space<vmem>>, vector<1x128xf32>
      %181 = vector.broadcast %180 : vector<1x128xf32> to vector<8x128xf32>
      %182 = arith.addf %179, %181 : vector<8x128xf32>
      %cst_85 = arith.constant 0.000000e+00 : f32
      %183 = vector.broadcast %cst_85 : f32 to vector<8x128xf32>
      %184 = arith.maximumf %182, %183 : vector<8x128xf32>
      %185 = arith.truncf %184 : vector<8x128xf32> to vector<8x128xbf16>
      %c0_86 = arith.constant 0 : index
      %c0_87 = arith.constant 0 : index
      %186 = vector.load %arg14[%c0_86, %c0_87] : memref<128x32xbf16, #tpu.memory_space<vmem>>, vector<128x32xbf16>
      %cst_88 = arith.constant dense<0.000000e+00> : vector<8x32xf32>
      %187 = tpu.matmul %185, %186, %cst_88 {dimension_numbers = #tpu.dot_dimension_numbers<[1], [0], [0], [1], [0, 0, 1, 1], [], []>} : vector<8x128xbf16>, vector<128x32xbf16>, vector<8x32xf32> -> vector<8x32xf32>
      %c0_89 = arith.constant 0 : index
      %c0_90 = arith.constant 0 : index
      %188 = vector.load %arg15[%c0_89, %c0_90] : memref<1x32xf32, #tpu.memory_space<vmem>>, vector<1x32xf32>
      %189 = vector.broadcast %188 : vector<1x32xf32> to vector<8x32xf32>
      %190 = arith.addf %187, %189 : vector<8x32xf32>
      %191 = arith.addf %176, %190 : vector<8x32xf32>
      %c0_91 = arith.constant 0 : index
      %c0_92 = arith.constant 0 : index
      %192 = vector.load %arg16[%c0_91, %c0_92] : memref<1x32xf32, #tpu.memory_space<vmem>>, vector<1x32xf32>
      %c0_93 = arith.constant 0 : index
      %c0_94 = arith.constant 0 : index
      %193 = vector.load %arg17[%c0_93, %c0_94] : memref<1x32xf32, #tpu.memory_space<vmem>>, vector<1x32xf32>
      %cst_95 = arith.constant dense<0.000000e+00> : vector<8xf32>
      %194 = vector.multi_reduction <add>, %191, %cst_95 [1] : vector<8x32xf32> to vector<8xf32>
      %195 = vector.shape_cast %194 : vector<8xf32> to vector<8x1xf32>
      %cst_96 = arith.constant 3.200000e+01 : f32
      %196 = vector.broadcast %cst_96 : f32 to vector<8x1xf32>
      %197 = arith.divf %195, %196 : vector<8x1xf32>
      %198 = vector.broadcast %197 : vector<8x1xf32> to vector<8x32xf32>
      %199 = arith.subf %191, %198 : vector<8x32xf32>
      %200 = arith.mulf %199, %199 : vector<8x32xf32>
      %cst_97 = arith.constant dense<0.000000e+00> : vector<8xf32>
      %201 = vector.multi_reduction <add>, %200, %cst_97 [1] : vector<8x32xf32> to vector<8xf32>
      %202 = vector.shape_cast %201 : vector<8xf32> to vector<8x1xf32>
      %cst_98 = arith.constant 3.200000e+01 : f32
      %203 = vector.broadcast %cst_98 : f32 to vector<8x1xf32>
      %204 = arith.divf %202, %203 : vector<8x1xf32>
      %205 = vector.broadcast %197 : vector<8x1xf32> to vector<8x32xf32>
      %206 = arith.subf %191, %205 : vector<8x32xf32>
      %cst_99 = arith.constant 9.99999974E-6 : f32
      %207 = vector.broadcast %cst_99 : f32 to vector<8x1xf32>
      %208 = arith.addf %204, %207 : vector<8x1xf32>
      %209 = math.rsqrt %208 : vector<8x1xf32>
      %210 = vector.broadcast %209 : vector<8x1xf32> to vector<8x32xf32>
      %211 = arith.mulf %206, %210 : vector<8x32xf32>
      %212 = vector.broadcast %192 : vector<1x32xf32> to vector<8x32xf32>
      %213 = arith.mulf %211, %212 : vector<8x32xf32>
      %214 = vector.broadcast %193 : vector<1x32xf32> to vector<8x32xf32>
      %215 = arith.addf %213, %214 : vector<8x32xf32>
      scf.yield %215 : vector<8x32xf32>
    }
    %c0_2 = arith.constant 0 : index
    %c0_3 = arith.constant 0 : index
    %c0_4 = arith.constant 0 : index
    %5 = vector.load %arg18[%c0_2, %c0_3, %c0_4] : memref<1x8x32xf32, #tpu.memory_space<vmem>>, vector<1x8x32xf32>
    %6 = vector.shape_cast %5 : vector<1x8x32xf32> to vector<8x32xf32>
    %7 = vector.shape_cast %4 : vector<8x32xf32> to vector<1x8x32xf32>
    tpu.vector_store %arg18[%c0_2, %c0_3, %c0_4], %7 {strides = array<i32>} : memref<1x8x32xf32, #tpu.memory_space<vmem>>, vector<1x8x32xf32>,
    return
  }
  func.func @transform_0(%arg0: i32) -> (i32, i32, i32) {
    %c0_i32 = arith.constant 0 : i32
    %c0_i32_0 = arith.constant 0 : i32
    %c0_i32_1 = arith.constant 0 : i32
    return %arg0, %c0_i32, %c0_i32_0 : i32, i32, i32
  }
  func.func @transform_1(%arg0: i32) -> (i32, i32) {
    %c0_i32 = arith.constant 0 : i32
    %c0_i32_0 = arith.constant 0 : i32
    %c0_i32_1 = arith.constant 0 : i32
    return %c0_i32, %c0_i32_0 : i32, i32
  }
  func.func @transform_2(%arg0: i32) -> (i32, i32) {
    %c0_i32 = arith.constant 0 : i32
    %c0_i32_0 = arith.constant 0 : i32
    %c0_i32_1 = arith.constant 0 : i32
    return %c0_i32, %c0_i32_0 : i32, i32
  }
  func.func @transform_3(%arg0: i32) -> (i32, i32) {
    %c0_i32 = arith.constant 0 : i32
    %c0_i32_0 = arith.constant 0 : i32
    %c0_i32_1 = arith.constant 0 : i32
    return %c0_i32, %c0_i32_0 : i32, i32
  }
  func.func @transform_4(%arg0: i32) -> (i32, i32) {
    %c0_i32 = arith.constant 0 : i32
    %c0_i32_0 = arith.constant 0 : i32
    %c0_i32_1 = arith.constant 0 : i32
    return %c0_i32, %c0_i32_0 : i32, i32
  }
  func.func @transform_5(%arg0: i32) -> (i32, i32, i32) {
    %c0_i32 = arith.constant 0 : i32
    %c0_i32_0 = arith.constant 0 : i32
    %c0_i32_1 = arith.constant 0 : i32
    %c0_i32_2 = arith.constant 0 : i32
    return %c0_i32, %c0_i32_0, %c0_i32_1 : i32, i32, i32
  }
  func.func @transform_6(%arg0: i32) -> (i32, i32) {
    %c0_i32 = arith.constant 0 : i32
    %c0_i32_0 = arith.constant 0 : i32
    %c0_i32_1 = arith.constant 0 : i32
    return %c0_i32, %c0_i32_0 : i32, i32
  }
  func.func @transform_7(%arg0: i32) -> (i32, i32) {
    %c0_i32 = arith.constant 0 : i32
    %c0_i32_0 = arith.constant 0 : i32
    %c0_i32_1 = arith.constant 0 : i32
    return %c0_i32, %c0_i32_0 : i32, i32
  }
  func.func @transform_8(%arg0: i32) -> (i32, i32) {
    %c0_i32 = arith.constant 0 : i32
    %c0_i32_0 = arith.constant 0 : i32
    %c0_i32_1 = arith.constant 0 : i32
    return %c0_i32, %c0_i32_0 : i32, i32
  }
  func.func @transform_9(%arg0: i32) -> (i32, i32) {
    %c0_i32 = arith.constant 0 : i32
    %c0_i32_0 = arith.constant 0 : i32
    %c0_i32_1 = arith.constant 0 : i32
    return %c0_i32, %c0_i32_0 : i32, i32
  }
  func.func @transform_10(%arg0: i32) -> (i32, i32) {
    %c0_i32 = arith.constant 0 : i32
    %c0_i32_0 = arith.constant 0 : i32
    %c0_i32_1 = arith.constant 0 : i32
    return %c0_i32, %c0_i32_0 : i32, i32
  }
  func.func @transform_11(%arg0: i32) -> (i32, i32) {
    %c0_i32 = arith.constant 0 : i32
    %c0_i32_0 = arith.constant 0 : i32
    %c0_i32_1 = arith.constant 0 : i32
    return %c0_i32, %c0_i32_0 : i32, i32
  }
  func.func @transform_12(%arg0: i32) -> (i32, i32) {
    %c0_i32 = arith.constant 0 : i32
    %c0_i32_0 = arith.constant 0 : i32
    %c0_i32_1 = arith.constant 0 : i32
    return %c0_i32, %c0_i32_0 : i32, i32
  }
  func.func @transform_13(%arg0: i32) -> (i32, i32) {
    %c0_i32 = arith.constant 0 : i32
    %c0_i32_0 = arith.constant 0 : i32
    %c0_i32_1 = arith.constant 0 : i32
    return %c0_i32, %c0_i32_0 : i32, i32
  }
  func.func @transform_14(%arg0: i32) -> (i32, i32) {
    %c0_i32 = arith.constant 0 : i32
    %c0_i32_0 = arith.constant 0 : i32
    %c0_i32_1 = arith.constant 0 : i32
    return %c0_i32, %c0_i32_0 : i32, i32
  }
  func.func @transform_15(%arg0: i32) -> (i32, i32) {
    %c0_i32 = arith.constant 0 : i32
    %c0_i32_0 = arith.constant 0 : i32
    %c0_i32_1 = arith.constant 0 : i32
    return %c0_i32, %c0_i32_0 : i32, i32
  }
  func.func @transform_16(%arg0: i32) -> (i32, i32) {
    %c0_i32 = arith.constant 0 : i32
    %c0_i32_0 = arith.constant 0 : i32
    %c0_i32_1 = arith.constant 0 : i32
    return %c0_i32, %c0_i32_0 : i32, i32
  }
  func.func @transform_17(%arg0: i32) -> (i32, i32, i32) {
    %c0_i32 = arith.constant 0 : i32
    %c0_i32_0 = arith.constant 0 : i32
    %c0_i32_1 = arith.constant 0 : i32
    return %arg0, %c0_i32, %c0_i32_0 : i32, i32, i32
  }
}

</mosaic_0001>

<llo_original>
// kernel: tpu_custom_call.1
$region0: #{tpu_custom_call.1}
  #allocation0 [shape = 'u32[]', space=smem, size = 0x4, offset = 0x4, fixed_abs, tag = 'smem constant byte address 0x4 - core index']
  #allocation1 [shape = 'u32[72,128]{1,0:T(1,128)}', space=vmem, size = 0x9000, scoped, tag = 'internal scratch']
  %s0 = inlined_call_operand.vmem [shape: bf16[2,8,32], index: 0, kind: input, shape index: {}]
  %s1 = inlined_call_operand.vmem [shape: bf16[32,96], index: 1, kind: input, shape index: {}]
  %s2 = inlined_call_operand.vmem [shape: bf16[32,32], index: 2, kind: input, shape index: {}]
  %s3 = inlined_call_operand.hbm [shape: f32[1,32], index: 3, kind: input, shape index: {}]
  %s4 = inlined_call_operand.hbm [shape: f32[1,32], index: 4, kind: input, shape index: {}]
  %s5 = inlined_call_operand.vmem [shape: bf16[4,8,64], index: 5, kind: input, shape index: {}]
  %s6 = inlined_call_operand.vmem [shape: f32[8,32], index: 6, kind: input, shape index: {}]
  %s7 = inlined_call_operand.hbm [shape: f32[8,32], index: 7, kind: input, shape index: {}]
  %s8 = inlined_call_operand.vmem [shape: bf16[8,32], index: 8, kind: input, shape index: {}]
  %s9 = inlined_call_operand.vmem [shape: f32[1,32], index: 9, kind: input, shape index: {}]
  %s10 = inlined_call_operand.vmem [shape: f32[1,32], index: 10, kind: input, shape index: {}]
  %s11 = inlined_call_operand.vmem [shape: bf16[32,128], index: 11, kind: input, shape index: {}]
  %s12 = inlined_call_operand.vmem [shape: f32[1,128], index: 12, kind: input, shape index: {}]
  %s13 = inlined_call_operand.vmem [shape: bf16[128,32], index: 13, kind: input, shape index: {}]
  %s14 = inlined_call_operand.vmem [shape: f32[1,32], index: 14, kind: input, shape index: {}]
  %s15 = inlined_call_operand.vmem [shape: f32[1,32], index: 15, kind: input, shape index: {}]
  %s16 = inlined_call_operand.vmem [shape: f32[1,32], index: 16, kind: input, shape index: {}]
  %s17 = inlined_call_operand.hbm [shape: f32[2,8,32], index: 17, kind: output, shape index: {}]
  %s18 = sld [smem:[#allocation0]]
  $region120: #{tpu_custom_call.1} parent=0
    _
  %s20 = ssub.s32 1, %s18
  %s21 = scalar_select 0, %s20, %s18
  $region1: #{tpu_custom_call.1} parent=0
    #allocation2 [shape = 'u8[512]{0}', space=vmem, size = 0x400, scoped, tag = 'input window, operand 3, single buffered']
    #allocation3 [shape = 's32[2]{0}', space=sflag, size = 0x8, scoped, tag = 'scoped memory for tpu_custom_call.1']
    #allocation4 [shape = 's32[2]{0}', space=sflag, size = 0x8, scoped, tag = 'scoped memory for tpu_custom_call.1']
    #allocation5 [shape = 'u8[512]{0}', space=vmem, size = 0x400, scoped, tag = 'input window, operand 4, single buffered']
    #allocation6 [shape = 's32[1]{0}', space=sflag, size = 0x4, scoped, tag = 'scoped memory for tpu_custom_call.1']
    #allocation7 [shape = 'u8[4096]{0}', space=vmem, size = 0x1000, scoped, tag = 'input window, operand 7, single buffered']
    #allocation8 [shape = 'u8[8192]{0}', space=vmem, size = 0x2000, scoped, tag = 'output window, operand 0']
    %22 = vsyncpa [#allocation3], 0
    %23 = vsyncpa [#allocation6], 0
    %24 = vsyncpa [#allocation4], 0
    %s25 = scalar_lea.sflag [#allocation4], 1
    %26 = vsyncpa %s25, 0
    loop: start=0, step=1, limit=4
    $region2: #{tpu_custom_call.1} parent=1 // loop_pre_header
      _
    $region3: #{tpu_custom_call.1} parent=1 // loop_header
      %s28 = sphi 0, %s32
      %p29 = scmp.ge.s32.totalorder %s28, 4
      %s38 = sphi 0, %s40
      %s41 = sphi 0, %s38
      %s42 = sphi 0, %s41
      %s58 = sphi 0, %s42
      %s62 = sphi 0, %s62
      %s64 = sphi 0, %s62
      %s65 = sphi 0, %s64
      %s79 = sphi 0, %s65
      %s83 = sphi 0, %s83
      %s85 = sphi 0, %s83
      %s86 = sphi 0, %s85
      %s100 = sphi 0, %s86
      %s104 = sphi 0, %s104
      %s106 = sphi 0, %s104
      %s107 = sphi 0, %s106
      %s121 = sphi 0, %s107
      %s125 = sphi 0, %s125
      %s127 = sphi 0, %s125
      %s128 = sphi 0, %s127
      %s142 = sphi 0, %s128
      %s146 = sphi 0, %s146
      %s148 = sphi 0, %s146
      %s149 = sphi 0, %s148
      %s163 = sphi 0, %s149
      %s167 = sphi 0, %s167
      %s169 = sphi 0, %s167
      %s170 = sphi 0, %s169
      %s184 = sphi 0, %s170
      %s188 = sphi 0, %s188
      %s190 = sphi 0, %s188
      %s191 = sphi 0, %s190
      %s205 = sphi 0, %s191
      %s209 = sphi 0, %s209
      %s211 = sphi 0, %s209
      %s212 = sphi 0, %s211
      %s226 = sphi 0, %s212
      %s230 = sphi 0, %s230
      %s232 = sphi 0, %s230
      %s233 = sphi 0, %s232
      %s247 = sphi 0, %s233
      %s251 = sphi 0, %s251
      %s253 = sphi 0, %s251
      %s254 = sphi 0, %s253
      %s268 = sphi 0, %s254
      %s272 = sphi 0, %s272
      %s274 = sphi 0, %s272
      %s275 = sphi 0, %s274
      %s289 = sphi 0, %s275
      %s293 = sphi 0, %s293
      %s295 = sphi 0, %s293
      %s296 = sphi 0, %s295
      %s310 = sphi 0, %s296
      %s314 = sphi 0, %s314
      %s316 = sphi 0, %s314
      %s317 = sphi 0, %s316
      %s331 = sphi 0, %s317
      %s335 = sphi 0, %s335
      %s337 = sphi 0, %s335
      %s338 = sphi 0, %s337
      %s352 = sphi 0, %s338
      %s356 = sphi 0, %s356
      %s358 = sphi 0, %s356
      %s359 = sphi 0, %s358
      %s373 = sphi 0, %s359
      %s377 = sphi 0, %s377
      %s379 = sphi 0, %s377
      %s380 = sphi 0, %s379
      %s394 = sphi 0, %s380
      %s400 = sphi 0, %s402
      %s403 = sphi 0, %s400
      %s404 = sphi 0, %s403
      %s420 = sphi 0, %s404
    $region4: #{tpu_custom_call.1} parent=1 // loop_header_branch
      %31 = sbr.rel (%p29) target = $region8
    $region5: #{tpu_custom_call.1} parent=1 // loop_body
      %s33 = ssub.s32 %s28, 1
      %s34 = ssub.s32 %s28, 2
      %s35 = sadd.s32 %s28, 1
      %s36 = ssub.s32 %s28, %s35
      %p37 = scmp.eq.s32.totalorder %s36, 0
      %s39 = sadd.s32 %s38, 1
      %s40 = scalar_select %p37, %s38, %s39
      %p43 = pneg %p37
      %p44 = scmp.eq.s32.totalorder %s28, 1
      %p45 = por %p43, %p44
      %p46 = scmp.ne.s32.totalorder %s38, %s41
      %p47 = scmp.eq.s32.totalorder %s28, 0
      %p48 = por %p46, %p47
      %p49 = scmp.ne.s32.totalorder %s38, %s41
      %p50 = scmp.eq.s32.totalorder %s33, 1
      %p51 = por %p49, %p50
      %p52 = scmp.ne.s32.totalorder %s41, %s42
      %p53 = scmp.eq.s32.totalorder %s33, 0
      %p54 = por %p52, %p53
      %p55 = scmp.ne.s32.totalorder %s41, %s42
      %p56 = scmp.eq.s32.totalorder %s34, 1
      %p57 = por %p55, %p56
      %p59 = scmp.ne.s32.totalorder %s42, %s58
      %p60 = scmp.eq.s32.totalorder %s34, 0
      %p61 = por %p59, %p60
      %s63 = sadd.s32 %s62, 1
      %p66 = scmp.eq.s32.totalorder %s28, 1
      %p67 = scmp.ne.s32.totalorder %s62, %s64
      %p68 = scmp.eq.s32.totalorder %s28, 0
      %p69 = por %p67, %p68
      %p70 = scmp.ne.s32.totalorder %s62, %s64
      %p71 = scmp.eq.s32.totalorder %s33, 1
      %p72 = por %p70, %p71
      %p73 = scmp.ne.s32.totalorder %s64, %s65
      %p74 = scmp.eq.s32.totalorder %s33, 0
      %p75 = por %p73, %p74
      %p76 = scmp.ne.s32.totalorder %s64, %s65
      %p77 = scmp.eq.s32.totalorder %s34, 1
      %p78 = por %p76, %p77
      %p80 = scmp.ne.s32.totalorder %s65, %s79
      %p81 = scmp.eq.s32.totalorder %s34, 0
      %p82 = por %p80, %p81
      %s84 = sadd.s32 %s83, 1
      %p87 = scmp.eq.s32.totalorder %s28, 1
      %p88 = scmp.ne.s32.totalorder %s83, %s85
      %p89 = scmp.eq.s32.totalorder %s28, 0
      %p90 = por %p88, %p89
      %p91 = scmp.ne.s32.totalorder %s83, %s85
      %p92 = scmp.eq.s32.totalorder %s33, 1
      %p93 = por %p91, %p92
      %p94 = scmp.ne.s32.totalorder %s85, %s86
      %p95 = scmp.eq.s32.totalorder %s33, 0
      %p96 = por %p94, %p95
      %p97 = scmp.ne.s32.totalorder %s85, %s86
      %p98 = scmp.eq.s32.totalorder %s34, 1
      %p99 = por %p97, %p98
      %p101 = scmp.ne.s32.totalorder %s86, %s100
      %p102 = scmp.eq.s32.totalorder %s34, 0
      %p103 = por %p101, %p102
      %s105 = sadd.s32 %s104, 1
      %p108 = scmp.eq.s32.totalorder %s28, 1
      %p109 = scmp.ne.s32.totalorder %s104, %s106
      %p110 = scmp.eq.s32.totalorder %s28, 0
      %p111 = por %p109, %p110
      %p112 = scmp.ne.s32.totalorder %s104, %s106
      %p113 = scmp.eq.s32.totalorder %s33, 1
      %p114 = por %p112, %p113
      %p115 = scmp.ne.s32.totalorder %s106, %s107
      %p116 = scmp.eq.s32.totalorder %s33, 0
      %p117 = por %p115, %p116
      %p118 = scmp.ne.s32.totalorder %s106, %s107
      %p119 = scmp.eq.s32.totalorder %s34, 1
      %p120 = por %p118, %p119
      %p122 = scmp.ne.s32.totalorder %s107, %s121
      %p123 = scmp.eq.s32.totalorder %s34, 0
      %p124 = por %p122, %p123
      %s126 = sadd.s32 %s125, 1
      %p129 = scmp.eq.s32.totalorder %s28, 1
      %p130 = scmp.ne.s32.totalorder %s125, %s127
      %p131 = scmp.eq.s32.totalorder %s28, 0
      %p132 = por %p130, %p131
      %p133 = scmp.ne.s32.totalorder %s125, %s127
      %p134 = scmp.eq.s32.totalorder %s33, 1
      %p135 = por %p133, %p134
      %p136 = scmp.ne.s32.totalorder %s127, %s128
      %p137 = scmp.eq.s32.totalorder %s33, 0
      %p138 = por %p136, %p137
      %p139 = scmp.ne.s32.totalorder %s127, %s128
      %p140 = scmp.eq.s32.totalorder %s34, 1
      %p141 = por %p139, %p140
      %p143 = scmp.ne.s32.totalorder %s128, %s142
      %p144 = scmp.eq.s32.totalorder %s34, 0
      %p145 = por %p143, %p144
      %s147 = sadd.s32 %s146, 1
      %p150 = scmp.eq.s32.totalorder %s28, 1
      %p151 = scmp.ne.s32.totalorder %s146, %s148
      %p152 = scmp.eq.s32.totalorder %s28, 0
      %p153 = por %p151, %p152
      %p154 = scmp.ne.s32.totalorder %s146, %s148
      %p155 = scmp.eq.s32.totalorder %s33, 1
      %p156 = por %p154, %p155
      %p157 = scmp.ne.s32.totalorder %s148, %s149
      %p158 = scmp.eq.s32.totalorder %s33, 0
      %p159 = por %p157, %p158
      %p160 = scmp.ne.s32.totalorder %s148, %s149
      %p161 = scmp.eq.s32.totalorder %s34, 1
      %p162 = por %p160, %p161
      %p164 = scmp.ne.s32.totalorder %s149, %s163
      %p165 = scmp.eq.s32.totalorder %s34, 0
      %p166 = por %p164, %p165
      %s168 = sadd.s32 %s167, 1
      %p171 = scmp.eq.s32.totalorder %s28, 1
      %p172 = scmp.ne.s32.totalorder %s167, %s169
      %p173 = scmp.eq.s32.totalorder %s28, 0
      %p174 = por %p172, %p173
      %p175 = scmp.ne.s32.totalorder %s167, %s169
      %p176 = scmp.eq.s32.totalorder %s33, 1
      %p177 = por %p175, %p176
      %p178 = scmp.ne.s32.totalorder %s169, %s170
      %p179 = scmp.eq.s32.totalorder %s33, 0
      %p180 = por %p178, %p179
      %p181 = scmp.ne.s32.totalorder %s169, %s170
      %p182 = scmp.eq.s32.totalorder %s34, 1
      %p183 = por %p181, %p182
      %p185 = scmp.ne.s32.totalorder %s170, %s184
      %p186 = scmp.eq.s32.totalorder %s34, 0
      %p187 = por %p185, %p186
      %s189 = sadd.s32 %s188, 1
      %p192 = scmp.eq.s32.totalorder %s28, 1
      %p193 = scmp.ne.s32.totalorder %s188, %s190
      %p194 = scmp.eq.s32.totalorder %s28, 0
      %p195 = por %p193, %p194
      %p196 = scmp.ne.s32.totalorder %s188, %s190
      %p197 = scmp.eq.s32.totalorder %s33, 1
      %p198 = por %p196, %p197
      %p199 = scmp.ne.s32.totalorder %s190, %s191
      %p200 = scmp.eq.s32.totalorder %s33, 0
      %p201 = por %p199, %p200
      %p202 = scmp.ne.s32.totalorder %s190, %s191
      %p203 = scmp.eq.s32.totalorder %s34, 1
      %p204 = por %p202, %p203
      %p206 = scmp.ne.s32.totalorder %s191, %s205
      %p207 = scmp.eq.s32.totalorder %s34, 0
      %p208 = por %p206, %p207
      %s210 = sadd.s32 %s209, 1
      %p213 = scmp.eq.s32.totalorder %s28, 1
      %p214 = scmp.ne.s32.totalorder %s209, %s211
      %p215 = scmp.eq.s32.totalorder %s28, 0
      %p216 = por %p214, %p215
      %p217 = scmp.ne.s32.totalorder %s209, %s211
      %p218 = scmp.eq.s32.totalorder %s33, 1
      %p219 = por %p217, %p218
      %p220 = scmp.ne.s32.totalorder %s211, %s212
      %p221 = scmp.eq.s32.totalorder %s33, 0
      %p222 = por %p220, %p221
      %p223 = scmp.ne.s32.totalorder %s211, %s212
      %p224 = scmp.eq.s32.totalorder %s34, 1
      %p225 = por %p223, %p224
      %p227 = scmp.ne.s32.totalorder %s212, %s226
      %p228 = scmp.eq.s32.totalorder %s34, 0
      %p229 = por %p227, %p228
      %s231 = sadd.s32 %s230, 1
      %p234 = scmp.eq.s32.totalorder %s28, 1
      %p235 = scmp.ne.s32.totalorder %s230, %s232
      %p236 = scmp.eq.s32.totalorder %s28, 0
      %p237 = por %p235, %p236
      %p238 = scmp.ne.s32.totalorder %s230, %s232
      %p239 = scmp.eq.s32.totalorder %s33, 1
      %p240 = por %p238, %p239
      %p241 = scmp.ne.s32.totalorder %s232, %s233
      %p242 = scmp.eq.s32.totalorder %s33, 0
      %p243 = por %p241, %p242
      %p244 = scmp.ne.s32.totalorder %s232, %s233
      %p245 = scmp.eq.s32.totalorder %s34, 1
      %p246 = por %p244, %p245
      %p248 = scmp.ne.s32.totalorder %s233, %s247
      %p249 = scmp.eq.s32.totalorder %s34, 0
      %p250 = por %p248, %p249
      %s252 = sadd.s32 %s251, 1
      %p255 = scmp.eq.s32.totalorder %s28, 1
      %p256 = scmp.ne.s32.totalorder %s251, %s253
      %p257 = scmp.eq.s32.totalorder %s28, 0
      %p258 = por %p256, %p257
      %p259 = scmp.ne.s32.totalorder %s251, %s253
      %p260 = scmp.eq.s32.totalorder %s33, 1
      %p261 = por %p259, %p260
      %p262 = scmp.ne.s32.totalorder %s253, %s254
      %p263 = scmp.eq.s32.totalorder %s33, 0
      %p264 = por %p262, %p263
      %p265 = scmp.ne.s32.totalorder %s253, %s254
      %p266 = scmp.eq.s32.totalorder %s34, 1
      %p267 = por %p265, %p266
      %p269 = scmp.ne.s32.totalorder %s254, %s268
      %p270 = scmp.eq.s32.totalorder %s34, 0
      %p271 = por %p269, %p270
      %s273 = sadd.s32 %s272, 1
      %p276 = scmp.eq.s32.totalorder %s28, 1
      %p277 = scmp.ne.s32.totalorder %s272, %s274
      %p278 = scmp.eq.s32.totalorder %s28, 0
      %p279 = por %p277, %p278
      %p280 = scmp.ne.s32.totalorder %s272, %s274
      %p281 = scmp.eq.s32.totalorder %s33, 1
      %p282 = por %p280, %p281
      %p283 = scmp.ne.s32.totalorder %s274, %s275
      %p284 = scmp.eq.s32.totalorder %s33, 0
      %p285 = por %p283, %p284
      %p286 = scmp.ne.s32.totalorder %s274, %s275
      %p287 = scmp.eq.s32.totalorder %s34, 1
      %p288 = por %p286, %p287
      %p290 = scmp.ne.s32.totalorder %s275, %s289
      %p291 = scmp.eq.s32.totalorder %s34, 0
      %p292 = por %p290, %p291
      %s294 = sadd.s32 %s293, 1
      %p297 = scmp.eq.s32.totalorder %s28, 1
      %p298 = scmp.ne.s32.totalorder %s293, %s295
      %p299 = scmp.eq.s32.totalorder %s28, 0
      %p300 = por %p298, %p299
      %p301 = scmp.ne.s32.totalorder %s293, %s295
      %p302 = scmp.eq.s32.totalorder %s33, 1
      %p303 = por %p301, %p302
      %p304 = scmp.ne.s32.totalorder %s295, %s296
      %p305 = scmp.eq.s32.totalorder %s33, 0
      %p306 = por %p304, %p305
      %p307 = scmp.ne.s32.totalorder %s295, %s296
      %p308 = scmp.eq.s32.totalorder %s34, 1
      %p309 = por %p307, %p308
      %p311 = scmp.ne.s32.totalorder %s296, %s310
      %p312 = scmp.eq.s32.totalorder %s34, 0
      %p313 = por %p311, %p312
      %s315 = sadd.s32 %s314, 1
      %p318 = scmp.eq.s32.totalorder %s28, 1
      %p319 = scmp.ne.s32.totalorder %s314, %s316
      %p320 = scmp.eq.s32.totalorder %s28, 0
      %p321 = por %p319, %p320
      %p322 = scmp.ne.s32.totalorder %s314, %s316
      %p323 = scmp.eq.s32.totalorder %s33, 1
      %p324 = por %p322, %p323
      %p325 = scmp.ne.s32.totalorder %s316, %s317
      %p326 = scmp.eq.s32.totalorder %s33, 0
      %p327 = por %p325, %p326
      %p328 = scmp.ne.s32.totalorder %s316, %s317
      %p329 = scmp.eq.s32.totalorder %s34, 1
      %p330 = por %p328, %p329
      %p332 = scmp.ne.s32.totalorder %s317, %s331
      %p333 = scmp.eq.s32.totalorder %s34, 0
      %p334 = por %p332, %p333
      %s336 = sadd.s32 %s335, 1
      %p339 = scmp.eq.s32.totalorder %s28, 1
      %p340 = scmp.ne.s32.totalorder %s335, %s337
      %p341 = scmp.eq.s32.totalorder %s28, 0
      %p342 = por %p340, %p341
      %p343 = scmp.ne.s32.totalorder %s335, %s337
      %p344 = scmp.eq.s32.totalorder %s33, 1
      %p345 = por %p343, %p344
      %p346 = scmp.ne.s32.totalorder %s337, %s338
      %p347 = scmp.eq.s32.totalorder %s33, 0
      %p348 = por %p346, %p347
      %p349 = scmp.ne.s32.totalorder %s337, %s338
      %p350 = scmp.eq.s32.totalorder %s34, 1
      %p351 = por %p349, %p350
      %p353 = scmp.ne.s32.totalorder %s338, %s352
      %p354 = scmp.eq.s32.totalorder %s34, 0
      %p355 = por %p353, %p354
      %s357 = sadd.s32 %s356, 1
      %p360 = scmp.eq.s32.totalorder %s28, 1
      %p361 = scmp.ne.s32.totalorder %s356, %s358
      %p362 = scmp.eq.s32.totalorder %s28, 0
      %p363 = por %p361, %p362
      %p364 = scmp.ne.s32.totalorder %s356, %s358
      %p365 = scmp.eq.s32.totalorder %s33, 1
      %p366 = por %p364, %p365
      %p367 = scmp.ne.s32.totalorder %s358, %s359
      %p368 = scmp.eq.s32.totalorder %s33, 0
      %p369 = por %p367, %p368
      %p370 = scmp.ne.s32.totalorder %s358, %s359
      %p371 = scmp.eq.s32.totalorder %s34, 1
      %p372 = por %p370, %p371
      %p374 = scmp.ne.s32.totalorder %s359, %s373
      %p375 = scmp.eq.s32.totalorder %s34, 0
      %p376 = por %p374, %p375
      %s378 = sadd.s32 %s377, 1
      %p381 = scmp.eq.s32.totalorder %s28, 1
      %p382 = scmp.ne.s32.totalorder %s377, %s379
      %p383 = scmp.eq.s32.totalorder %s28, 0
      %p384 = por %p382, %p383
      %p385 = scmp.ne.s32.totalorder %s377, %s379
      %p386 = scmp.eq.s32.totalorder %s33, 1
      %p387 = por %p385, %p386
      %p388 = scmp.ne.s32.totalorder %s379, %s380
      %p389 = scmp.eq.s32.totalorder %s33, 0
      %p390 = por %p388, %p389
      %p391 = scmp.ne.s32.totalorder %s379, %s380
      %p392 = scmp.eq.s32.totalorder %s34, 1
      %p393 = por %p391, %p392
      %p395 = scmp.ne.s32.totalorder %s380, %s394
      %p396 = scmp.eq.s32.totalorder %s34, 0
      %p397 = por %p395, %p396
      %s398 = ssub.s32 %s28, %s35
      %p399 = scmp.eq.s32.totalorder %s398, 0
      %s401 = sadd.s32 %s400, 1
      %s402 = scalar_select %p399, %s400, %s401
      %p405 = pneg %p399
      %p406 = scmp.eq.s32.totalorder %s28, 1
      %p407 = por %p405, %p406
      %p408 = scmp.ne.s32.totalorder %s400, %s403
      %p409 = scmp.eq.s32.totalorder %s28, 0
      %p410 = por %p408, %p409
      %p411 = scmp.ne.s32.totalorder %s400, %s403
      %p412 = scmp.eq.s32.totalorder %s33, 1
      %p413 = por %p411, %p412
      %p414 = scmp.ne.s32.totalorder %s403, %s404
      %p415 = scmp.eq.s32.totalorder %s33, 0
      %p416 = por %p414, %p415
      %p417 = scmp.ne.s32.totalorder %s403, %s404
      %p418 = scmp.eq.s32.totalorder %s34, 1
      %p419 = por %p417, %p418
      %p421 = scmp.ne.s32.totalorder %s404, %s420
      %p422 = scmp.eq.s32.totalorder %s34, 0
      %p423 = por %p421, %p422
      %p424 = scmp.le.s32.totalorder 1, %s28
      %p425 = scmp.lt.s32.totalorder %s28, 3
      %p426 = pnand %p424, %p425
      %p427 = pneg %p426
      // Predicated region
      $region9: #{tpu_custom_call.1} parent=5 // pred_check
        _
      $region10: #{tpu_custom_call.1} parent=5 // pred_check_branch
        %429 = sbr.rel (%p426) target = $region12
      $region11: #{tpu_custom_call.1} parent=5 // pred_region
        %s430 = ssub.s32 %s28, 1
        // Predicated region
        $region13: #{tpu_custom_call.1} parent=11 // pred_check
          %p431 = pneg %p75
        $region14: #{tpu_custom_call.1} parent=11 // pred_check_branch
          %433 = sbr.rel (%p431) target = $region16
        $region15: #{tpu_custom_call.1} parent=11 // pred_region
          _
        $region16: #{tpu_custom_call.1} parent=11 // pred_fallthru
          _
        // Predicated region
        $region17: #{tpu_custom_call.1} parent=11 // pred_check
          %p434 = pneg %p96
        $region18: #{tpu_custom_call.1} parent=11 // pred_check_branch
          %436 = sbr.rel (%p434) target = $region20
        $region19: #{tpu_custom_call.1} parent=11 // pred_region
          _
        $region20: #{tpu_custom_call.1} parent=11 // pred_fallthru
          _
        // Predicated region
        $region21: #{tpu_custom_call.1} parent=11 // pred_check
          %p437 = pneg %p117
        $region22: #{tpu_custom_call.1} parent=11 // pred_check_branch
          %439 = sbr.rel (%p437) target = $region24
        $region23: #{tpu_custom_call.1} parent=11 // pred_region
          %441 = vsyncadd [#allocation3], 0
          %s443 = sshll.u32 %s3, 4
          %s444 = int_to_ptr.hbm [resolvable:$true] %s443
          %s445 = sshll.u32 [#allocation2], 4
          %s446 = int_to_ptr.vmem [resolvable:$true] %s445
          %448 = dma.hbm_to_vmem [thread:$0]  %s444, 16, %s446, [#allocation3]
        $region24: #{tpu_custom_call.1} parent=11 // pred_fallthru
          _
        // Predicated region
        $region25: #{tpu_custom_call.1} parent=11 // pred_check
          %p449 = pneg %p138
        $region26: #{tpu_custom_call.1} parent=11 // pred_check_branch
          %451 = sbr.rel (%p449) target = $region28
        $region27: #{tpu_custom_call.1} parent=11 // pred_region
          %453 = vsyncadd [#allocation6], 0
          %s455 = sshll.u32 %s4, 4
          %s456 = int_to_ptr.hbm [resolvable:$true] %s455
          %s457 = sshll.u32 [#allocation5], 4
          %s458 = int_to_ptr.vmem [resolvable:$true] %s457
          %460 = dma.hbm_to_vmem [thread:$0]  %s456, 16, %s458, [#allocation6]
        $region28: #{tpu_custom_call.1} parent=11 // pred_fallthru
          _
        // Predicated region
        $region29: #{tpu_custom_call.1} parent=11 // pred_check
          %p461 = pneg %p159
        $region30: #{tpu_custom_call.1} parent=11 // pred_check_branch
          %463 = sbr.rel (%p461) target = $region32
        $region31: #{tpu_custom_call.1} parent=11 // pred_region
          _
        $region32: #{tpu_custom_call.1} parent=11 // pred_fallthru
          _
        // Predicated region
        $region33: #{tpu_custom_call.1} parent=11 // pred_check
          %p464 = pneg %p180
        $region34: #{tpu_custom_call.1} parent=11 // pred_check_branch
          %466 = sbr.rel (%p464) target = $region36
        $region35: #{tpu_custom_call.1} parent=11 // pred_region
          _
        $region36: #{tpu_custom_call.1} parent=11 // pred_fallthru
          _
        // Predicated region
        $region37: #{tpu_custom_call.1} parent=11 // pred_check
          %p467 = pneg %p201
        $region38: #{tpu_custom_call.1} parent=11 // pred_check_branch
          %469 = sbr.rel (%p467) target = $region40
        $region39: #{tpu_custom_call.1} parent=11 // pred_region
          %471 = vsyncadd [#allocation6], 0
          %s473 = sshll.u32 %s7, 4
          %s474 = int_to_ptr.hbm [resolvable:$true] %s473
          %s475 = sshll.u32 [#allocation7], 4
          %s476 = int_to_ptr.vmem [resolvable:$true] %s475
          %478 = dma.hbm_to_vmem [thread:$0]  %s474, 128, %s476, [#allocation6]
        $region40: #{tpu_custom_call.1} parent=11 // pred_fallthru
          _
        // Predicated region
        $region41: #{tpu_custom_call.1} parent=11 // pred_check
          %p479 = pneg %p222
        $region42: #{tpu_custom_call.1} parent=11 // pred_check_branch
          %481 = sbr.rel (%p479) target = $region44
        $region43: #{tpu_custom_call.1} parent=11 // pred_region
          _
        $region44: #{tpu_custom_call.1} parent=11 // pred_fallthru
          _
        // Predicated region
        $region45: #{tpu_custom_call.1} parent=11 // pred_check
          %p482 = pneg %p243
        $region46: #{tpu_custom_call.1} parent=11 // pred_check_branch
          %484 = sbr.rel (%p482) target = $region48
        $region47: #{tpu_custom_call.1} parent=11 // pred_region
          _
        $region48: #{tpu_custom_call.1} parent=11 // pred_fallthru
          _
        // Predicated region
        $region49: #{tpu_custom_call.1} parent=11 // pred_check
          %p485 = pneg %p264
        $region50: #{tpu_custom_call.1} parent=11 // pred_check_branch
          %487 = sbr.rel (%p485) target = $region52
        $region51: #{tpu_custom_call.1} parent=11 // pred_region
          _
        $region52: #{tpu_custom_call.1} parent=11 // pred_fallthru
          _
        // Predicated region
        $region53: #{tpu_custom_call.1} parent=11 // pred_check
          %p488 = pneg %p285
        $region54: #{tpu_custom_call.1} parent=11 // pred_check_branch
          %490 = sbr.rel (%p488) target = $region56
        $region55: #{tpu_custom_call.1} parent=11 // pred_region
          _
        $region56: #{tpu_custom_call.1} parent=11 // pred_fallthru
          _
        // Predicated region
        $region57: #{tpu_custom_call.1} parent=11 // pred_check
          %p491 = pneg %p306
        $region58: #{tpu_custom_call.1} parent=11 // pred_check_branch
          %493 = sbr.rel (%p491) target = $region60
        $region59: #{tpu_custom_call.1} parent=11 // pred_region
          _
        $region60: #{tpu_custom_call.1} parent=11 // pred_fallthru
          _
        // Predicated region
        $region61: #{tpu_custom_call.1} parent=11 // pred_check
          %p494 = pneg %p327
        $region62: #{tpu_custom_call.1} parent=11 // pred_check_branch
          %496 = sbr.rel (%p494) target = $region64
        $region63: #{tpu_custom_call.1} parent=11 // pred_region
          _
        $region64: #{tpu_custom_call.1} parent=11 // pred_fallthru
          _
        // Predicated region
        $region65: #{tpu_custom_call.1} parent=11 // pred_check
          %p497 = pneg %p348
        $region66: #{tpu_custom_call.1} parent=11 // pred_check_branch
          %499 = sbr.rel (%p497) target = $region68
        $region67: #{tpu_custom_call.1} parent=11 // pred_region
          _
        $region68: #{tpu_custom_call.1} parent=11 // pred_fallthru
          _
        // Predicated region
        $region69: #{tpu_custom_call.1} parent=11 // pred_check
          %p500 = pneg %p369
        $region70: #{tpu_custom_call.1} parent=11 // pred_check_branch
          %502 = sbr.rel (%p500) target = $region72
        $region71: #{tpu_custom_call.1} parent=11 // pred_region
          _
        $region72: #{tpu_custom_call.1} parent=11 // pred_fallthru
          _
        // Predicated region
        $region73: #{tpu_custom_call.1} parent=11 // pred_check
          %p503 = pneg %p390
        $region74: #{tpu_custom_call.1} parent=11 // pred_check_branch
          %505 = sbr.rel (%p503) target = $region76
        $region75: #{tpu_custom_call.1} parent=11 // pred_region
          _
        $region76: #{tpu_custom_call.1} parent=11 // pred_fallthru
          _
      $region12: #{tpu_custom_call.1} parent=5 // pred_fallthru
        _
      %p506 = scmp.lt.s32.totalorder %s28, 2
      // Predicated region
      $region77: #{tpu_custom_call.1} parent=5 // pred_check
        %p507 = pneg %p506
      $region78: #{tpu_custom_call.1} parent=5 // pred_check_branch
        %509 = sbr.rel (%p507) target = $region80
      $region79: #{tpu_custom_call.1} parent=5 // pred_region
        // Predicated region
        $region81: #{tpu_custom_call.1} parent=79 // pred_check
          %p510 = pneg %p48
        $region82: #{tpu_custom_call.1} parent=79 // pred_check_branch
          %512 = sbr.rel (%p510) target = $region84
        $region83: #{tpu_custom_call.1} parent=79 // pred_region
          %p513 = scmp.lt.s32.totalorder %s28, 1
          %s514 = scalar_select %p513, %s28, 1
          %s515 = smul.addr %s514, 4
          %s516 = scalar_lea.vmem %s0, %s515
        $region84: #{tpu_custom_call.1} parent=79 // pred_fallthru
          _
      $region80: #{tpu_custom_call.1} parent=5 // pred_fallthru
        _
      %p517 = scmp.le.s32.totalorder 1, %s28
      %p518 = scmp.lt.s32.totalorder %s28, 3
      %p519 = pnand %p517, %p518
      %p520 = pneg %p519
      // Predicated region
      $region85: #{tpu_custom_call.1} parent=5 // pred_check
        _
      $region86: #{tpu_custom_call.1} parent=5 // pred_check_branch
        %522 = sbr.rel (%p519) target = $region88
      $region87: #{tpu_custom_call.1} parent=5 // pred_region
        %s523 = ssub.s32 %s28, 1
        // Predicated region
        $region89: #{tpu_custom_call.1} parent=87 // pred_check
          %p524 = pneg %p117
        $region90: #{tpu_custom_call.1} parent=87 // pred_check_branch
          %526 = sbr.rel (%p524) target = $region92
        $region91: #{tpu_custom_call.1} parent=87 // pred_region
          %528 = dma.done [#allocation3], 16
        $region92: #{tpu_custom_call.1} parent=87 // pred_fallthru
          _
        // Predicated region
        $region93: #{tpu_custom_call.1} parent=87 // pred_check
          %p529 = pneg %p138
        $region94: #{tpu_custom_call.1} parent=87 // pred_check_branch
          %531 = sbr.rel (%p529) target = $region96
        $region95: #{tpu_custom_call.1} parent=87 // pred_region
          %533 = dma.done [#allocation6], 16
        $region96: #{tpu_custom_call.1} parent=87 // pred_fallthru
          _
        // Predicated region
        $region97: #{tpu_custom_call.1} parent=87 // pred_check
          %p534 = pneg %p201
        $region98: #{tpu_custom_call.1} parent=87 // pred_check_branch
          %536 = sbr.rel (%p534) target = $region100
        $region99: #{tpu_custom_call.1} parent=87 // pred_region
          %538 = dma.done [#allocation6], 128
        $region100: #{tpu_custom_call.1} parent=87 // pred_fallthru
          _
        %p539 = scmp.lt.s32.totalorder %s33, 1
        %s540 = scalar_select %p539, %s33, 1
        %s541 = smul.addr %s540, 4
        %s542 = scalar_lea.vmem %s0, %s541
        %p543 = pneg %p54
        %p544 = pneg %p51
        %p545 = pneg %p75
        %p546 = pneg %p72
        %p547 = pneg %p96
        %p548 = pneg %p93
        %p549 = pneg %p117
        %p550 = pneg %p114
        %p551 = pneg %p138
        %p552 = pneg %p135
        %p553 = pneg %p159
        %p554 = pneg %p156
        %p555 = pneg %p180
        %p556 = pneg %p177
        %p557 = pneg %p201
        %p558 = pneg %p198
        %p559 = pneg %p222
        %p560 = pneg %p219
        %p561 = pneg %p243
        %p562 = pneg %p240
        %p563 = pneg %p264
        %p564 = pneg %p261
        %p565 = pneg %p285
        %p566 = pneg %p282
        %p567 = pneg %p306
        %p568 = pneg %p303
        %p569 = pneg %p327
        %p570 = pneg %p324
        %p571 = pneg %p348
        %p572 = pneg %p345
        %p573 = pneg %p369
        %p574 = pneg %p366
        %p575 = pneg %p390
        %p576 = pneg %p387
        %p577 = pneg %p416
        %p578 = pneg %p413
        %s579 = sand.u32 %s403, 1
        %s580 = scalar_lea.sflag [#allocation4], %s579
        %s581 = sand.u32 %s403, 1
        %s582 = smul.addr %s581, 8
        %s583 = scalar_lea.vmem [#allocation8], %s582
        %p584 = scmp.lt.s32.totalorder %s33, 1
        %s585 = scalar_select %p584, %s33, 1
        %s586 = smul.addr %s585, 4
        %s587 = scalar_lea.vmem %s0, %s586
        %v589 = vld [vmem:[%s587] sm:$0xf]
        %v590 = vunpack.c.l.bf16 %v589
        loop: start=0, step=1, limit=2
        $region101: #{tpu_custom_call.1} parent=87 // loop_pre_header
          _
        $region102: #{tpu_custom_call.1} parent=87 // loop_header
          %s592 = sphi 0, %s596
          %p593 = scmp.ge.s32.totalorder %s592, 2
          %v597 = vphi %v590, %v1315
        $region103: #{tpu_custom_call.1} parent=87 // loop_header_branch
          %595 = sbr.rel (%p593) target = $region107
        $region104: #{tpu_custom_call.1} parent=87 // loop_body
          %v598 = vpack.c.bf16 %v597, %v597
          %v599 = vld [vmem:[%s1] sm:$0xf]
          %v600 = vld [vmem:[%s1 + $0x4] sm:$0xf]
          %v601 = vld [vmem:[%s1 + $0x8] sm:$0xf]
          %v602 = vld [vmem:[%s1 + $0xc] sm:$0xf]
          %v607 = vunpack.c.l.b16 %v599
          %v608 = vunpack.c.l.b16 %v600
          %v609 = vunpack.c.l.b16 %v601
          %v610 = vunpack.c.l.b16 %v602
          %v611 = vpack.c.b16 %v608, %v607
          %v612 = vpack.c.b16 %v610, %v609
          %vm615 = vcmask 261120
          %v617 = vsel %vm615, %v598, 0
          %619 = vmatpush.bf16.msra.mxu0 0
          %620 = vmatpush.bf16.msra.mxu0 0
          %621 = vmatpush.bf16.msra.mxu0 0
          %622 = vmatpush.bf16.msra.mxu0 0
          %623 = vmatpush.bf16.msra.mxu0 0
          %624 = vmatpush.bf16.msra.mxu0 0
          %625 = vmatpush.bf16.msra.mxu0 %v612
          %626 = vmatpush.bf16.msra.mxu0 %v611
          %627 = vmatmul.bf16.gmra.mxu0 %v617
          %v628 = vpop.f32.mrf.mxu0
          %v629 = vadd.f32 0.0, %v628
          %v630 = vpop.f32.mrf.mxu0
          %631 = vdwg.mxu0
          %v632 = vpack.c.bf16 %v629, %v629
          %v633 = vld [vmem:[#allocation2] sm:$0x1]
          %v635 = vperm.slane %v633, 0
          %v637 = vadd.f32 %v629, %v635
          %v638 = vpack.c.bf16 %v637, %v637
          %v639 = vld [vmem:[#allocation5] sm:$0x1]
          %v641 = vperm.slane %v639, 0
          %v643 = vadd.f32 %v629, %v641
          %v644 = vpack.c.bf16 %v643, %v643
          %v645 = vld [vmem:[%s5] sm:$0xf]
          %vm646 = vcmask 64512
          %v648 = vsel %vm646, %v644, 0
          %vm650 = vcmask 1043456
          %v652 = vsel %vm650, %v645, 0
          %654 = vmatpush.bf16.msra.mxu0 0
          %655 = vmatpush.bf16.msra.mxu0 0
          %656 = vmatpush.bf16.msra.mxu0 0
          %657 = vmatpush.bf16.msra.mxu0 0
          %658 = vmatpush.bf16.msra.mxu0 0
          %659 = vmatpush.bf16.msra.mxu0 0
          %660 = vmatpush.bf16.msra.mxu0 0
          %661 = vmatpush.bf16.msra.mxu0 %v652
          %662 = vmatmul.bf16.gmra.mxu0 %v648
          %v663 = vpop.f32.mrf.mxu0
          %v664 = vadd.f32 0.0, %v663
          %v665 = vpop.f32.mrf.mxu0
          %666 = vdwg.mxu0
          %v667 = vld [vmem:[%s6] sm:$0xff]
          %v668 = vmul.f32 %v664, %v667
          %v669 = vld [vmem:[#allocation7] sm:$0xff]
          %671 = vrot.lane.b32.xlu0 %v669, 32
          %v672 = vpop.permute.xlu0 %671
          %v674 = vmul.f32 %v664, %v672
          %676 = vrot.lane.b32.xlu0 %v674, 96
          %v677 = vpop.permute.xlu0 %676
          %v679 = vadd.f32 %v668, %v677
          %v680 = vpack.c.bf16 %v679, %v679
          %v681 = vld [vmem:[%s8] sm:$0xf]
          %v683 = vsel %vm615, %v680, 0
          %v686 = vsel %vm615, %v681, 0
          %688 = vmatpush.bf16.xpose.msra.mxu0 0
          %689 = vmatpush.bf16.xpose.msra.mxu0 0
          %690 = vmatpush.bf16.xpose.msra.mxu0 0
          %691 = vmatpush.bf16.xpose.msra.mxu0 0
          %692 = vmatpush.bf16.xpose.msra.mxu0 0
          %693 = vmatpush.bf16.xpose.msra.mxu0 0
          %694 = vmatpush.bf16.xpose.msra.mxu0 0
          %695 = vmatpush.bf16.xpose.msra.mxu0 %v686
          %696 = vmatmul.bf16.gmra.mxu0 %v683
          %v697 = vpop.f32.mrf.mxu0
          %v698 = vadd.f32 0.0, %v697
          %v699 = vpop.f32.mrf.mxu0
          %700 = vdwg.mxu0
          %v702 = vunpack.c.l.b16 %v632
          %v703 = vpack.c.b16 %v702, %v702
          %704 = vrot.lane.b32.xlu0 %v703, 96
          %v705 = vpop.permute.xlu0 %704
          %v707 = vsel %vm646, %v638, 0
          %v710 = vsel %vm646, %v705, 0
          %712 = vmatpush.bf16.xpose.msra.mxu0 0
          %713 = vmatpush.bf16.xpose.msra.mxu0 0
          %714 = vmatpush.bf16.xpose.msra.mxu0 0
          %715 = vmatpush.bf16.xpose.msra.mxu0 0
          %716 = vmatpush.bf16.xpose.msra.mxu0 0
          %717 = vmatpush.bf16.xpose.msra.mxu0 0
          %718 = vmatpush.bf16.xpose.msra.mxu0 0
          %719 = vmatpush.bf16.xpose.msra.mxu0 %v710
          %720 = vmatmul.bf16.gmra.mxu0 %v707
          %v721 = vpop.f32.mrf.mxu0
          %v722 = vadd.f32 %v698, %v721
          %v723 = vpop.f32.mrf.mxu0
          %724 = vdwg.mxu0
          %v725 = vsel %vm646, %v722, -inf
          %726 = vmax.xlane.f32.xlu0 %v725
          %v727 = vpop.xlane.xlu0 %726
          %v728 = vsub.f32 %v722, %v727
          %v729 = vmul.f32 %v728, 1.442695
          %v730 = vpow.pop %v729
          %v731 = vsel %vm646, %v730, 0.0
          %732 = vadd.xlane.f32.xlu0 %v731
          %v733 = vpop.xlane.xlu0 %732
          %v734 = vrcp.pop %v733
          %v735 = vmul.f32 %v730, %v734
          %v736 = vpack.c.bf16 %v735, %v735
          %737 = vrot.lane.b32.xlu0 %v703, 64
          %v738 = vpop.permute.xlu0 %737
          %v740 = vsel %vm646, %v736, 0
          %v743 = vsel %vm650, %v738, 0
          %745 = vmatpush.bf16.msra.mxu0 0
          %746 = vmatpush.bf16.msra.mxu0 0
          %747 = vmatpush.bf16.msra.mxu0 0
          %748 = vmatpush.bf16.msra.mxu0 0
          %749 = vmatpush.bf16.msra.mxu0 0
          %750 = vmatpush.bf16.msra.mxu0 0
          %751 = vmatpush.bf16.msra.mxu0 0
          %752 = vmatpush.bf16.msra.mxu0 %v743
          %753 = vmatmul.bf16.gmra.mxu0 %v740
          %v754 = vpop.f32.mrf.mxu0
          %v755 = vadd.f32 0.0, %v754
          %v756 = vpop.f32.mrf.mxu0
          %757 = vdwg.mxu0
          %s758 = scalar_lea.vmem %s5, 4
          %v759 = vld [vmem:[%s758] sm:$0xf]
          %v761 = vunpack.c.l.b16 %v644
          %v762 = vpack.c.b16 %v761, %v761
          %763 = vrot.lane.b32.xlu0 %v762, 120
          %v764 = vpop.permute.xlu0 %763
          %v766 = vsel %vm646, %v764, 0
          %v769 = vsel %vm650, %v759, 0
          %771 = vmatpush.bf16.msra.mxu0 0
          %772 = vmatpush.bf16.msra.mxu0 0
          %773 = vmatpush.bf16.msra.mxu0 0
          %774 = vmatpush.bf16.msra.mxu0 0
          %775 = vmatpush.bf16.msra.mxu0 0
          %776 = vmatpush.bf16.msra.mxu0 0
          %777 = vmatpush.bf16.msra.mxu0 0
          %778 = vmatpush.bf16.msra.mxu0 %v769
          %779 = vmatmul.bf16.gmra.mxu0 %v766
          %v780 = vpop.f32.mrf.mxu0
          %v781 = vadd.f32 0.0, %v780
          %v782 = vpop.f32.mrf.mxu0
          %783 = vdwg.mxu0
          %v784 = vmul.f32 %v781, %v667
          %v785 = vmul.f32 %v781, %v672
          %787 = vrot.lane.b32.xlu0 %v785, 96
          %v788 = vpop.permute.xlu0 %787
          %v790 = vadd.f32 %v784, %v788
          %v791 = vpack.c.bf16 %v790, %v790
          %v793 = vsel %vm615, %v791, 0
          %795 = vmatpush.bf16.xpose.msra.mxu0 0
          %796 = vmatpush.bf16.xpose.msra.mxu0 0
          %797 = vmatpush.bf16.xpose.msra.mxu0 0
          %798 = vmatpush.bf16.xpose.msra.mxu0 0
          %799 = vmatpush.bf16.xpose.msra.mxu0 0
          %800 = vmatpush.bf16.xpose.msra.mxu0 0
          %801 = vmatpush.bf16.xpose.msra.mxu0 0
          %802 = vmatpush.bf16.xpose.msra.mxu0 %v686
          %803 = vmatmul.bf16.gmra.mxu0 %v793
          %v804 = vpop.f32.mrf.mxu0
          %v805 = vadd.f32 0.0, %v804
          %v806 = vpop.f32.mrf.mxu0
          %807 = vdwg.mxu0
          %v809 = vunpack.c.l.b16 %v638
          %v810 = vpack.c.b16 %v809, %v809
          %811 = vrot.lane.b32.xlu0 %v810, 120
          %v812 = vpop.permute.xlu0 %811
          %813 = vrot.lane.b32.xlu0 %v703, 88
          %v814 = vpop.permute.xlu0 %813
          %v816 = vsel %vm646, %v812, 0
          %v819 = vsel %vm646, %v814, 0
          %821 = vmatpush.bf16.xpose.msra.mxu0 0
          %822 = vmatpush.bf16.xpose.msra.mxu0 0
          %823 = vmatpush.bf16.xpose.msra.mxu0 0
          %824 = vmatpush.bf16.xpose.msra.mxu0 0
          %825 = vmatpush.bf16.xpose.msra.mxu0 0
          %826 = vmatpush.bf16.xpose.msra.mxu0 0
          %827 = vmatpush.bf16.xpose.msra.mxu0 0
          %828 = vmatpush.bf16.xpose.msra.mxu0 %v819
          %829 = vmatmul.bf16.gmra.mxu0 %v816
          %v830 = vpop.f32.mrf.mxu0
          %v831 = vadd.f32 %v805, %v830
          %v832 = vpop.f32.mrf.mxu0
          %833 = vdwg.mxu0
          %v834 = vsel %vm646, %v831, -inf
          %835 = vmax.xlane.f32.xlu0 %v834
          %v836 = vpop.xlane.xlu0 %835
          %v837 = vsub.f32 %v831, %v836
          %v838 = vmul.f32 %v837, 1.442695
          %v839 = vpow.pop %v838
          %v840 = vsel %vm646, %v839, 0.0
          %841 = vadd.xlane.f32.xlu0 %v840
          %v842 = vpop.xlane.xlu0 %841
          %v843 = vrcp.pop %v842
          %v844 = vmul.f32 %v839, %v843
          %v845 = vpack.c.bf16 %v844, %v844
          %846 = vrot.lane.b32.xlu0 %v703, 56
          %v847 = vpop.permute.xlu0 %846
          %v849 = vsel %vm646, %v845, 0
          %v852 = vsel %vm650, %v847, 0
          %854 = vmatpush.bf16.msra.mxu0 0
          %855 = vmatpush.bf16.msra.mxu0 0
          %856 = vmatpush.bf16.msra.mxu0 0
          %857 = vmatpush.bf16.msra.mxu0 0
          %858 = vmatpush.bf16.msra.mxu0 0
          %859 = vmatpush.bf16.msra.mxu0 0
          %860 = vmatpush.bf16.msra.mxu0 0
          %861 = vmatpush.bf16.msra.mxu0 %v852
          %862 = vmatmul.bf16.gmra.mxu0 %v849
          %v863 = vpop.f32.mrf.mxu0
          %v864 = vadd.f32 0.0, %v863
          %v865 = vpop.f32.mrf.mxu0
          %866 = vdwg.mxu0
          %s867 = scalar_lea.vmem %s5, 8
          %v868 = vld [vmem:[%s867] sm:$0xf]
          %869 = vrot.lane.b32.xlu0 %v762, 112
          %v870 = vpop.permute.xlu0 %869
          %v872 = vsel %vm646, %v870, 0
          %v875 = vsel %vm650, %v868, 0
          %877 = vmatpush.bf16.msra.mxu0 0
          %878 = vmatpush.bf16.msra.mxu0 0
          %879 = vmatpush.bf16.msra.mxu0 0
          %880 = vmatpush.bf16.msra.mxu0 0
          %881 = vmatpush.bf16.msra.mxu0 0
          %882 = vmatpush.bf16.msra.mxu0 0
          %883 = vmatpush.bf16.msra.mxu0 0
          %884 = vmatpush.bf16.msra.mxu0 %v875
          %885 = vmatmul.bf16.gmra.mxu0 %v872
          %v886 = vpop.f32.mrf.mxu0
          %v887 = vadd.f32 0.0, %v886
          %v888 = vpop.f32.mrf.mxu0
          %889 = vdwg.mxu0
          %v890 = vmul.f32 %v887, %v667
          %v891 = vmul.f32 %v887, %v672
          %893 = vrot.lane.b32.xlu0 %v891, 96
          %v894 = vpop.permute.xlu0 %893
          %v896 = vadd.f32 %v890, %v894
          %v897 = vpack.c.bf16 %v896, %v896
          %v899 = vsel %vm615, %v897, 0
          %901 = vmatpush.bf16.xpose.msra.mxu0 0
          %902 = vmatpush.bf16.xpose.msra.mxu0 0
          %903 = vmatpush.bf16.xpose.msra.mxu0 0
          %904 = vmatpush.bf16.xpose.msra.mxu0 0
          %905 = vmatpush.bf16.xpose.msra.mxu0 0
          %906 = vmatpush.bf16.xpose.msra.mxu0 0
          %907 = vmatpush.bf16.xpose.msra.mxu0 0
          %908 = vmatpush.bf16.xpose.msra.mxu0 %v686
          %909 = vmatmul.bf16.gmra.mxu0 %v899
          %v910 = vpop.f32.mrf.mxu0
          %v911 = vadd.f32 0.0, %v910
          %v912 = vpop.f32.mrf.mxu0
          %913 = vdwg.mxu0
          %914 = vrot.lane.b32.xlu0 %v810, 112
          %v915 = vpop.permute.xlu0 %914
          %916 = vrot.lane.b32.xlu0 %v703, 80
          %v917 = vpop.permute.xlu0 %916
          %v919 = vsel %vm646, %v915, 0
          %v922 = vsel %vm646, %v917, 0
          %924 = vmatpush.bf16.xpose.msra.mxu0 0
          %925 = vmatpush.bf16.xpose.msra.mxu0 0
          %926 = vmatpush.bf16.xpose.msra.mxu0 0
          %927 = vmatpush.bf16.xpose.msra.mxu0 0
          %928 = vmatpush.bf16.xpose.msra.mxu0 0
          %929 = vmatpush.bf16.xpose.msra.mxu0 0
          %930 = vmatpush.bf16.xpose.msra.mxu0 0
          %931 = vmatpush.bf16.xpose.msra.mxu0 %v922
          %932 = vmatmul.bf16.gmra.mxu0 %v919
          %v933 = vpop.f32.mrf.mxu0
          %v934 = vadd.f32 %v911, %v933
          %v935 = vpop.f32.mrf.mxu0
          %936 = vdwg.mxu0
          %v937 = vsel %vm646, %v934, -inf
          %938 = vmax.xlane.f32.xlu0 %v937
          %v939 = vpop.xlane.xlu0 %938
          %v940 = vsub.f32 %v934, %v939
          %v941 = vmul.f32 %v940, 1.442695
          %v942 = vpow.pop %v941
          %v943 = vsel %vm646, %v942, 0.0
          %944 = vadd.xlane.f32.xlu0 %v943
          %v945 = vpop.xlane.xlu0 %944
          %v946 = vrcp.pop %v945
          %v947 = vmul.f32 %v942, %v946
          %v948 = vpack.c.bf16 %v947, %v947
          %949 = vrot.lane.b32.xlu0 %v703, 48
          %v950 = vpop.permute.xlu0 %949
          %v952 = vsel %vm646, %v948, 0
          %v955 = vsel %vm650, %v950, 0
          %957 = vmatpush.bf16.msra.mxu0 0
          %958 = vmatpush.bf16.msra.mxu0 0
          %959 = vmatpush.bf16.msra.mxu0 0
          %960 = vmatpush.bf16.msra.mxu0 0
          %961 = vmatpush.bf16.msra.mxu0 0
          %962 = vmatpush.bf16.msra.mxu0 0
          %963 = vmatpush.bf16.msra.mxu0 0
          %964 = vmatpush.bf16.msra.mxu0 %v955
          %965 = vmatmul.bf16.gmra.mxu0 %v952
          %v966 = vpop.f32.mrf.mxu0
          %v967 = vadd.f32 0.0, %v966
          %v968 = vpop.f32.mrf.mxu0
          %969 = vdwg.mxu0
          %s970 = scalar_lea.vmem %s5, 12
          %v971 = vld [vmem:[%s970] sm:$0xf]
          %972 = vrot.lane.b32.xlu0 %v762, 104
          %v973 = vpop.permute.xlu0 %972
          %v975 = vsel %vm646, %v973, 0
          %v978 = vsel %vm650, %v971, 0
          %980 = vmatpush.bf16.msra.mxu0 0
          %981 = vmatpush.bf16.msra.mxu0 0
          %982 = vmatpush.bf16.msra.mxu0 0
          %983 = vmatpush.bf16.msra.mxu0 0
          %984 = vmatpush.bf16.msra.mxu0 0
          %985 = vmatpush.bf16.msra.mxu0 0
          %986 = vmatpush.bf16.msra.mxu0 0
          %987 = vmatpush.bf16.msra.mxu0 %v978
          %988 = vmatmul.bf16.gmra.mxu0 %v975
          %v989 = vpop.f32.mrf.mxu0
          %v990 = vadd.f32 0.0, %v989
          %v991 = vpop.f32.mrf.mxu0
          %992 = vdwg.mxu0
          %v993 = vmul.f32 %v990, %v667
          %v994 = vmul.f32 %v990, %v672
          %996 = vrot.lane.b32.xlu0 %v994, 96
          %v997 = vpop.permute.xlu0 %996
          %v999 = vadd.f32 %v993, %v997
          %v1000 = vpack.c.bf16 %v999, %v999
          %v1002 = vsel %vm615, %v1000, 0
          %1004 = vmatpush.bf16.xpose.msra.mxu0 0
          %1005 = vmatpush.bf16.xpose.msra.mxu0 0
          %1006 = vmatpush.bf16.xpose.msra.mxu0 0
          %1007 = vmatpush.bf16.xpose.msra.mxu0 0
          %1008 = vmatpush.bf16.xpose.msra.mxu0 0
          %1009 = vmatpush.bf16.xpose.msra.mxu0 0
          %1010 = vmatpush.bf16.xpose.msra.mxu0 0
          %1011 = vmatpush.bf16.xpose.msra.mxu0 %v686
          %1012 = vmatmul.bf16.gmra.mxu0 %v1002
          %v1013 = vpop.f32.mrf.mxu0
          %v1014 = vadd.f32 0.0, %v1013
          %v1015 = vpop.f32.mrf.mxu0
          %1016 = vdwg.mxu0
          %1017 = vrot.lane.b32.xlu0 %v810, 104
          %v1018 = vpop.permute.xlu0 %1017
          %1019 = vrot.lane.b32.xlu0 %v703, 72
          %v1020 = vpop.permute.xlu0 %1019
          %v1022 = vsel %vm646, %v1018, 0
          %v1025 = vsel %vm646, %v1020, 0
          %1027 = vmatpush.bf16.xpose.msra.mxu0 0
          %1028 = vmatpush.bf16.xpose.msra.mxu0 0
          %1029 = vmatpush.bf16.xpose.msra.mxu0 0
          %1030 = vmatpush.bf16.xpose.msra.mxu0 0
          %1031 = vmatpush.bf16.xpose.msra.mxu0 0
          %1032 = vmatpush.bf16.xpose.msra.mxu0 0
          %1033 = vmatpush.bf16.xpose.msra.mxu0 0
          %1034 = vmatpush.bf16.xpose.msra.mxu0 %v1025
          %1035 = vmatmul.bf16.gmra.mxu0 %v1022
          %v1036 = vpop.f32.mrf.mxu0
          %v1037 = vadd.f32 %v1014, %v1036
          %v1038 = vpop.f32.mrf.mxu0
          %1039 = vdwg.mxu0
          %v1040 = vsel %vm646, %v1037, -inf
          %1041 = vmax.xlane.f32.xlu0 %v1040
          %v1042 = vpop.xlane.xlu0 %1041
          %v1043 = vsub.f32 %v1037, %v1042
          %v1044 = vmul.f32 %v1043, 1.442695
          %v1045 = vpow.pop %v1044
          %v1046 = vsel %vm646, %v1045, 0.0
          %1047 = vadd.xlane.f32.xlu0 %v1046
          %v1048 = vpop.xlane.xlu0 %1047
          %v1049 = vrcp.pop %v1048
          %v1050 = vmul.f32 %v1045, %v1049
          %v1051 = vpack.c.bf16 %v1050, %v1050
          %1052 = vrot.lane.b32.xlu0 %v703, 40
          %v1053 = vpop.permute.xlu0 %1052
          %v1055 = vsel %vm646, %v1051, 0
          %v1058 = vsel %vm650, %v1053, 0
          %1060 = vmatpush.bf16.msra.mxu0 0
          %1061 = vmatpush.bf16.msra.mxu0 0
          %1062 = vmatpush.bf16.msra.mxu0 0
          %1063 = vmatpush.bf16.msra.mxu0 0
          %1064 = vmatpush.bf16.msra.mxu0 0
          %1065 = vmatpush.bf16.msra.mxu0 0
          %1066 = vmatpush.bf16.msra.mxu0 0
          %1067 = vmatpush.bf16.msra.mxu0 %v1058
          %1068 = vmatmul.bf16.gmra.mxu0 %v1055
          %v1069 = vpop.f32.mrf.mxu0
          %v1070 = vadd.f32 0.0, %v1069
          %v1071 = vpop.f32.mrf.mxu0
          %1072 = vdwg.mxu0
          %1074 = vrot.lane.b32.xlu0 %v864, 8
          %v1075 = vpop.permute.xlu0 %1074
          %1078 = vrot.lane.b32.xlu0 %v967, 16
          %v1079 = vpop.permute.xlu0 %1078
          %1082 = vrot.lane.b32.xlu0 %v1070, 24
          %v1083 = vpop.permute.xlu0 %1082
          %v1085 = vsel %vm646, %v755, %v1075
          %vm1086 = vcmask 130048
          %v1087 = vsel %vm1086, %v1085, %v1079
          %vm1088 = vcmask 195584
          %v1089 = vsel %vm1088, %v1087, %v1083
          %v1090 = vpack.c.bf16 %v1089, %v1089
          %v1091 = vld [vmem:[%s2] sm:$0xf]
          %v1092 = vld [vmem:[%s2 + $0x4] sm:$0xf]
          %v1093 = vld [vmem:[%s2 + $0x8] sm:$0xf]
          %v1094 = vld [vmem:[%s2 + $0xc] sm:$0xf]
          %v1099 = vunpack.c.l.b16 %v1091
          %v1100 = vunpack.c.l.b16 %v1092
          %v1101 = vunpack.c.l.b16 %v1093
          %v1102 = vunpack.c.l.b16 %v1094
          %v1103 = vpack.c.b16 %v1100, %v1099
          %v1104 = vpack.c.b16 %v1102, %v1101
          %v1108 = vsel %vm615, %v1090, 0
          %1110 = vmatpush.bf16.msra.mxu0 0
          %1111 = vmatpush.bf16.msra.mxu0 0
          %1112 = vmatpush.bf16.msra.mxu0 0
          %1113 = vmatpush.bf16.msra.mxu0 0
          %1114 = vmatpush.bf16.msra.mxu0 0
          %1115 = vmatpush.bf16.msra.mxu0 0
          %1116 = vmatpush.bf16.msra.mxu0 %v1104
          %1117 = vmatpush.bf16.msra.mxu0 %v1103
          %1118 = vmatmul.bf16.gmra.mxu0 %v1108
          %v1119 = vpop.f32.mrf.mxu0
          %v1120 = vadd.f32 0.0, %v1119
          %v1121 = vpop.f32.mrf.mxu0
          %1122 = vdwg.mxu0
          %v1123 = vadd.f32 %v597, %v1120
          %v1124 = vld [vmem:[%s9] sm:$0x1]
          %v1125 = vld [vmem:[%s10] sm:$0x1]
          %v1126 = vsel %vm615, %v1123, 0.0
          %1127 = vadd.xlane.f32.xlu0 %v1126
          %v1128 = vpop.xlane.xlu0 %1127
          %v1129 = vrcp.pop 32.0
          %v1130 = vmul.f32 32.0, %v1129
          %v1131 = vsub.f32 1.0, %v1130
          %v1132 = vmul.f32 %v1129, %v1131
          %v1133 = vadd.f32 %v1129, %v1132
          %vm1134 = vweird.f32 %v1129
          %v1135 = vsel %vm1134, %v1129, %v1133
          %v1136 = vmul.f32 %v1128, %v1135
          %v1137 = vsub.f32 %v1123, %v1136
          %v1138 = vmul.f32 %v1137, %v1137
          %v1139 = vsel %vm615, %v1138, 0.0
          %1140 = vadd.xlane.f32.xlu0 %v1139
          %v1141 = vpop.xlane.xlu0 %1140
          %v1142 = vmul.f32 %v1141, %v1135
          %v1143 = vadd.f32 %v1142, 1e-05
          %v1144 = vrsqrt.pop %v1143
          %v1145 = vmul.f32 %v1144, %v1143
          %v1146 = vmul.f32 %v1145, %v1144
          %v1147 = vmul.f32 0.5, %v1146
          %v1148 = vsub.f32 1.5, %v1147
          %v1149 = vmul.f32 %v1144, %v1148
          %vm1150 = vweird.f32 %v1143
          %vm1151 = vweird.f32 %v1144
          %vm1152 = vmor %vm1150, %vm1151
          %v1153 = vsel %vm1152, %v1144, %v1149
          %v1154 = vmul.f32 %v1137, %v1153
          %v1156 = vperm.slane %v1124, 0
          %v1158 = vmul.f32 %v1154, %v1156
          %v1160 = vperm.slane %v1125, 0
          %v1162 = vadd.f32 %v1158, %v1160
          %v1163 = vpack.c.bf16 %v1162, %v1162
          %v1164 = vld [vmem:[%s11] sm:$0xf]
          %v1165 = vld [vmem:[%s11 + $0x4] sm:$0xf]
          %v1166 = vld [vmem:[%s11 + $0x8] sm:$0xf]
          %v1167 = vld [vmem:[%s11 + $0xc] sm:$0xf]
          %v1168 = vld [vmem:[%s12] sm:$0x1]
          %v1170 = vperm.slane %v1168, 0
          %v1176 = vunpack.c.l.b16 %v1164
          %v1177 = vunpack.c.l.b16 %v1165
          %v1178 = vunpack.c.l.b16 %v1166
          %v1179 = vunpack.c.l.b16 %v1167
          %v1180 = vpack.c.b16 %v1177, %v1176
          %v1181 = vpack.c.b16 %v1179, %v1178
          %v1185 = vsel %vm615, %v1163, 0
          %1187 = vmatpush.bf16.msra.mxu0 0
          %1188 = vmatpush.bf16.msra.mxu0 0
          %1189 = vmatpush.bf16.msra.mxu0 0
          %1190 = vmatpush.bf16.msra.mxu0 0
          %1191 = vmatpush.bf16.msra.mxu0 0
          %1192 = vmatpush.bf16.msra.mxu0 0
          %1193 = vmatpush.bf16.msra.mxu0 %v1181
          %1194 = vmatpush.bf16.msra.mxu0 %v1180
          %1195 = vmatmul.bf16.gmra.mxu0 %v1185
          %v1196 = vpop.f32.mrf.mxu0
          %v1197 = vadd.f32 %v1170, %v1196
          %v1198 = vpop.f32.mrf.mxu0
          %1199 = vdwg.mxu0
          %v1200 = vmax.f32 %v1197, 0.0
          %v1201 = vpack.c.bf16 %v1200, %v1200
          %v1202 = vld [vmem:[%s13] sm:$0xf]
          %v1203 = vld [vmem:[%s13 + $0x4] sm:$0xf]
          %v1204 = vld [vmem:[%s13 + $0x8] sm:$0xf]
          %v1205 = vld [vmem:[%s13 + $0xc] sm:$0xf]
          %v1206 = vld [vmem:[%s13 + $0x10] sm:$0xf]
          %v1207 = vld [vmem:[%s13 + $0x14] sm:$0xf]
          %v1208 = vld [vmem:[%s13 + $0x18] sm:$0xf]
          %v1209 = vld [vmem:[%s13 + $0x1c] sm:$0xf]
          %v1210 = vld [vmem:[%s13 + $0x20] sm:$0xf]
          %v1211 = vld [vmem:[%s13 + $0x24] sm:$0xf]
          %v1212 = vld [vmem:[%s13 + $0x28] sm:$0xf]
          %v1213 = vld [vmem:[%s13 + $0x2c] sm:$0xf]
          %v1214 = vld [vmem:[%s13 + $0x30] sm:$0xf]
          %v1215 = vld [vmem:[%s13 + $0x34] sm:$0xf]
          %v1216 = vld [vmem:[%s13 + $0x38] sm:$0xf]
          %v1217 = vld [vmem:[%s13 + $0x3c] sm:$0xf]
          %v1218 = vld [vmem:[%s14] sm:$0x1]
          %v1220 = vperm.slane %v1218, 0
          %v1238 = vunpack.c.l.b16 %v1202
          %v1239 = vunpack.c.l.b16 %v1203
          %v1240 = vunpack.c.l.b16 %v1204
          %v1241 = vunpack.c.l.b16 %v1205
          %v1242 = vunpack.c.l.b16 %v1206
          %v1243 = vunpack.c.l.b16 %v1207
          %v1244 = vunpack.c.l.b16 %v1208
          %v1245 = vunpack.c.l.b16 %v1209
          %v1246 = vunpack.c.l.b16 %v1210
          %v1247 = vunpack.c.l.b16 %v1211
          %v1248 = vunpack.c.l.b16 %v1212
          %v1249 = vunpack.c.l.b16 %v1213
          %v1250 = vunpack.c.l.b16 %v1214
          %v1251 = vunpack.c.l.b16 %v1215
          %v1252 = vunpack.c.l.b16 %v1216
          %v1253 = vunpack.c.l.b16 %v1217
          %v1254 = vpack.c.b16 %v1239, %v1238
          %v1255 = vpack.c.b16 %v1241, %v1240
          %v1256 = vpack.c.b16 %v1243, %v1242
          %v1257 = vpack.c.b16 %v1245, %v1244
          %v1258 = vpack.c.b16 %v1247, %v1246
          %v1259 = vpack.c.b16 %v1249, %v1248
          %v1260 = vpack.c.b16 %v1251, %v1250
          %v1261 = vpack.c.b16 %v1253, %v1252
          %1270 = vmatpush.bf16.msra.mxu0 %v1261
          %1271 = vmatpush.bf16.msra.mxu0 %v1260
          %1272 = vmatpush.bf16.msra.mxu0 %v1259
          %1273 = vmatpush.bf16.msra.mxu0 %v1258
          %1274 = vmatpush.bf16.msra.mxu0 %v1257
          %1275 = vmatpush.bf16.msra.mxu0 %v1256
          %1276 = vmatpush.bf16.msra.mxu0 %v1255
          %1277 = vmatpush.bf16.msra.mxu0 %v1254
          %1278 = vmatmul.bf16.gmra.mxu0 %v1201
          %v1279 = vpop.f32.mrf.mxu0
          %v1280 = vadd.f32 %v1220, %v1279
          %v1281 = vpop.f32.mrf.mxu0
          %1282 = vdwg.mxu0
          %v1283 = vadd.f32 %v1162, %v1280
          %v1284 = vld [vmem:[%s15] sm:$0x1]
          %v1285 = vld [vmem:[%s16] sm:$0x1]
          %v1286 = vsel %vm615, %v1283, 0.0
          %1287 = vadd.xlane.f32.xlu0 %v1286
          %v1288 = vpop.xlane.xlu0 %1287
          %v1289 = vmul.f32 %v1288, %v1135
          %v1290 = vsub.f32 %v1283, %v1289
          %v1291 = vmul.f32 %v1290, %v1290
          %v1292 = vsel %vm615, %v1291, 0.0
          %1293 = vadd.xlane.f32.xlu0 %v1292
          %v1294 = vpop.xlane.xlu0 %1293
          %v1295 = vmul.f32 %v1294, %v1135
          %v1296 = vadd.f32 %v1295, 1e-05
          %v1297 = vrsqrt.pop %v1296
          %v1298 = vmul.f32 %v1297, %v1296
          %v1299 = vmul.f32 %v1298, %v1297
          %v1300 = vmul.f32 0.5, %v1299
          %v1301 = vsub.f32 1.5, %v1300
          %v1302 = vmul.f32 %v1297, %v1301
          %vm1303 = vweird.f32 %v1296
          %vm1304 = vweird.f32 %v1297
          %vm1305 = vmor %vm1303, %vm1304
          %v1306 = vsel %vm1305, %v1297, %v1302
          %v1307 = vmul.f32 %v1290, %v1306
          %v1309 = vperm.slane %v1284, 0
          %v1311 = vmul.f32 %v1307, %v1309
          %v1313 = vperm.slane %v1285, 0
          %v1315 = vadd.f32 %v1311, %v1313
        $region105: #{tpu_custom_call.1} parent=87 // loop_footer
          %s596 = sadd.s32 1, %s592
        $region106: #{tpu_custom_call.1} parent=87 // loop_footer_branch
          %591 = sbr.rel target = $region102
        $region107: #{tpu_custom_call.1} parent=87 // loop_exit
          _
        %vm1316 = vcmask 261120
        %1317 = vst.msk [vmem:[%s583] sm:$0xff] %vm1316, %v597
        %s1318 = sand.u32 %s403, 1
        %s1319 = scalar_lea.sflag [#allocation4], %s1318
        %s1320 = sand.u32 %s403, 1
        %s1321 = smul.addr %s1320, 8
        %s1322 = scalar_lea.vmem [#allocation8], %s1321
        // Predicated region
        $region108: #{tpu_custom_call.1} parent=87 // pred_check
          %p1323 = pneg %p413
        $region109: #{tpu_custom_call.1} parent=87 // pred_check_branch
          %1325 = sbr.rel (%p1323) target = $region111
        $region110: #{tpu_custom_call.1} parent=87 // pred_region
          %1327 = vsyncadd %s1319, 0
          %s1328 = smul.addr %s33, 8
          %s1329 = scalar_lea.hbm %s17, %s1328
          %s1331 = sshll.u32 %s1322, 4
          %s1332 = int_to_ptr.vmem [resolvable:$true] %s1331
          %s1333 = sshll.u32 %s1329, 4
          %s1334 = int_to_ptr.hbm [resolvable:$true] %s1333
          %1336 = dma.vmem_to_hbm [thread:$0]  %s1332, 128, %s1334, %s1319
        $region111: #{tpu_custom_call.1} parent=87 // pred_fallthru
          _
      $region88: #{tpu_custom_call.1} parent=5 // pred_fallthru
        _
      %p1337 = scmp.le.s32.totalorder 2, %s28
      // Predicated region
      $region112: #{tpu_custom_call.1} parent=5 // pred_check
        %p1338 = pneg %p1337
      $region113: #{tpu_custom_call.1} parent=5 // pred_check_branch
        %1340 = sbr.rel (%p1338) target = $region115
      $region114: #{tpu_custom_call.1} parent=5 // pred_region
        %s1341 = ssub.s32 %s28, 2
        // Predicated region
        $region116: #{tpu_custom_call.1} parent=114 // pred_check
          %p1342 = pneg %p419
        $region117: #{tpu_custom_call.1} parent=114 // pred_check_branch
          %1344 = sbr.rel (%p1342) target = $region119
        $region118: #{tpu_custom_call.1} parent=114 // pred_region
          %s1345 = sand.u32 %s404, 1
          %s1346 = scalar_lea.sflag [#allocation4], %s1345
          %s1347 = sand.u32 %s404, 1
          %s1348 = smul.addr %s1347, 8
          %s1349 = scalar_lea.vmem [#allocation8], %s1348
          %1351 = dma.done %s1346, 128
        $region119: #{tpu_custom_call.1} parent=114 // pred_fallthru
          _
      $region115: #{tpu_custom_call.1} parent=5 // pred_fallthru
        _
    $region6: #{tpu_custom_call.1} parent=1 // loop_footer
      %s32 = sadd.s32 1, %s28
    $region7: #{tpu_custom_call.1} parent=1 // loop_footer_branch
      %27 = sbr.rel target = $region3
    $region8: #{tpu_custom_call.1} parent=1 // loop_exit
      _
    %1352 = vsyncpa [#allocation3], 1
    %s1353 = scalar_lea.sflag [#allocation3], 1
    %1354 = vsyncpa %s1353, 1
    %1355 = vsyncpa [#allocation6], 1
    %1356 = vsyncpa [#allocation4], 1
    %s1357 = scalar_lea.sflag [#allocation4], 1
    %1358 = vsyncpa %s1357, 1

// kernel: tpu_custom_call.1
$region0: #{tpu_custom_call.1}
  #allocation0 [shape = 'u32[]', space=smem, size = 0x4, offset = 0x4, fixed_abs, tag = 'smem constant byte address 0x4 - core index']
  #allocation1 [shape = 'u32[72,128]{1,0:T(1,128)}', space=vmem, size = 0x9000, scoped, tag = 'internal scratch']
  %s0 = inlined_call_operand.vmem [shape: bf16[2,8,32], index: 0, kind: input, shape index: {}]
  %s1 = inlined_call_operand.vmem [shape: bf16[32,96], index: 1, kind: input, shape index: {}]
  %s2 = inlined_call_operand.vmem [shape: bf16[32,32], index: 2, kind: input, shape index: {}]
  %s3 = inlined_call_operand.hbm [shape: f32[1,32], index: 3, kind: input, shape index: {}]
  %s4 = inlined_call_operand.hbm [shape: f32[1,32], index: 4, kind: input, shape index: {}]
  %s5 = inlined_call_operand.vmem [shape: bf16[4,8,64], index: 5, kind: input, shape index: {}]
  %s6 = inlined_call_operand.vmem [shape: f32[8,32], index: 6, kind: input, shape index: {}]
  %s7 = inlined_call_operand.hbm [shape: f32[8,32], index: 7, kind: input, shape index: {}]
  %s8 = inlined_call_operand.vmem [shape: bf16[8,32], index: 8, kind: input, shape index: {}]
  %s9 = inlined_call_operand.vmem [shape: f32[1,32], index: 9, kind: input, shape index: {}]
  %s10 = inlined_call_operand.vmem [shape: f32[1,32], index: 10, kind: input, shape index: {}]
  %s11 = inlined_call_operand.vmem [shape: bf16[32,128], index: 11, kind: input, shape index: {}]
  %s12 = inlined_call_operand.vmem [shape: f32[1,128], index: 12, kind: input, shape index: {}]
  %s13 = inlined_call_operand.vmem [shape: bf16[128,32], index: 13, kind: input, shape index: {}]
  %s14 = inlined_call_operand.vmem [shape: f32[1,32], index: 14, kind: input, shape index: {}]
  %s15 = inlined_call_operand.vmem [shape: f32[1,32], index: 15, kind: input, shape index: {}]
  %s16 = inlined_call_operand.vmem [shape: f32[1,32], index: 16, kind: input, shape index: {}]
  %s17 = inlined_call_operand.hbm [shape: f32[2,8,32], index: 17, kind: output, shape index: {}]
  %s18 = sld [smem:[#allocation0]]
  $region120: #{tpu_custom_call.1} parent=0
    _
  %s20 = ssub.s32 1, %s18
  %s21 = scalar_select 0, %s20, %s18
  $region1: #{tpu_custom_call.1} parent=0
    #allocation2 [shape = 'u8[512]{0}', space=vmem, size = 0x400, scoped, tag = 'input window, operand 3, single buffered']
    #allocation3 [shape = 's32[2]{0}', space=sflag, size = 0x8, scoped, tag = 'scoped memory for tpu_custom_call.1']
    #allocation4 [shape = 's32[2]{0}', space=sflag, size = 0x8, scoped, tag = 'scoped memory for tpu_custom_call.1']
    #allocation5 [shape = 'u8[512]{0}', space=vmem, size = 0x400, scoped, tag = 'input window, operand 4, single buffered']
    #allocation6 [shape = 's32[1]{0}', space=sflag, size = 0x4, scoped, tag = 'scoped memory for tpu_custom_call.1']
    #allocation7 [shape = 'u8[4096]{0}', space=vmem, size = 0x1000, scoped, tag = 'input window, operand 7, single buffered']
    #allocation8 [shape = 'u8[8192]{0}', space=vmem, size = 0x2000, scoped, tag = 'output window, operand 0']
    %22 = vsyncpa [#allocation3], 0
    %23 = vsyncpa [#allocation6], 0
    %24 = vsyncpa [#allocation4], 0
    %s25 = scalar_lea.sflag [#allocation4], 1
    %26 = vsyncpa %s25, 0
    loop: start=0, step=1, limit=4
    $region2: #{tpu_custom_call.1} parent=1 // loop_pre_header
      _
    $region3: #{tpu_custom_call.1} parent=1 // loop_header
      %s28 = sphi 0, %s32
      %p29 = scmp.ge.s32.totalorder %s28, 4
      %s38 = sphi 0, %s40
      %s41 = sphi 0, %s38
      %s42 = sphi 0, %s41
      %s58 = sphi 0, %s42
      %s62 = sphi 0, %s62
      %s64 = sphi 0, %s62
      %s65 = sphi 0, %s64
      %s79 = sphi 0, %s65
      %s83 = sphi 0, %s83
      %s85 = sphi 0, %s83
      %s86 = sphi 0, %s85
      %s100 = sphi 0, %s86
      %s104 = sphi 0, %s104
      %s106 = sphi 0, %s104
      %s107 = sphi 0, %s106
      %s121 = sphi 0, %s107
      %s125 = sphi 0, %s125
      %s127 = sphi 0, %s125
      %s128 = sphi 0, %s127
      %s142 = sphi 0, %s128
      %s146 = sphi 0, %s146
      %s148 = sphi 0, %s146
      %s149 = sphi 0, %s148
      %s163 = sphi 0, %s149
      %s167 = sphi 0, %s167
      %s169 = sphi 0, %s167
      %s170 = sphi 0, %s169
      %s184 = sphi 0, %s170
      %s188 = sphi 0, %s188
      %s190 = sphi 0, %s188
      %s191 = sphi 0, %s190
      %s205 = sphi 0, %s191
      %s209 = sphi 0, %s209
      %s211 = sphi 0, %s209
      %s212 = sphi 0, %s211
      %s226 = sphi 0, %s212
      %s230 = sphi 0, %s230
      %s232 = sphi 0, %s230
      %s233 = sphi 0, %s232
      %s247 = sphi 0, %s233
      %s251 = sphi 0, %s251
      %s253 = sphi 0, %s251
      %s254 = sphi 0, %s253
      %s268 = sphi 0, %s254
      %s272 = sphi 0, %s272
      %s274 = sphi 0, %s272
      %s275 = sphi 0, %s274
      %s289 = sphi 0, %s275
      %s293 = sphi 0, %s293
      %s295 = sphi 0, %s293
      %s296 = sphi 0, %s295
      %s310 = sphi 0, %s296
      %s314 = sphi 0, %s314
      %s316 = sphi 0, %s314
      %s317 = sphi 0, %s316
      %s331 = sphi 0, %s317
      %s335 = sphi 0, %s335
      %s337 = sphi 0, %s335
      %s338 = sphi 0, %s337
      %s352 = sphi 0, %s338
      %s356 = sphi 0, %s356
      %s358 = sphi 0, %s356
      %s359 = sphi 0, %s358
      %s373 = sphi 0, %s359
      %s377 = sphi 0, %s377
      %s379 = sphi 0, %s377
      %s380 = sphi 0, %s379
      %s394 = sphi 0, %s380
      %s400 = sphi 0, %s402
      %s403 = sphi 0, %s400
      %s404 = sphi 0, %s403
      %s420 = sphi 0, %s404
    $region4: #{tpu_custom_call.1} parent=1 // loop_header_branch
      %31 = sbr.rel (%p29) target = $region8
    $region5: #{tpu_custom_call.1} parent=1 // loop_body
      %s33 = ssub.s32 %s28, 1
      %s34 = ssub.s32 %s28, 2
      %s35 = sadd.s32 %s28, 1
      %s36 = ssub.s32 %s28, %s35
      %p37 = scmp.eq.s32.totalorder %s36, 0
      %s39 = sadd.s32 %s38, 1
      %s40 = scalar_select %p37, %s38, %s39
      %p43 = pneg %p37
      %p44 = scmp.eq.s32.totalorder %s28, 1
      %p45 = por %p43, %p44
      %p46 = scmp.ne.s32.totalorder %s38, %s41
      %p47 = scmp.eq.s32.totalorder %s28, 0
      %p48 = por %p46, %p47
      %p49 = scmp.ne.s32.totalorder %s38, %s41
      %p50 = scmp.eq.s32.totalorder %s33, 1
      %p51 = por %p49, %p50
      %p52 = scmp.ne.s32.totalorder %s41, %s42
      %p53 = scmp.eq.s32.totalorder %s33, 0
      %p54 = por %p52, %p53
      %p55 = scmp.ne.s32.totalorder %s41, %s42
      %p56 = scmp.eq.s32.totalorder %s34, 1
      %p57 = por %p55, %p56
      %p59 = scmp.ne.s32.totalorder %s42, %s58
      %p60 = scmp.eq.s32.totalorder %s34, 0
      %p61 = por %p59, %p60
      %s63 = sadd.s32 %s62, 1
      %p66 = scmp.eq.s32.totalorder %s28, 1
      %p67 = scmp.ne.s32.totalorder %s62, %s64
      %p68 = scmp.eq.s32.totalorder %s28, 0
      %p69 = por %p67, %p68
      %p70 = scmp.ne.s32.totalorder %s62, %s64
      %p71 = scmp.eq.s32.totalorder %s33, 1
      %p72 = por %p70, %p71
      %p73 = scmp.ne.s32.totalorder %s64, %s65
      %p74 = scmp.eq.s32.totalorder %s33, 0
      %p75 = por %p73, %p74
      %p76 = scmp.ne.s32.totalorder %s64, %s65
      %p77 = scmp.eq.s32.totalorder %s34, 1
      %p78 = por %p76, %p77
      %p80 = scmp.ne.s32.totalorder %s65, %s79
      %p81 = scmp.eq.s32.totalorder %s34, 0
      %p82 = por %p80, %p81
      %s84 = sadd.s32 %s83, 1
      %p87 = scmp.eq.s32.totalorder %s28, 1
      %p88 = scmp.ne.s32.totalorder %s83, %s85
      %p89 = scmp.eq.s32.totalorder %s28, 0
      %p90 = por %p88, %p89
      %p91 = scmp.ne.s32.totalorder %s83, %s85
      %p92 = scmp.eq.s32.totalorder %s33, 1
      %p93 = por %p91, %p92
      %p94 = scmp.ne.s32.totalorder %s85, %s86
      %p95 = scmp.eq.s32.totalorder %s33, 0
      %p96 = por %p94, %p95
      %p97 = scmp.ne.s32.totalorder %s85, %s86
      %p98 = scmp.eq.s32.totalorder %s34, 1
      %p99 = por %p97, %p98
      %p101 = scmp.ne.s32.totalorder %s86, %s100
      %p102 = scmp.eq.s32.totalorder %s34, 0
      %p103 = por %p101, %p102
      %s105 = sadd.s32 %s104, 1
      %p108 = scmp.eq.s32.totalorder %s28, 1
      %p109 = scmp.ne.s32.totalorder %s104, %s106
      %p110 = scmp.eq.s32.totalorder %s28, 0
      %p111 = por %p109, %p110
      %p112 = scmp.ne.s32.totalorder %s104, %s106
      %p113 = scmp.eq.s32.totalorder %s33, 1
      %p114 = por %p112, %p113
      %p115 = scmp.ne.s32.totalorder %s106, %s107
      %p116 = scmp.eq.s32.totalorder %s33, 0
      %p117 = por %p115, %p116
      %p118 = scmp.ne.s32.totalorder %s106, %s107
      %p119 = scmp.eq.s32.totalorder %s34, 1
      %p120 = por %p118, %p119
      %p122 = scmp.ne.s32.totalorder %s107, %s121
      %p123 = scmp.eq.s32.totalorder %s34, 0
      %p124 = por %p122, %p123
      %s126 = sadd.s32 %s125, 1
      %p129 = scmp.eq.s32.totalorder %s28, 1
      %p130 = scmp.ne.s32.totalorder %s125, %s127
      %p131 = scmp.eq.s32.totalorder %s28, 0
      %p132 = por %p130, %p131
      %p133 = scmp.ne.s32.totalorder %s125, %s127
      %p134 = scmp.eq.s32.totalorder %s33, 1
      %p135 = por %p133, %p134
      %p136 = scmp.ne.s32.totalorder %s127, %s128
      %p137 = scmp.eq.s32.totalorder %s33, 0
      %p138 = por %p136, %p137
      %p139 = scmp.ne.s32.totalorder %s127, %s128
      %p140 = scmp.eq.s32.totalorder %s34, 1
      %p141 = por %p139, %p140
      %p143 = scmp.ne.s32.totalorder %s128, %s142
      %p144 = scmp.eq.s32.totalorder %s34, 0
      %p145 = por %p143, %p144
      %s147 = sadd.s32 %s146, 1
      %p150 = scmp.eq.s32.totalorder %s28, 1
      %p151 = scmp.ne.s32.totalorder %s146, %s148
      %p152 = scmp.eq.s32.totalorder %s28, 0
      %p153 = por %p151, %p152
      %p154 = scmp.ne.s32.totalorder %s146, %s148
      %p155 = scmp.eq.s32.totalorder %s33, 1
      %p156 = por %p154, %p155
      %p157 = scmp.ne.s32.totalorder %s148, %s149
      %p158 = scmp.eq.s32.totalorder %s33, 0
      %p159 = por %p157, %p158
      %p160 = scmp.ne.s32.totalorder %s148, %s149
      %p161 = scmp.eq.s32.totalorder %s34, 1
      %p162 = por %p160, %p161
      %p164 = scmp.ne.s32.totalorder %s149, %s163
      %p165 = scmp.eq.s32.totalorder %s34, 0
      %p166 = por %p164, %p165
      %s168 = sadd.s32 %s167, 1
      %p171 = scmp.eq.s32.totalorder %s28, 1
      %p172 = scmp.ne.s32.totalorder %s167, %s169
      %p173 = scmp.eq.s32.totalorder %s28, 0
      %p174 = por %p172, %p173
      %p175 = scmp.ne.s32.totalorder %s167, %s169
      %p176 = scmp.eq.s32.totalorder %s33, 1
      %p177 = por %p175, %p176
      %p178 = scmp.ne.s32.totalorder %s169, %s170
      %p179 = scmp.eq.s32.totalorder %s33, 0
      %p180 = por %p178, %p179
      %p181 = scmp.ne.s32.totalorder %s169, %s170
      %p182 = scmp.eq.s32.totalorder %s34, 1
      %p183 = por %p181, %p182
      %p185 = scmp.ne.s32.totalorder %s170, %s184
      %p186 = scmp.eq.s32.totalorder %s34, 0
      %p187 = por %p185, %p186
      %s189 = sadd.s32 %s188, 1
      %p192 = scmp.eq.s32.totalorder %s28, 1
      %p193 = scmp.ne.s32.totalorder %s188, %s190
      %p194 = scmp.eq.s32.totalorder %s28, 0
      %p195 = por %p193, %p194
      %p196 = scmp.ne.s32.totalorder %s188, %s190
      %p197 = scmp.eq.s32.totalorder %s33, 1
      %p198 = por %p196, %p197
      %p199 = scmp.ne.s32.totalorder %s190, %s191
      %p200 = scmp.eq.s32.totalorder %s33, 0
      %p201 = por %p199, %p200
      %p202 = scmp.ne.s32.totalorder %s190, %s191
      %p203 = scmp.eq.s32.totalorder %s34, 1
      %p204 = por %p202, %p203
      %p206 = scmp.ne.s32.totalorder %s191, %s205
      %p207 = scmp.eq.s32.totalorder %s34, 0
      %p208 = por %p206, %p207
      %s210 = sadd.s32 %s209, 1
      %p213 = scmp.eq.s32.totalorder %s28, 1
      %p214 = scmp.ne.s32.totalorder %s209, %s211
      %p215 = scmp.eq.s32.totalorder %s28, 0
      %p216 = por %p214, %p215
      %p217 = scmp.ne.s32.totalorder %s209, %s211
      %p218 = scmp.eq.s32.totalorder %s33, 1
      %p219 = por %p217, %p218
      %p220 = scmp.ne.s32.totalorder %s211, %s212
      %p221 = scmp.eq.s32.totalorder %s33, 0
      %p222 = por %p220, %p221
      %p223 = scmp.ne.s32.totalorder %s211, %s212
      %p224 = scmp.eq.s32.totalorder %s34, 1
      %p225 = por %p223, %p224
      %p227 = scmp.ne.s32.totalorder %s212, %s226
      %p228 = scmp.eq.s32.totalorder %s34, 0
      %p229 = por %p227, %p228
      %s231 = sadd.s32 %s230, 1
      %p234 = scmp.eq.s32.totalorder %s28, 1
      %p235 = scmp.ne.s32.totalorder %s230, %s232
      %p236 = scmp.eq.s32.totalorder %s28, 0
      %p237 = por %p235, %p236
      %p238 = scmp.ne.s32.totalorder %s230, %s232
      %p239 = scmp.eq.s32.totalorder %s33, 1
      %p240 = por %p238, %p239
      %p241 = scmp.ne.s32.totalorder %s232, %s233
      %p242 = scmp.eq.s32.totalorder %s33, 0
      %p243 = por %p241, %p242
      %p244 = scmp.ne.s32.totalorder %s232, %s233
      %p245 = scmp.eq.s32.totalorder %s34, 1
      %p246 = por %p244, %p245
      %p248 = scmp.ne.s32.totalorder %s233, %s247
      %p249 = scmp.eq.s32.totalorder %s34, 0
      %p250 = por %p248, %p249
      %s252 = sadd.s32 %s251, 1
      %p255 = scmp.eq.s32.totalorder %s28, 1
      %p256 = scmp.ne.s32.totalorder %s251, %s253
      %p257 = scmp.eq.s32.totalorder %s28, 0
      %p258 = por %p256, %p257
      %p259 = scmp.ne.s32.totalorder %s251, %s253
      %p260 = scmp.eq.s32.totalorder %s33, 1
      %p261 = por %p259, %p260
      %p262 = scmp.ne.s32.totalorder %s253, %s254
      %p263 = scmp.eq.s32.totalorder %s33, 0
      %p264 = por %p262, %p263
      %p265 = scmp.ne.s32.totalorder %s253, %s254
      %p266 = scmp.eq.s32.totalorder %s34, 1
      %p267 = por %p265, %p266
      %p269 = scmp.ne.s32.totalorder %s254, %s268
      %p270 = scmp.eq.s32.totalorder %s34, 0
      %p271 = por %p269, %p270
      %s273 = sadd.s32 %s272, 1
      %p276 = scmp.eq.s32.totalorder %s28, 1
      %p277 = scmp.ne.s32.totalorder %s272, %s274
      %p278 = scmp.eq.s32.totalorder %s28, 0
      %p279 = por %p277, %p278
      %p280 = scmp.ne.s32.totalorder %s272, %s274
      %p281 = scmp.eq.s32.totalorder %s33, 1
      %p282 = por %p280, %p281
      %p283 = scmp.ne.s32.totalorder %s274, %s275
      %p284 = scmp.eq.s32.totalorder %s33, 0
      %p285 = por %p283, %p284
      %p286 = scmp.ne.s32.totalorder %s274, %s275
      %p287 = scmp.eq.s32.totalorder %s34, 1
      %p288 = por %p286, %p287
      %p290 = scmp.ne.s32.totalorder %s275, %s289
      %p291 = scmp.eq.s32.totalorder %s34, 0
      %p292 = por %p290, %p291
      %s294 = sadd.s32 %s293, 1
      %p297 = scmp.eq.s32.totalorder %s28, 1
      %p298 = scmp.ne.s32.totalorder %s293, %s295
      %p299 = scmp.eq.s32.totalorder %s28, 0
      %p300 = por %p298, %p299
      %p301 = scmp.ne.s32.totalorder %s293, %s295
      %p302 = scmp.eq.s32.totalorder %s33, 1
      %p303 = por %p301, %p302
      %p304 = scmp.ne.s32.totalorder %s295, %s296
      %p305 = scmp.eq.s32.totalorder %s33, 0
      %p306 = por %p304, %p305
      %p307 = scmp.ne.s32.totalorder %s295, %s296
      %p308 = scmp.eq.s32.totalorder %s34, 1
      %p309 = por %p307, %p308
      %p311 = scmp.ne.s32.totalorder %s296, %s310
      %p312 = scmp.eq.s32.totalorder %s34, 0
      %p313 = por %p311, %p312
      %s315 = sadd.s32 %s314, 1
      %p318 = scmp.eq.s32.totalorder %s28, 1
      %p319 = scmp.ne.s32.totalorder %s314, %s316
      %p320 = scmp.eq.s32.totalorder %s28, 0
      %p321 = por %p319, %p320
      %p322 = scmp.ne.s32.totalorder %s314, %s316
      %p323 = scmp.eq.s32.totalorder %s33, 1
      %p324 = por %p322, %p323
      %p325 = scmp.ne.s32.totalorder %s316, %s317
      %p326 = scmp.eq.s32.totalorder %s33, 0
      %p327 = por %p325, %p326
      %p328 = scmp.ne.s32.totalorder %s316, %s317
      %p329 = scmp.eq.s32.totalorder %s34, 1
      %p330 = por %p328, %p329
      %p332 = scmp.ne.s32.totalorder %s317, %s331
      %p333 = scmp.eq.s32.totalorder %s34, 0
      %p334 = por %p332, %p333
      %s336 = sadd.s32 %s335, 1
      %p339 = scmp.eq.s32.totalorder %s28, 1
      %p340 = scmp.ne.s32.totalorder %s335, %s337
      %p341 = scmp.eq.s32.totalorder %s28, 0
      %p342 = por %p340, %p341
      %p343 = scmp.ne.s32.totalorder %s335, %s337
      %p344 = scmp.eq.s32.totalorder %s33, 1
      %p345 = por %p343, %p344
      %p346 = scmp.ne.s32.totalorder %s337, %s338
      %p347 = scmp.eq.s32.totalorder %s33, 0
      %p348 = por %p346, %p347
      %p349 = scmp.ne.s32.totalorder %s337, %s338
      %p350 = scmp.eq.s32.totalorder %s34, 1
      %p351 = por %p349, %p350
      %p353 = scmp.ne.s32.totalorder %s338, %s352
      %p354 = scmp.eq.s32.totalorder %s34, 0
      %p355 = por %p353, %p354
      %s357 = sadd.s32 %s356, 1
      %p360 = scmp.eq.s32.totalorder %s28, 1
      %p361 = scmp.ne.s32.totalorder %s356, %s358
      %p362 = scmp.eq.s32.totalorder %s28, 0
      %p363 = por %p361, %p362
      %p364 = scmp.ne.s32.totalorder %s356, %s358
      %p365 = scmp.eq.s32.totalorder %s33, 1
      %p366 = por %p364, %p365
      %p367 = scmp.ne.s32.totalorder %s358, %s359
      %p368 = scmp.eq.s32.totalorder %s33, 0
      %p369 = por %p367, %p368
      %p370 = scmp.ne.s32.totalorder %s358, %s359
      %p371 = scmp.eq.s32.totalorder %s34, 1
      %p372 = por %p370, %p371
      %p374 = scmp.ne.s32.totalorder %s359, %s373
      %p375 = scmp.eq.s32.totalorder %s34, 0
      %p376 = por %p374, %p375
      %s378 = sadd.s32 %s377, 1
      %p381 = scmp.eq.s32.totalorder %s28, 1
      %p382 = scmp.ne.s32.totalorder %s377, %s379
      %p383 = scmp.eq.s32.totalorder %s28, 0
      %p384 = por %p382, %p383
      %p385 = scmp.ne.s32.totalorder %s377, %s379
      %p386 = scmp.eq.s32.totalorder %s33, 1
      %p387 = por %p385, %p386
      %p388 = scmp.ne.s32.totalorder %s379, %s380
      %p389 = scmp.eq.s32.totalorder %s33, 0
      %p390 = por %p388, %p389
      %p391 = scmp.ne.s32.totalorder %s379, %s380
      %p392 = scmp.eq.s32.totalorder %s34, 1
      %p393 = por %p391, %p392
      %p395 = scmp.ne.s32.totalorder %s380, %s394
      %p396 = scmp.eq.s32.totalorder %s34, 0
      %p397 = por %p395, %p396
      %s398 = ssub.s32 %s28, %s35
      %p399 = scmp.eq.s32.totalorder %s398, 0
      %s401 = sadd.s32 %s400, 1
      %s402 = scalar_select %p399, %s400, %s401
      %p405 = pneg %p399
      %p406 = scmp.eq.s32.totalorder %s28, 1
      %p407 = por %p405, %p406
      %p408 = scmp.ne.s32.totalorder %s400, %s403
      %p409 = scmp.eq.s32.totalorder %s28, 0
      %p410 = por %p408, %p409
      %p411 = scmp.ne.s32.totalorder %s400, %s403
      %p412 = scmp.eq.s32.totalorder %s33, 1
      %p413 = por %p411, %p412
      %p414 = scmp.ne.s32.totalorder %s403, %s404
      %p415 = scmp.eq.s32.totalorder %s33, 0
      %p416 = por %p414, %p415
      %p417 = scmp.ne.s32.totalorder %s403, %s404
      %p418 = scmp.eq.s32.totalorder %s34, 1
      %p419 = por %p417, %p418
      %p421 = scmp.ne.s32.totalorder %s404, %s420
      %p422 = scmp.eq.s32.totalorder %s34, 0
      %p423 = por %p421, %p422
      %p424 = scmp.le.s32.totalorder 1, %s28
      %p425 = scmp.lt.s32.totalorder %s28, 3
      %p426 = pnand %p424, %p425
      %p427 = pneg %p426
      // Predicated region
      $region9: #{tpu_custom_call.1} parent=5 // pred_check
        _
      $region10: #{tpu_custom_call.1} parent=5 // pred_check_branch
        %429 = sbr.rel (%p426) target = $region12
      $region11: #{tpu_custom_call.1} parent=5 // pred_region
        %s430 = ssub.s32 %s28, 1
        // Predicated region
        $region13: #{tpu_custom_call.1} parent=11 // pred_check
          %p431 = pneg %p75
        $region14: #{tpu_custom_call.1} parent=11 // pred_check_branch
          %433 = sbr.rel (%p431) target = $region16
        $region15: #{tpu_custom_call.1} parent=11 // pred_region
          _
        $region16: #{tpu_custom_call.1} parent=11 // pred_fallthru
          _
        // Predicated region
        $region17: #{tpu_custom_call.1} parent=11 // pred_check
          %p434 = pneg %p96
        $region18: #{tpu_custom_call.1} parent=11 // pred_check_branch
          %436 = sbr.rel (%p434) target = $region20
        $region19: #{tpu_custom_call.1} parent=11 // pred_region
          _
        $region20: #{tpu_custom_call.1} parent=11 // pred_fallthru
          _
        // Predicated region
        $region21: #{tpu_custom_call.1} parent=11 // pred_check
          %p437 = pneg %p117
        $region22: #{tpu_custom_call.1} parent=11 // pred_check_branch
          %439 = sbr.rel (%p437) target = $region24
        $region23: #{tpu_custom_call.1} parent=11 // pred_region
          %441 = vsyncadd [#allocation3], 0
          %s443 = sshll.u32 %s3, 4
          %s444 = int_to_ptr.hbm [resolvable:$true] %s443
          %s445 = sshll.u32 [#allocation2], 4
          %s446 = int_to_ptr.vmem [resolvable:$true] %s445
          %448 = dma.hbm_to_vmem [thread:$0]  %s444, 16, %s446, [#allocation3]
        $region24: #{tpu_custom_call.1} parent=11 // pred_fallthru
          _
        // Predicated region
        $region25: #{tpu_custom_call.1} parent=11 // pred_check
          %p449 = pneg %p138
        $region26: #{tpu_custom_call.1} parent=11 // pred_check_branch
          %451 = sbr.rel (%p449) target = $region28
        $region27: #{tpu_custom_call.1} parent=11 // pred_region
          %453 = vsyncadd [#allocation6], 0
          %s455 = sshll.u32 %s4, 4
          %s456 = int_to_ptr.hbm [resolvable:$true] %s455
          %s457 = sshll.u32 [#allocation5], 4
          %s458 = int_to_ptr.vmem [resolvable:$true] %s457
          %460 = dma.hbm_to_vmem [thread:$0]  %s456, 16, %s458, [#allocation6]
        $region28: #{tpu_custom_call.1} parent=11 // pred_fallthru
          _
        // Predicated region
        $region29: #{tpu_custom_call.1} parent=11 // pred_check
          %p461 = pneg %p159
        $region30: #{tpu_custom_call.1} parent=11 // pred_check_branch
          %463 = sbr.rel (%p461) target = $region32
        $region31: #{tpu_custom_call.1} parent=11 // pred_region
          _
        $region32: #{tpu_custom_call.1} parent=11 // pred_fallthru
          _
        // Predicated region
        $region33: #{tpu_custom_call.1} parent=11 // pred_check
          %p464 = pneg %p180
        $region34: #{tpu_custom_call.1} parent=11 // pred_check_branch
          %466 = sbr.rel (%p464) target = $region36
        $region35: #{tpu_custom_call.1} parent=11 // pred_region
          _
        $region36: #{tpu_custom_call.1} parent=11 // pred_fallthru
          _
        // Predicated region
        $region37: #{tpu_custom_call.1} parent=11 // pred_check
          %p467 = pneg %p201
        $region38: #{tpu_custom_call.1} parent=11 // pred_check_branch
          %469 = sbr.rel (%p467) target = $region40
        $region39: #{tpu_custom_call.1} parent=11 // pred_region
          %471 = vsyncadd [#allocation6], 0
          %s473 = sshll.u32 %s7, 4
          %s474 = int_to_ptr.hbm [resolvable:$true] %s473
          %s475 = sshll.u32 [#allocation7], 4
          %s476 = int_to_ptr.vmem [resolvable:$true] %s475
          %478 = dma.hbm_to_vmem [thread:$0]  %s474, 128, %s476, [#allocation6]
        $region40: #{tpu_custom_call.1} parent=11 // pred_fallthru
          _
        // Predicated region
        $region41: #{tpu_custom_call.1} parent=11 // pred_check
          %p479 = pneg %p222
        $region42: #{tpu_custom_call.1} parent=11 // pred_check_branch
          %481 = sbr.rel (%p479) target = $region44
        $region43: #{tpu_custom_call.1} parent=11 // pred_region
          _
        $region44: #{tpu_custom_call.1} parent=11 // pred_fallthru
          _
        // Predicated region
        $region45: #{tpu_custom_call.1} parent=11 // pred_check
          %p482 = pneg %p243
        $region46: #{tpu_custom_call.1} parent=11 // pred_check_branch
          %484 = sbr.rel (%p482) target = $region48
        $region47: #{tpu_custom_call.1} parent=11 // pred_region
          _
        $region48: #{tpu_custom_call.1} parent=11 // pred_fallthru
          _
        // Predicated region
        $region49: #{tpu_custom_call.1} parent=11 // pred_check
          %p485 = pneg %p264
        $region50: #{tpu_custom_call.1} parent=11 // pred_check_branch
          %487 = sbr.rel (%p485) target = $region52
        $region51: #{tpu_custom_call.1} parent=11 // pred_region
          _
        $region52: #{tpu_custom_call.1} parent=11 // pred_fallthru
          _
        // Predicated region
        $region53: #{tpu_custom_call.1} parent=11 // pred_check
          %p488 = pneg %p285
        $region54: #{tpu_custom_call.1} parent=11 // pred_check_branch
          %490 = sbr.rel (%p488) target = $region56
        $region55: #{tpu_custom_call.1} parent=11 // pred_region
          _
        $region56: #{tpu_custom_call.1} parent=11 // pred_fallthru
          _
        // Predicated region
        $region57: #{tpu_custom_call.1} parent=11 // pred_check
          %p491 = pneg %p306
        $region58: #{tpu_custom_call.1} parent=11 // pred_check_branch
          %493 = sbr.rel (%p491) target = $region60
        $region59: #{tpu_custom_call.1} parent=11 // pred_region
          _
        $region60: #{tpu_custom_call.1} parent=11 // pred_fallthru
          _
        // Predicated region
        $region61: #{tpu_custom_call.1} parent=11 // pred_check
          %p494 = pneg %p327
        $region62: #{tpu_custom_call.1} parent=11 // pred_check_branch
          %496 = sbr.rel (%p494) target = $region64
        $region63: #{tpu_custom_call.1} parent=11 // pred_region
          _
        $region64: #{tpu_custom_call.1} parent=11 // pred_fallthru
          _
        // Predicated region
        $region65: #{tpu_custom_call.1} parent=11 // pred_check
          %p497 = pneg %p348
        $region66: #{tpu_custom_call.1} parent=11 // pred_check_branch
          %499 = sbr.rel (%p497) target = $region68
        $region67: #{tpu_custom_call.1} parent=11 // pred_region
          _
        $region68: #{tpu_custom_call.1} parent=11 // pred_fallthru
          _
        // Predicated region
        $region69: #{tpu_custom_call.1} parent=11 // pred_check
          %p500 = pneg %p369
        $region70: #{tpu_custom_call.1} parent=11 // pred_check_branch
          %502 = sbr.rel (%p500) target = $region72
        $region71: #{tpu_custom_call.1} parent=11 // pred_region
          _
        $region72: #{tpu_custom_call.1} parent=11 // pred_fallthru
          _
        // Predicated region
        $region73: #{tpu_custom_call.1} parent=11 // pred_check
          %p503 = pneg %p390
        $region74: #{tpu_custom_call.1} parent=11 // pred_check_branch
          %505 = sbr.rel (%p503) target = $region76
        $region75: #{tpu_custom_call.1} parent=11 // pred_region
          _
        $region76: #{tpu_custom_call.1} parent=11 // pred_fallthru
          _
      $region12: #{tpu_custom_call.1} parent=5 // pred_fallthru
        _
      %p506 = scmp.lt.s32.totalorder %s28, 2
      // Predicated region
      $region77: #{tpu_custom_call.1} parent=5 // pred_check
        %p507 = pneg %p506
      $region78: #{tpu_custom_call.1} parent=5 // pred_check_branch
        %509 = sbr.rel (%p507) target = $region80
      $region79: #{tpu_custom_call.1} parent=5 // pred_region
        // Predicated region
        $region81: #{tpu_custom_call.1} parent=79 // pred_check
          %p510 = pneg %p48
        $region82: #{tpu_custom_call.1} parent=79 // pred_check_branch
          %512 = sbr.rel (%p510) target = $region84
        $region83: #{tpu_custom_call.1} parent=79 // pred_region
          %p513 = scmp.lt.s32.totalorder %s28, 1
          %s514 = scalar_select %p513, %s28, 1
          %s515 = smul.addr %s514, 4
          %s516 = scalar_lea.vmem %s0, %s515
        $region84: #{tpu_custom_call.1} parent=79 // pred_fallthru
          _
      $region80: #{tpu_custom_call.1} parent=5 // pred_fallthru
        _
      %p517 = scmp.le.s32.totalorder 1, %s28
      %p518 = scmp.lt.s32.totalorder %s28, 3
      %p519 = pnand %p517, %p518
      %p520 = pneg %p519
      // Predicated region
      $region85: #{tpu_custom_call.1} parent=5 // pred_check
        _
      $region86: #{tpu_custom_call.1} parent=5 // pred_check_branch
        %522 = sbr.rel (%p519) target = $region88
      $region87: #{tpu_custom_call.1} parent=5 // pred_region
        %s523 = ssub.s32 %s28, 1
        // Predicated region
        $region89: #{tpu_custom_call.1} parent=87 // pred_check
          %p524 = pneg %p117
        $region90: #{tpu_custom_call.1} parent=87 // pred_check_branch
          %526 = sbr.rel (%p524) target = $region92
        $region91: #{tpu_custom_call.1} parent=87 // pred_region
          %528 = dma.done [#allocation3], 16
        $region92: #{tpu_custom_call.1} parent=87 // pred_fallthru
          _
        // Predicated region
        $region93: #{tpu_custom_call.1} parent=87 // pred_check
          %p529 = pneg %p138
        $region94: #{tpu_custom_call.1} parent=87 // pred_check_branch
          %531 = sbr.rel (%p529) target = $region96
        $region95: #{tpu_custom_call.1} parent=87 // pred_region
          %533 = dma.done [#allocation6], 16
        $region96: #{tpu_custom_call.1} parent=87 // pred_fallthru
          _
        // Predicated region
        $region97: #{tpu_custom_call.1} parent=87 // pred_check
          %p534 = pneg %p201
        $region98: #{tpu_custom_call.1} parent=87 // pred_check_branch
          %536 = sbr.rel (%p534) target = $region100
        $region99: #{tpu_custom_call.1} parent=87 // pred_region
          %538 = dma.done [#allocation6], 128
        $region100: #{tpu_custom_call.1} parent=87 // pred_fallthru
          _
        %p539 = scmp.lt.s32.totalorder %s33, 1
        %s540 = scalar_select %p539, %s33, 1
        %s541 = smul.addr %s540, 4
        %s542 = scalar_lea.vmem %s0, %s541
        %p543 = pneg %p54
        %p544 = pneg %p51
        %p545 = pneg %p75
        %p546 = pneg %p72
        %p547 = pneg %p96
        %p548 = pneg %p93
        %p549 = pneg %p117
        %p550 = pneg %p114
        %p551 = pneg %p138
        %p552 = pneg %p135
        %p553 = pneg %p159
        %p554 = pneg %p156
        %p555 = pneg %p180
        %p556 = pneg %p177
        %p557 = pneg %p201
        %p558 = pneg %p198
        %p559 = pneg %p222
        %p560 = pneg %p219
        %p561 = pneg %p243
        %p562 = pneg %p240
        %p563 = pneg %p264
        %p564 = pneg %p261
        %p565 = pneg %p285
        %p566 = pneg %p282
        %p567 = pneg %p306
        %p568 = pneg %p303
        %p569 = pneg %p327
        %p570 = pneg %p324
        %p571 = pneg %p348
        %p572 = pneg %p345
        %p573 = pneg %p369
        %p574 = pneg %p366
        %p575 = pneg %p390
        %p576 = pneg %p387
        %p577 = pneg %p416
        %p578 = pneg %p413
        %s579 = sand.u32 %s403, 1
        %s580 = scalar_lea.sflag [#allocation4], %s579
        %s581 = sand.u32 %s403, 1
        %s582 = smul.addr %s581, 8
        %s583 = scalar_lea.vmem [#allocation8], %s582
        %p584 = scmp.lt.s32.totalorder %s33, 1
        %s585 = scalar_select %p584, %s33, 1
        %s586 = smul.addr %s585, 4
        %s587 = scalar_lea.vmem %s0, %s586
        %v589 = vld [vmem:[%s587] sm:$0xf]
        %v590 = vunpack.c.l.bf16 %v589
        loop: start=0, step=1, limit=2
        $region101: #{tpu_custom_call.1} parent=87 // loop_pre_header
          _
        $region102: #{tpu_custom_call.1} parent=87 // loop_header
          %s592 = sphi 0, %s596
          %p593 = scmp.ge.s32.totalorder %s592, 2
          %v597 = vphi %v590, %v1315
        $region103: #{tpu_custom_call.1} parent=87 // loop_header_branch
          %595 = sbr.rel (%p593) target = $region107
        $region104: #{tpu_custom_call.1} parent=87 // loop_body
          %v598 = vpack.c.bf16 %v597, %v597
          %v599 = vld [vmem:[%s1] sm:$0xf]
          %v600 = vld [vmem:[%s1 + $0x4] sm:$0xf]
          %v601 = vld [vmem:[%s1 + $0x8] sm:$0xf]
          %v602 = vld [vmem:[%s1 + $0xc] sm:$0xf]
          %v607 = vunpack.c.l.b16 %v599
          %v608 = vunpack.c.l.b16 %v600
          %v609 = vunpack.c.l.b16 %v601
          %v610 = vunpack.c.l.b16 %v602
          %v611 = vpack.c.b16 %v608, %v607
          %v612 = vpack.c.b16 %v610, %v609
          %vm615 = vcmask 261120
          %v617 = vsel %vm615, %v598, 0
          %619 = vmatpush.bf16.msra.mxu0 0
          %620 = vmatpush.bf16.msra.mxu0 0
          %621 = vmatpush.bf16.msra.mxu0 0
          %622 = vmatpush.bf16.msra.mxu0 0
          %623 = vmatpush.bf16.msra.mxu0 0
          %624 = vmatpush.bf16.msra.mxu0 0
          %625 = vmatpush.bf16.msra.mxu0 %v612
          %626 = vmatpush.bf16.msra.mxu0 %v611
          %627 = vmatmul.bf16.gmra.mxu0 %v617
          %v628 = vpop.f32.mrf.mxu0
          %v629 = vadd.f32 0.0, %v628
          %v630 = vpop.f32.mrf.mxu0
          %631 = vdwg.mxu0
          %v632 = vpack.c.bf16 %v629, %v629
          %v633 = vld [vmem:[#allocation2] sm:$0x1]
          %v635 = vperm.slane %v633, 0
          %v637 = vadd.f32 %v629, %v635
          %v638 = vpack.c.bf16 %v637, %v637
          %v639 = vld [vmem:[#allocation5] sm:$0x1]
          %v641 = vperm.slane %v639, 0
          %v643 = vadd.f32 %v629, %v641
          %v644 = vpack.c.bf16 %v643, %v643
          %v645 = vld [vmem:[%s5] sm:$0xf]
          %vm646 = vcmask 64512
          %v648 = vsel %vm646, %v644, 0
          %vm650 = vcmask 1043456
          %v652 = vsel %vm650, %v645, 0
          %654 = vmatpush.bf16.msra.mxu0 0
          %655 = vmatpush.bf16.msra.mxu0 0
          %656 = vmatpush.bf16.msra.mxu0 0
          %657 = vmatpush.bf16.msra.mxu0 0
          %658 = vmatpush.bf16.msra.mxu0 0
          %659 = vmatpush.bf16.msra.mxu0 0
          %660 = vmatpush.bf16.msra.mxu0 0
          %661 = vmatpush.bf16.msra.mxu0 %v652
          %662 = vmatmul.bf16.gmra.mxu0 %v648
          %v663 = vpop.f32.mrf.mxu0
          %v664 = vadd.f32 0.0, %v663
          %v665 = vpop.f32.mrf.mxu0
          %666 = vdwg.mxu0
          %v667 = vld [vmem:[%s6] sm:$0xff]
          %v668 = vmul.f32 %v664, %v667
          %v669 = vld [vmem:[#allocation7] sm:$0xff]
          %671 = vrot.lane.b32.xlu0 %v669, 32
          %v672 = vpop.permute.xlu0 %671
          %v674 = vmul.f32 %v664, %v672
          %676 = vrot.lane.b32.xlu0 %v674, 96
          %v677 = vpop.permute.xlu0 %676
          %v679 = vadd.f32 %v668, %v677
          %v680 = vpack.c.bf16 %v679, %v679
          %v681 = vld [vmem:[%s8] sm:$0xf]
          %v683 = vsel %vm615, %v680, 0
          %v686 = vsel %vm615, %v681, 0
          %688 = vmatpush.bf16.xpose.msra.mxu0 0
          %689 = vmatpush.bf16.xpose.msra.mxu0 0
          %690 = vmatpush.bf16.xpose.msra.mxu0 0
          %691 = vmatpush.bf16.xpose.msra.mxu0 0
          %692 = vmatpush.bf16.xpose.msra.mxu0 0
          %693 = vmatpush.bf16.xpose.msra.mxu0 0
          %694 = vmatpush.bf16.xpose.msra.mxu0 0
          %695 = vmatpush.bf16.xpose.msra.mxu0 %v686
          %696 = vmatmul.bf16.gmra.mxu0 %v683
          %v697 = vpop.f32.mrf.mxu0
          %v698 = vadd.f32 0.0, %v697
          %v699 = vpop.f32.mrf.mxu0
          %700 = vdwg.mxu0
          %v702 = vunpack.c.l.b16 %v632
          %v703 = vpack.c.b16 %v702, %v702
          %704 = vrot.lane.b32.xlu0 %v703, 96
          %v705 = vpop.permute.xlu0 %704
          %v707 = vsel %vm646, %v638, 0
          %v710 = vsel %vm646, %v705, 0
          %712 = vmatpush.bf16.xpose.msra.mxu0 0
          %713 = vmatpush.bf16.xpose.msra.mxu0 0
          %714 = vmatpush.bf16.xpose.msra.mxu0 0
          %715 = vmatpush.bf16.xpose.msra.mxu0 0
          %716 = vmatpush.bf16.xpose.msra.mxu0 0
          %717 = vmatpush.bf16.xpose.msra.mxu0 0
          %718 = vmatpush.bf16.xpose.msra.mxu0 0
          %719 = vmatpush.bf16.xpose.msra.mxu0 %v710
          %720 = vmatmul.bf16.gmra.mxu0 %v707
          %v721 = vpop.f32.mrf.mxu0
          %v722 = vadd.f32 %v698, %v721
          %v723 = vpop.f32.mrf.mxu0
          %724 = vdwg.mxu0
          %v725 = vsel %vm646, %v722, -inf
          %726 = vmax.xlane.f32.xlu0 %v725
          %v727 = vpop.xlane.xlu0 %726
          %v728 = vsub.f32 %v722, %v727
          %v729 = vmul.f32 %v728, 1.442695
          %v730 = vpow.pop %v729
          %v731 = vsel %vm646, %v730, 0.0
          %732 = vadd.xlane.f32.xlu0 %v731
          %v733 = vpop.xlane.xlu0 %732
          %v734 = vrcp.pop %v733
          %v735 = vmul.f32 %v730, %v734
          %v736 = vpack.c.bf16 %v735, %v735
          %737 = vrot.lane.b32.xlu0 %v703, 64
          %v738 = vpop.permute.xlu0 %737
          %v740 = vsel %vm646, %v736, 0
          %v743 = vsel %vm650, %v738, 0
          %745 = vmatpush.bf16.msra.mxu0 0
          %746 = vmatpush.bf16.msra.mxu0 0
          %747 = vmatpush.bf16.msra.mxu0 0
          %748 = vmatpush.bf16.msra.mxu0 0
          %749 = vmatpush.bf16.msra.mxu0 0
          %750 = vmatpush.bf16.msra.mxu0 0
          %751 = vmatpush.bf16.msra.mxu0 0
          %752 = vmatpush.bf16.msra.mxu0 %v743
          %753 = vmatmul.bf16.gmra.mxu0 %v740
          %v754 = vpop.f32.mrf.mxu0
          %v755 = vadd.f32 0.0, %v754
          %v756 = vpop.f32.mrf.mxu0
          %757 = vdwg.mxu0
          %s758 = scalar_lea.vmem %s5, 4
          %v759 = vld [vmem:[%s758] sm:$0xf]
          %v761 = vunpack.c.l.b16 %v644
          %v762 = vpack.c.b16 %v761, %v761
          %763 = vrot.lane.b32.xlu0 %v762, 120
          %v764 = vpop.permute.xlu0 %763
          %v766 = vsel %vm646, %v764, 0
          %v769 = vsel %vm650, %v759, 0
          %771 = vmatpush.bf16.msra.mxu0 0
          %772 = vmatpush.bf16.msra.mxu0 0
          %773 = vmatpush.bf16.msra.mxu0 0
          %774 = vmatpush.bf16.msra.mxu0 0
          %775 = vmatpush.bf16.msra.mxu0 0
          %776 = vmatpush.bf16.msra.mxu0 0
          %777 = vmatpush.bf16.msra.mxu0 0
          %778 = vmatpush.bf16.msra.mxu0 %v769
          %779 = vmatmul.bf16.gmra.mxu0 %v766
          %v780 = vpop.f32.mrf.mxu0
          %v781 = vadd.f32 0.0, %v780
          %v782 = vpop.f32.mrf.mxu0
          %783 = vdwg.mxu0
          %v784 = vmul.f32 %v781, %v667
          %v785 = vmul.f32 %v781, %v672
          %787 = vrot.lane.b32.xlu0 %v785, 96
          %v788 = vpop.permute.xlu0 %787
          %v790 = vadd.f32 %v784, %v788
          %v791 = vpack.c.bf16 %v790, %v790
          %v793 = vsel %vm615, %v791, 0
          %795 = vmatpush.bf16.xpose.msra.mxu0 0
          %796 = vmatpush.bf16.xpose.msra.mxu0 0
          %797 = vmatpush.bf16.xpose.msra.mxu0 0
          %798 = vmatpush.bf16.xpose.msra.mxu0 0
          %799 = vmatpush.bf16.xpose.msra.mxu0 0
          %800 = vmatpush.bf16.xpose.msra.mxu0 0
          %801 = vmatpush.bf16.xpose.msra.mxu0 0
          %802 = vmatpush.bf16.xpose.msra.mxu0 %v686
          %803 = vmatmul.bf16.gmra.mxu0 %v793
          %v804 = vpop.f32.mrf.mxu0
          %v805 = vadd.f32 0.0, %v804
          %v806 = vpop.f32.mrf.mxu0
          %807 = vdwg.mxu0
          %v809 = vunpack.c.l.b16 %v638
          %v810 = vpack.c.b16 %v809, %v809
          %811 = vrot.lane.b32.xlu0 %v810, 120
          %v812 = vpop.permute.xlu0 %811
          %813 = vrot.lane.b32.xlu0 %v703, 88
          %v814 = vpop.permute.xlu0 %813
          %v816 = vsel %vm646, %v812, 0
          %v819 = vsel %vm646, %v814, 0
          %821 = vmatpush.bf16.xpose.msra.mxu0 0
          %822 = vmatpush.bf16.xpose.msra.mxu0 0
          %823 = vmatpush.bf16.xpose.msra.mxu0 0
          %824 = vmatpush.bf16.xpose.msra.mxu0 0
          %825 = vmatpush.bf16.xpose.msra.mxu0 0
          %826 = vmatpush.bf16.xpose.msra.mxu0 0
          %827 = vmatpush.bf16.xpose.msra.mxu0 0
          %828 = vmatpush.bf16.xpose.msra.mxu0 %v819
          %829 = vmatmul.bf16.gmra.mxu0 %v816
          %v830 = vpop.f32.mrf.mxu0
          %v831 = vadd.f32 %v805, %v830
          %v832 = vpop.f32.mrf.mxu0
          %833 = vdwg.mxu0
          %v834 = vsel %vm646, %v831, -inf
          %835 = vmax.xlane.f32.xlu0 %v834
          %v836 = vpop.xlane.xlu0 %835
          %v837 = vsub.f32 %v831, %v836
          %v838 = vmul.f32 %v837, 1.442695
          %v839 = vpow.pop %v838
          %v840 = vsel %vm646, %v839, 0.0
          %841 = vadd.xlane.f32.xlu0 %v840
          %v842 = vpop.xlane.xlu0 %841
          %v843 = vrcp.pop %v842
          %v844 = vmul.f32 %v839, %v843
          %v845 = vpack.c.bf16 %v844, %v844
          %846 = vrot.lane.b32.xlu0 %v703, 56
          %v847 = vpop.permute.xlu0 %846
          %v849 = vsel %vm646, %v845, 0
          %v852 = vsel %vm650, %v847, 0
          %854 = vmatpush.bf16.msra.mxu0 0
          %855 = vmatpush.bf16.msra.mxu0 0
          %856 = vmatpush.bf16.msra.mxu0 0
          %857 = vmatpush.bf16.msra.mxu0 0
          %858 = vmatpush.bf16.msra.mxu0 0
          %859 = vmatpush.bf16.msra.mxu0 0
          %860 = vmatpush.bf16.msra.mxu0 0
          %861 = vmatpush.bf16.msra.mxu0 %v852
          %862 = vmatmul.bf16.gmra.mxu0 %v849
          %v863 = vpop.f32.mrf.mxu0
          %v864 = vadd.f32 0.0, %v863
          %v865 = vpop.f32.mrf.mxu0
          %866 = vdwg.mxu0
          %s867 = scalar_lea.vmem %s5, 8
          %v868 = vld [vmem:[%s867] sm:$0xf]
          %869 = vrot.lane.b32.xlu0 %v762, 112
          %v870 = vpop.permute.xlu0 %869
          %v872 = vsel %vm646, %v870, 0
          %v875 = vsel %vm650, %v868, 0
          %877 = vmatpush.bf16.msra.mxu0 0
          %878 = vmatpush.bf16.msra.mxu0 0
          %879 = vmatpush.bf16.msra.mxu0 0
          %880 = vmatpush.bf16.msra.mxu0 0
          %881 = vmatpush.bf16.msra.mxu0 0
          %882 = vmatpush.bf16.msra.mxu0 0
          %883 = vmatpush.bf16.msra.mxu0 0
          %884 = vmatpush.bf16.msra.mxu0 %v875
          %885 = vmatmul.bf16.gmra.mxu0 %v872
          %v886 = vpop.f32.mrf.mxu0
          %v887 = vadd.f32 0.0, %v886
          %v888 = vpop.f32.mrf.mxu0
          %889 = vdwg.mxu0
          %v890 = vmul.f32 %v887, %v667
          %v891 = vmul.f32 %v887, %v672
          %893 = vrot.lane.b32.xlu0 %v891, 96
          %v894 = vpop.permute.xlu0 %893
          %v896 = vadd.f32 %v890, %v894
          %v897 = vpack.c.bf16 %v896, %v896
          %v899 = vsel %vm615, %v897, 0
          %901 = vmatpush.bf16.xpose.msra.mxu0 0
          %902 = vmatpush.bf16.xpose.msra.mxu0 0
          %903 = vmatpush.bf16.xpose.msra.mxu0 0
          %904 = vmatpush.bf16.xpose.msra.mxu0 0
          %905 = vmatpush.bf16.xpose.msra.mxu0 0
          %906 = vmatpush.bf16.xpose.msra.mxu0 0
          %907 = vmatpush.bf16.xpose.msra.mxu0 0
          %908 = vmatpush.bf16.xpose.msra.mxu0 %v686
          %909 = vmatmul.bf16.gmra.mxu0 %v899
          %v910 = vpop.f32.mrf.mxu0
          %v911 = vadd.f32 0.0, %v910
          %v912 = vpop.f32.mrf.mxu0
          %913 = vdwg.mxu0
          %914 = vrot.lane.b32.xlu0 %v810, 112
          %v915 = vpop.permute.xlu0 %914
          %916 = vrot.lane.b32.xlu0 %v703, 80
          %v917 = vpop.permute.xlu0 %916
          %v919 = vsel %vm646, %v915, 0
          %v922 = vsel %vm646, %v917, 0
          %924 = vmatpush.bf16.xpose.msra.mxu0 0
          %925 = vmatpush.bf16.xpose.msra.mxu0 0
          %926 = vmatpush.bf16.xpose.msra.mxu0 0
          %927 = vmatpush.bf16.xpose.msra.mxu0 0
          %928 = vmatpush.bf16.xpose.msra.mxu0 0
          %929 = vmatpush.bf16.xpose.msra.mxu0 0
          %930 = vmatpush.bf16.xpose.msra.mxu0 0
          %931 = vmatpush.bf16.xpose.msra.mxu0 %v922
          %932 = vmatmul.bf16.gmra.mxu0 %v919
          %v933 = vpop.f32.mrf.mxu0
          %v934 = vadd.f32 %v911, %v933
          %v935 = vpop.f32.mrf.mxu0
          %936 = vdwg.mxu0
          %v937 = vsel %vm646, %v934, -inf
          %938 = vmax.xlane.f32.xlu0 %v937
          %v939 = vpop.xlane.xlu0 %938
          %v940 = vsub.f32 %v934, %v939
          %v941 = vmul.f32 %v940, 1.442695
          %v942 = vpow.pop %v941
          %v943 = vsel %vm646, %v942, 0.0
          %944 = vadd.xlane.f32.xlu0 %v943
          %v945 = vpop.xlane.xlu0 %944
          %v946 = vrcp.pop %v945
          %v947 = vmul.f32 %v942, %v946
          %v948 = vpack.c.bf16 %v947, %v947
          %949 = vrot.lane.b32.xlu0 %v703, 48
          %v950 = vpop.permute.xlu0 %949
          %v952 = vsel %vm646, %v948, 0
          %v955 = vsel %vm650, %v950, 0
          %957 = vmatpush.bf16.msra.mxu0 0
          %958 = vmatpush.bf16.msra.mxu0 0
          %959 = vmatpush.bf16.msra.mxu0 0
          %960 = vmatpush.bf16.msra.mxu0 0
          %961 = vmatpush.bf16.msra.mxu0 0
          %962 = vmatpush.bf16.msra.mxu0 0
          %963 = vmatpush.bf16.msra.mxu0 0
          %964 = vmatpush.bf16.msra.mxu0 %v955
          %965 = vmatmul.bf16.gmra.mxu0 %v952
          %v966 = vpop.f32.mrf.mxu0
          %v967 = vadd.f32 0.0, %v966
          %v968 = vpop.f32.mrf.mxu0
          %969 = vdwg.mxu0
          %s970 = scalar_lea.vmem %s5, 12
          %v971 = vld [vmem:[%s970] sm:$0xf]
          %972 = vrot.lane.b32.xlu0 %v762, 104
          %v973 = vpop.permute.xlu0 %972
          %v975 = vsel %vm646, %v973, 0
          %v978 = vsel %vm650, %v971, 0
          %980 = vmatpush.bf16.msra.mxu0 0
          %981 = vmatpush.bf16.msra.mxu0 0
          %982 = vmatpush.bf16.msra.mxu0 0
          %983 = vmatpush.bf16.msra.mxu0 0
          %984 = vmatpush.bf16.msra.mxu0 0
          %985 = vmatpush.bf16.msra.mxu0 0
          %986 = vmatpush.bf16.msra.mxu0 0
          %987 = vmatpush.bf16.msra.mxu0 %v978
          %988 = vmatmul.bf16.gmra.mxu0 %v975
          %v989 = vpop.f32.mrf.mxu0
          %v990 = vadd.f32 0.0, %v989
          %v991 = vpop.f32.mrf.mxu0
          %992 = vdwg.mxu0
          %v993 = vmul.f32 %v990, %v667
          %v994 = vmul.f32 %v990, %v672
          %996 = vrot.lane.b32.xlu0 %v994, 96
          %v997 = vpop.permute.xlu0 %996
          %v999 = vadd.f32 %v993, %v997
          %v1000 = vpack.c.bf16 %v999, %v999
          %v1002 = vsel %vm615, %v1000, 0
          %1004 = vmatpush.bf16.xpose.msra.mxu0 0
          %1005 = vmatpush.bf16.xpose.msra.mxu0 0
          %1006 = vmatpush.bf16.xpose.msra.mxu0 0
          %1007 = vmatpush.bf16.xpose.msra.mxu0 0
          %1008 = vmatpush.bf16.xpose.msra.mxu0 0
          %1009 = vmatpush.bf16.xpose.msra.mxu0 0
          %1010 = vmatpush.bf16.xpose.msra.mxu0 0
          %1011 = vmatpush.bf16.xpose.msra.mxu0 %v686
          %1012 = vmatmul.bf16.gmra.mxu0 %v1002
          %v1013 = vpop.f32.mrf.mxu0
          %v1014 = vadd.f32 0.0, %v1013
          %v1015 = vpop.f32.mrf.mxu0
          %1016 = vdwg.mxu0
          %1017 = vrot.lane.b32.xlu0 %v810, 104
          %v1018 = vpop.permute.xlu0 %1017
          %1019 = vrot.lane.b32.xlu0 %v703, 72
          %v1020 = vpop.permute.xlu0 %1019
          %v1022 = vsel %vm646, %v1018, 0
          %v1025 = vsel %vm646, %v1020, 0
          %1027 = vmatpush.bf16.xpose.msra.mxu0 0
          %1028 = vmatpush.bf16.xpose.msra.mxu0 0
          %1029 = vmatpush.bf16.xpose.msra.mxu0 0
          %1030 = vmatpush.bf16.xpose.msra.mxu0 0
          %1031 = vmatpush.bf16.xpose.msra.mxu0 0
          %1032 = vmatpush.bf16.xpose.msra.mxu0 0
          %1033 = vmatpush.bf16.xpose.msra.mxu0 0
          %1034 = vmatpush.bf16.xpose.msra.mxu0 %v1025
          %1035 = vmatmul.bf16.gmra.mxu0 %v1022
          %v1036 = vpop.f32.mrf.mxu0
          %v1037 = vadd.f32 %v1014, %v1036
          %v1038 = vpop.f32.mrf.mxu0
          %1039 = vdwg.mxu0
          %v1040 = vsel %vm646, %v1037, -inf
          %1041 = vmax.xlane.f32.xlu0 %v1040
          %v1042 = vpop.xlane.xlu0 %1041
          %v1043 = vsub.f32 %v1037, %v1042
          %v1044 = vmul.f32 %v1043, 1.442695
          %v1045 = vpow.pop %v1044
          %v1046 = vsel %vm646, %v1045, 0.0
          %1047 = vadd.xlane.f32.xlu0 %v1046
          %v1048 = vpop.xlane.xlu0 %1047
          %v1049 = vrcp.pop %v1048
          %v1050 = vmul.f32 %v1045, %v1049
          %v1051 = vpack.c.bf16 %v1050, %v1050
          %1052 = vrot.lane.b32.xlu0 %v703, 40
          %v1053 = vpop.permute.xlu0 %1052
          %v1055 = vsel %vm646, %v1051, 0
          %v1058 = vsel %vm650, %v1053, 0
          %1060 = vmatpush.bf16.msra.mxu0 0
          %1061 = vmatpush.bf16.msra.mxu0 0
          %1062 = vmatpush.bf16.msra.mxu0 0
          %1063 = vmatpush.bf16.msra.mxu0 0
          %1064 = vmatpush.bf16.msra.mxu0 0
          %1065 = vmatpush.bf16.msra.mxu0 0
          %1066 = vmatpush.bf16.msra.mxu0 0
          %1067 = vmatpush.bf16.msra.mxu0 %v1058
          %1068 = vmatmul.bf16.gmra.mxu0 %v1055
          %v1069 = vpop.f32.mrf.mxu0
          %v1070 = vadd.f32 0.0, %v1069
          %v1071 = vpop.f32.mrf.mxu0
          %1072 = vdwg.mxu0
          %1074 = vrot.lane.b32.xlu0 %v864, 8
          %v1075 = vpop.permute.xlu0 %1074
          %1078 = vrot.lane.b32.xlu0 %v967, 16
          %v1079 = vpop.permute.xlu0 %1078
          %1082 = vrot.lane.b32.xlu0 %v1070, 24
          %v1083 = vpop.permute.xlu0 %1082
          %v1085 = vsel %vm646, %v755, %v1075
          %vm1086 = vcmask 130048
          %v1087 = vsel %vm1086, %v1085, %v1079
          %vm1088 = vcmask 195584
          %v1089 = vsel %vm1088, %v1087, %v1083
          %v1090 = vpack.c.bf16 %v1089, %v1089
          %v1091 = vld [vmem:[%s2] sm:$0xf]
          %v1092 = vld [vmem:[%s2 + $0x4] sm:$0xf]
          %v1093 = vld [vmem:[%s2 + $0x8] sm:$0xf]
          %v1094 = vld [vmem:[%s2 + $0xc] sm:$0xf]
          %v1099 = vunpack.c.l.b16 %v1091
          %v1100 = vunpack.c.l.b16 %v1092
          %v1101 = vunpack.c.l.b16 %v1093
          %v1102 = vunpack.c.l.b16 %v1094
          %v1103 = vpack.c.b16 %v1100, %v1099
          %v1104 = vpack.c.b16 %v1102, %v1101
          %v1108 = vsel %vm615, %v1090, 0
          %1110 = vmatpush.bf16.msra.mxu0 0
          %1111 = vmatpush.bf16.msra.mxu0 0
          %1112 = vmatpush.bf16.msra.mxu0 0
          %1113 = vmatpush.bf16.msra.mxu0 0
          %1114 = vmatpush.bf16.msra.mxu0 0
          %1115 = vmatpush.bf16.msra.mxu0 0
          %1116 = vmatpush.bf16.msra.mxu0 %v1104
          %1117 = vmatpush.bf16.msra.mxu0 %v1103
          %1118 = vmatmul.bf16.gmra.mxu0 %v1108
          %v1119 = vpop.f32.mrf.mxu0
          %v1120 = vadd.f32 0.0, %v1119
          %v1121 = vpop.f32.mrf.mxu0
          %1122 = vdwg.mxu0
          %v1123 = vadd.f32 %v597, %v1120
          %v1124 = vld [vmem:[%s9] sm:$0x1]
          %v1125 = vld [vmem:[%s10] sm:$0x1]
          %v1126 = vsel %vm615, %v1123, 0.0
          %1127 = vadd.xlane.f32.xlu0 %v1126
          %v1128 = vpop.xlane.xlu0 %1127
          %v1129 = vrcp.pop 32.0
          %v1130 = vmul.f32 32.0, %v1129
          %v1131 = vsub.f32 1.0, %v1130
          %v1132 = vmul.f32 %v1129, %v1131
          %v1133 = vadd.f32 %v1129, %v1132
          %vm1134 = vweird.f32 %v1129
          %v1135 = vsel %vm1134, %v1129, %v1133
          %v1136 = vmul.f32 %v1128, %v1135
          %v1137 = vsub.f32 %v1123, %v1136
          %v1138 = vmul.f32 %v1137, %v1137
          %v1139 = vsel %vm615, %v1138, 0.0
          %1140 = vadd.xlane.f32.xlu0 %v1139
          %v1141 = vpop.xlane.xlu0 %1140
          %v1142 = vmul.f32 %v1141, %v1135
          %v1143 = vadd.f32 %v1142, 1e-05
          %v1144 = vrsqrt.pop %v1143
          %v1145 = vmul.f32 %v1144, %v1143
          %v1146 = vmul.f32 %v1145, %v1144
          %v1147 = vmul.f32 0.5, %v1146
          %v1148 = vsub.f32 1.5, %v1147
          %v1149 = vmul.f32 %v1144, %v1148
          %vm1150 = vweird.f32 %v1143
          %vm1151 = vweird.f32 %v1144
          %vm1152 = vmor %vm1150, %vm1151
          %v1153 = vsel %vm1152, %v1144, %v1149
          %v1154 = vmul.f32 %v1137, %v1153
          %v1156 = vperm.slane %v1124, 0
          %v1158 = vmul.f32 %v1154, %v1156
          %v1160 = vperm.slane %v1125, 0
          %v1162 = vadd.f32 %v1158, %v1160
          %v1163 = vpack.c.bf16 %v1162, %v1162
          %v1164 = vld [vmem:[%s11] sm:$0xf]
          %v1165 = vld [vmem:[%s11 + $0x4] sm:$0xf]
          %v1166 = vld [vmem:[%s11 + $0x8] sm:$0xf]
          %v1167 = vld [vmem:[%s11 + $0xc] sm:$0xf]
          %v1168 = vld [vmem:[%s12] sm:$0x1]
          %v1170 = vperm.slane %v1168, 0
          %v1176 = vunpack.c.l.b16 %v1164
          %v1177 = vunpack.c.l.b16 %v1165
          %v1178 = vunpack.c.l.b16 %v1166
          %v1179 = vunpack.c.l.b16 %v1167
          %v1180 = vpack.c.b16 %v1177, %v1176
          %v1181 = vpack.c.b16 %v1179, %v1178
          %v1185 = vsel %vm615, %v1163, 0
          %1187 = vmatpush.bf16.msra.mxu0 0
          %1188 = vmatpush.bf16.msra.mxu0 0
          %1189 = vmatpush.bf16.msra.mxu0 0
          %1190 = vmatpush.bf16.msra.mxu0 0
          %1191 = vmatpush.bf16.msra.mxu0 0
          %1192 = vmatpush.bf16.msra.mxu0 0
          %1193 = vmatpush.bf16.msra.mxu0 %v1181
          %1194 = vmatpush.bf16.msra.mxu0 %v1180
          %1195 = vmatmul.bf16.gmra.mxu0 %v1185
          %v1196 = vpop.f32.mrf.mxu0
          %v1197 = vadd.f32 %v1170, %v1196
          %v1198 = vpop.f32.mrf.mxu0
          %1199 = vdwg.mxu0
          %v1200 = vmax.f32 %v1197, 0.0
          %v1201 = vpack.c.bf16 %v1200, %v1200
          %v1202 = vld [vmem:[%s13] sm:$0xf]
          %v1203 = vld [vmem:[%s13 + $0x4] sm:$0xf]
          %v1204 = vld [vmem:[%s13 + $0x8] sm:$0xf]
          %v1205 = vld [vmem:[%s13 + $0xc] sm:$0xf]
          %v1206 = vld [vmem:[%s13 + $0x10] sm:$0xf]
          %v1207 = vld [vmem:[%s13 + $0x14] sm:$0xf]
          %v1208 = vld [vmem:[%s13 + $0x18] sm:$0xf]
          %v1209 = vld [vmem:[%s13 + $0x1c] sm:$0xf]
          %v1210 = vld [vmem:[%s13 + $0x20] sm:$0xf]
          %v1211 = vld [vmem:[%s13 + $0x24] sm:$0xf]
          %v1212 = vld [vmem:[%s13 + $0x28] sm:$0xf]
          %v1213 = vld [vmem:[%s13 + $0x2c] sm:$0xf]
          %v1214 = vld [vmem:[%s13 + $0x30] sm:$0xf]
          %v1215 = vld [vmem:[%s13 + $0x34] sm:$0xf]
          %v1216 = vld [vmem:[%s13 + $0x38] sm:$0xf]
          %v1217 = vld [vmem:[%s13 + $0x3c] sm:$0xf]
          %v1218 = vld [vmem:[%s14] sm:$0x1]
          %v1220 = vperm.slane %v1218, 0
          %v1238 = vunpack.c.l.b16 %v1202
          %v1239 = vunpack.c.l.b16 %v1203
          %v1240 = vunpack.c.l.b16 %v1204
          %v1241 = vunpack.c.l.b16 %v1205
          %v1242 = vunpack.c.l.b16 %v1206
          %v1243 = vunpack.c.l.b16 %v1207
          %v1244 = vunpack.c.l.b16 %v1208
          %v1245 = vunpack.c.l.b16 %v1209
          %v1246 = vunpack.c.l.b16 %v1210
          %v1247 = vunpack.c.l.b16 %v1211
          %v1248 = vunpack.c.l.b16 %v1212
          %v1249 = vunpack.c.l.b16 %v1213
          %v1250 = vunpack.c.l.b16 %v1214
          %v1251 = vunpack.c.l.b16 %v1215
          %v1252 = vunpack.c.l.b16 %v1216
          %v1253 = vunpack.c.l.b16 %v1217
          %v1254 = vpack.c.b16 %v1239, %v1238
          %v1255 = vpack.c.b16 %v1241, %v1240
          %v1256 = vpack.c.b16 %v1243, %v1242
          %v1257 = vpack.c.b16 %v1245, %v1244
          %v1258 = vpack.c.b16 %v1247, %v1246
          %v1259 = vpack.c.b16 %v1249, %v1248
          %v1260 = vpack.c.b16 %v1251, %v1250
          %v1261 = vpack.c.b16 %v1253, %v1252
          %1270 = vmatpush.bf16.msra.mxu0 %v1261
          %1271 = vmatpush.bf16.msra.mxu0 %v1260
          %1272 = vmatpush.bf16.msra.mxu0 %v1259
          %1273 = vmatpush.bf16.msra.mxu0 %v1258
          %1274 = vmatpush.bf16.msra.mxu0 %v1257
          %1275 = vmatpush.bf16.msra.mxu0 %v1256
          %1276 = vmatpush.bf16.msra.mxu0 %v1255
          %1277 = vmatpush.bf16.msra.mxu0 %v1254
          %1278 = vmatmul.bf16.gmra.mxu0 %v1201
          %v1279 = vpop.f32.mrf.mxu0
          %v1280 = vadd.f32 %v1220, %v1279
          %v1281 = vpop.f32.mrf.mxu0
          %1282 = vdwg.mxu0
          %v1283 = vadd.f32 %v1162, %v1280
          %v1284 = vld [vmem:[%s15] sm:$0x1]
          %v1285 = vld [vmem:[%s16] sm:$0x1]
          %v1286 = vsel %vm615, %v1283, 0.0
          %1287 = vadd.xlane.f32.xlu0 %v1286
          %v1288 = vpop.xlane.xlu0 %1287
          %v1289 = vmul.f32 %v1288, %v1135
          %v1290 = vsub.f32 %v1283, %v1289
          %v1291 = vmul.f32 %v1290, %v1290
          %v1292 = vsel %vm615, %v1291, 0.0
          %1293 = vadd.xlane.f32.xlu0 %v1292
          %v1294 = vpop.xlane.xlu0 %1293
          %v1295 = vmul.f32 %v1294, %v1135
          %v1296 = vadd.f32 %v1295, 1e-05
          %v1297 = vrsqrt.pop %v1296
          %v1298 = vmul.f32 %v1297, %v1296
          %v1299 = vmul.f32 %v1298, %v1297
          %v1300 = vmul.f32 0.5, %v1299
          %v1301 = vsub.f32 1.5, %v1300
          %v1302 = vmul.f32 %v1297, %v1301
          %vm1303 = vweird.f32 %v1296
          %vm1304 = vweird.f32 %v1297
          %vm1305 = vmor %vm1303, %vm1304
          %v1306 = vsel %vm1305, %v1297, %v1302
          %v1307 = vmul.f32 %v1290, %v1306
          %v1309 = vperm.slane %v1284, 0
          %v1311 = vmul.f32 %v1307, %v1309
          %v1313 = vperm.slane %v1285, 0
          %v1315 = vadd.f32 %v1311, %v1313
        $region105: #{tpu_custom_call.1} parent=87 // loop_footer
          %s596 = sadd.s32 1, %s592
        $region106: #{tpu_custom_call.1} parent=87 // loop_footer_branch
          %591 = sbr.rel target = $region102
        $region107: #{tpu_custom_call.1} parent=87 // loop_exit
          _
        %vm1316 = vcmask 261120
        %1317 = vst.msk [vmem:[%s583] sm:$0xff] %vm1316, %v597
        %s1318 = sand.u32 %s403, 1
        %s1319 = scalar_lea.sflag [#allocation4], %s1318
        %s1320 = sand.u32 %s403, 1
        %s1321 = smul.addr %s1320, 8
        %s1322 = scalar_lea.vmem [#allocation8], %s1321
        // Predicated region
        $region108: #{tpu_custom_call.1} parent=87 // pred_check
          %p1323 = pneg %p413
        $region109: #{tpu_custom_call.1} parent=87 // pred_check_branch
          %1325 = sbr.rel (%p1323) target = $region111
        $region110: #{tpu_custom_call.1} parent=87 // pred_region
          %1327 = vsyncadd %s1319, 0
          %s1328 = smul.addr %s33, 8
          %s1329 = scalar_lea.hbm %s17, %s1328
          %s1331 = sshll.u32 %s1322, 4
          %s1332 = int_to_ptr.vmem [resolvable:$true] %s1331
          %s1333 = sshll.u32 %s1329, 4
          %s1334 = int_to_ptr.hbm [resolvable:$true] %s1333
          %1336 = dma.vmem_to_hbm [thread:$0]  %s1332, 128, %s1334, %s1319
        $region111: #{tpu_custom_call.1} parent=87 // pred_fallthru
          _
      $region88: #{tpu_custom_call.1} parent=5 // pred_fallthru
        _
      %p1337 = scmp.le.s32.totalorder 2, %s28
      // Predicated region
      $region112: #{tpu_custom_call.1} parent=5 // pred_check
        %p1338 = pneg %p1337
      $region113: #{tpu_custom_call.1} parent=5 // pred_check_branch
        %1340 = sbr.rel (%p1338) target = $region115
      $region114: #{tpu_custom_call.1} parent=5 // pred_region
        %s1341 = ssub.s32 %s28, 2
        // Predicated region
        $region116: #{tpu_custom_call.1} parent=114 // pred_check
          %p1342 = pneg %p419
        $region117: #{tpu_custom_call.1} parent=114 // pred_check_branch
          %1344 = sbr.rel (%p1342) target = $region119
        $region118: #{tpu_custom_call.1} parent=114 // pred_region
          %s1345 = sand.u32 %s404, 1
          %s1346 = scalar_lea.sflag [#allocation4], %s1345
          %s1347 = sand.u32 %s404, 1
          %s1348 = smul.addr %s1347, 8
          %s1349 = scalar_lea.vmem [#allocation8], %s1348
          %1351 = dma.done %s1346, 128
        $region119: #{tpu_custom_call.1} parent=114 // pred_fallthru
          _
      $region115: #{tpu_custom_call.1} parent=5 // pred_fallthru
        _
    $region6: #{tpu_custom_call.1} parent=1 // loop_footer
      %s32 = sadd.s32 1, %s28
    $region7: #{tpu_custom_call.1} parent=1 // loop_footer_branch
      %27 = sbr.rel target = $region3
    $region8: #{tpu_custom_call.1} parent=1 // loop_exit
      _
    %1352 = vsyncpa [#allocation3], 1
    %s1353 = scalar_lea.sflag [#allocation3], 1
    %1354 = vsyncpa %s1353, 1
    %1355 = vsyncpa [#allocation6], 1
    %1356 = vsyncpa [#allocation4], 1
    %s1357 = scalar_lea.sflag [#allocation4], 1
    %1358 = vsyncpa %s1357, 1

</llo_original>
